<compile_context>
chip_gen: v5e
topology: v5e:2x2
jax: 0.10.0
libtpu: 0.0.40
codegen_flags: <defaults>
</compile_context>

<pallas_src>
import functools
import math

import numpy as np
import jax
import jax.numpy as jnp
from jax.experimental import pallas as pl
from jax.experimental.pallas import tpu as pltpu


# Set to jnp.bfloat16 on v6e/v7x for ~2x MXU throughput (f32 accumulate is kept either way).
MATMUL_COMPUTE_DTYPE = jnp.float32
_VMEM_LIMIT = 32 * 1024 * 1024


# ----------------------------------------------------------------------------- utilities

def _round_up(x, m):
    return (x + m - 1) // m * m


def _choose_m_tile(M, K, bytes_per_elem=4, budget=6 * 1024 * 1024):
    """Pick a lane tile tm (multiple of 128 dividing M, or full extent) and padded M."""
    def fits(t):
        return K * t * bytes_per_elem * 2 <= budget      # double-buffered (K, tm) block
    if M % 128 == 0:
        for t in (1024, 512, 256, 128):
            if M % t == 0 and (fits(t) or t == 128):
                return t, M
        return 128, M
    if M <= 2048 and fits(M):
        return M, M                                      # full-extent single block
    Mp = _round_up(M, 128)
    return 128, Mp


# ----------------------------------------------------------------------------- Pallas matmul kernel
# out(Cout, M) = A(Cout, K) @ B(K, M) + bias (per row), optional fused PReLU (per-row alpha).
# The big M axis is the lane dimension -> dense stores; Cout / K stay un-padded
# (full-extent blocks) except for a cheap sublane round-up to a multiple of 8.

def _mmT_kernel(a_ref, b_ref, ba_ref, o_ref, *, act):
    r = jnp.dot(a_ref[...], b_ref[...], preferred_element_type=jnp.float32)
    r = r + ba_ref[:, 0:1]                               # bias column, broadcast over lanes
    if act == "prelu":
        r = jnp.where(r >= 0, r, ba_ref[:, 1:2] * r)     # per-output-channel alpha
    o_ref[...] = r.astype(o_ref.dtype)


def pallas_matmul_T(a, b, bias=None, alpha=None, act="none"):
    """a: (Co, K) small weights; b: (K, M) activations with M large -> (Co, M)."""
    Co, K = a.shape
    K2, M = b.shape
    assert K == K2
    bias = jnp.zeros((Co,), jnp.float32) if bias is None else bias.astype(jnp.float32)
    alpha = jnp.zeros((Co,), jnp.float32) if alpha is None else alpha.astype(jnp.float32)
    ba = jnp.stack([bias, alpha], axis=1)                # (Co, 2)

    # cheap sublane alignment of the small dims (weights / bias only grow by <= 5 rows)
    Co8, K8 = _round_up(Co, 8), _round_up(K, 8)
    if Co8 != Co or K8 != K:
        a = jnp.pad(a, ((0, Co8 - Co), (0, K8 - K)))
        ba = jnp.pad(ba, ((0, Co8 - Co), (0, 0)))
    if K8 != K:
        b = jnp.pad(b, ((0, K8 - K), (0, 0)))

    a = a.astype(MATMUL_COMPUTE_DTYPE)
    b = b.astype(MATMUL_COMPUTE_DTYPE)

    tm, Mp = _choose_m_tile(M, K8, np.dtype(MATMUL_COMPUTE_DTYPE).itemsize)
    if Mp != M:
        b = jnp.pad(b, ((0, 0), (0, Mp - M)))

    out = pl.pallas_call(
        functools.partial(_mmT_kernel, act=act),
        out_shape=jax.ShapeDtypeStruct((Co8, Mp), jnp.float32),
        grid=(Mp // tm,),
        in_specs=[pl.BlockSpec((Co8, K8), lambda m: (0, 0)),
                  pl.BlockSpec((K8, tm), lambda m: (0, m)),
                  pl.BlockSpec((Co8, 2), lambda m: (0, 0))],
        out_specs=pl.BlockSpec((Co8, tm), lambda m: (0, m)),
        compiler_params=pltpu.CompilerParams(
            dimension_semantics=("parallel",),
            vmem_limit_bytes=_VMEM_LIMIT),
    )(a, b, ba)
    if Co8 != Co or Mp != M:
        out = out[:Co, :M]
    return out


# ----------------------------------------------------------------------------- Haar butterfly kernel
# Forward (scale=0.25) and inverse (scale=1.0) 2x2 Haar transform share one butterfly.
# Operates on (rows, 128) lane-dense flattened data with a row grid.

_HAAR_LANES = 128


def _haar_kernel(p_ref, q_ref, r_ref, s_ref, o0_ref, o1_ref, o2_ref, o3_ref, *, scale):
    p, q, r, s = p_ref[...], q_ref[...], r_ref[...], s_ref[...]
    o0_ref[...] = (p + q + r + s) * scale
    o1_ref[...] = (p - q + r - s) * scale
    o2_ref[...] = (p + q - r - s) * scale
    o3_ref[...] = (p - q - r + s) * scale


def haar_butterfly(p, q, r, s, scale):
    shape = p.shape
    T = p.size
    L = _HAAR_LANES
    rows = _round_up(max(T, 1), L * 8) // L              # multiple of 8 rows
    padT = rows * L - T

    def prep(a):
        a = a.reshape(-1).astype(jnp.float32)
        if padT:
            a = jnp.pad(a, (0, padT))
        return a.reshape(rows, L)

    fp, fq, fr, fs = prep(p), prep(q), prep(r), prep(s)

    if rows <= 1024:
        tr = rows
    else:
        tr = 8
        for cand in (1024, 512, 256, 128, 64, 32, 16):
            if rows % cand == 0:
                tr = cand
                break

    spec = pl.BlockSpec((tr, L), lambda i: (i, 0))
    outs = pl.pallas_call(
        functools.partial(_haar_kernel, scale=scale),
        out_shape=[jax.ShapeDtypeStruct((rows, L), jnp.float32)] * 4,
        grid=(rows // tr,),
        in_specs=[spec] * 4,
        out_specs=[spec] * 4,
        compiler_params=pltpu.CompilerParams(
            dimension_semantics=("parallel",),
            vmem_limit_bytes=_VMEM_LIMIT),
    )(fp, fq, fr, fs)

    def post(o):
        o = o.reshape(-1)
        if padT:
            o = o[:T]
        return o.reshape(shape)

    return tuple(post(o) for o in outs)


def haar_forward(x):
    """x: (N, C, H, W) -> (N, 4C, H/2, W/2) ordered [a, h, v, d] (IRN-style Haar)."""
    N, C, H, W = x.shape
    xr = x.reshape(N, C, H // 2, 2, W // 2, 2)
    x00 = xr[:, :, :, 0, :, 0]
    x01 = xr[:, :, :, 0, :, 1]
    x10 = xr[:, :, :, 1, :, 0]
    x11 = xr[:, :, :, 1, :, 1]
    a, h, v, d = haar_butterfly(x00, x01, x10, x11, 0.25)
    return jnp.concatenate([a, h, v, d], axis=1)


def haar_reverse(x):
    """x: (N, 4C, H, W) ordered [a, h, v, d] -> (N, C, 2H, 2W)."""
    N, C4, H, W = x.shape
    C = C4 // 4
    a, h, v, d = x[:, :C], x[:, C:2 * C], x[:, 2 * C:3 * C], x[:, 3 * C:]
    y00, y01, y10, y11 = haar_butterfly(a, h, v, d, 1.0)
    top = jnp.stack([y00, y01], axis=-1).reshape(N, C, H, 2 * W)   # even rows
    bot = jnp.stack([y10, y11], axis=-1).reshape(N, C, H, 2 * W)   # odd rows
    return jnp.stack([top, bot], axis=-2).reshape(N, C, 2 * H, 2 * W)


# ----------------------------------------------------------------------------- conv helpers (im2col in (K, M) layout + Pallas matmul)

def conv2d(x, w, b=None, stride=1, pad=0, act="none", alpha=None):
    """x: (N, Cin, H, W), w: (Cout, Cin, kh, kw) -> (N, Cout, OH, OW)."""
    N, Cin, H, Wd = x.shape
    Cout, _, kh, kw = w.shape
    if pad > 0:
        x = jnp.pad(x, ((0, 0), (0, 0), (pad, pad), (pad, pad)))
    Hp, Wp = x.shape[2], x.shape[3]
    OH = (Hp - kh) // stride + 1
    OW = (Wp - kw) // stride + 1
    M = N * OH * OW
    K = Cin * kh * kw

    if kh == 1 and kw == 1 and stride == 1:
        B = x.reshape(N, Cin, OH * OW).transpose(1, 0, 2).reshape(Cin, M)
    else:
        # TODO(synk): im2col is still materialized in XLA (not fused into the matmul K axis).
        cols = []
        for ki in range(kh):
            for kj in range(kw):
                cols.append(x[:, :,
                              ki: ki + (OH - 1) * stride + 1: stride,
                              kj: kj + (OW - 1) * stride + 1: stride])
        patches = jnp.stack(cols, axis=0)                      # (kh*kw, N, Cin, OH, OW)
        B = patches.transpose(2, 0, 1, 3, 4).reshape(K, M)     # (Cin, kh*kw, N, OH, OW)

    A = w.reshape(Cout, K)
    out = pallas_matmul_T(A, B, bias=b, alpha=alpha, act=act)  # (Cout, M) lane-dense
    return out.reshape(Cout, N, OH, OW).transpose(1, 0, 2, 3)


def conv_transpose2d(x, w, b, stride, padding, output_padding):
    """PyTorch ConvTranspose2d semantics via sub-pixel (phase) decomposition.

    x: (N, Cin, H, W), w: (Cin, Cout, k, k) -> (N, Cout, OH, OW)
    Decomposes the stride-s transposed conv into s^2 small dense convs (stacked into one
    conv with s^2*Cout output channels) followed by a pixel shuffle.
    """
    N, Cin, H, W = x.shape
    Cin2, Cout, kh, kw = w.shape
    assert Cin2 == Cin and kh == kw
    s, p, k = stride, padding, kh
    OH = (H - 1) * s - 2 * p + k + output_padding
    OW = (W - 1) * s - 2 * p + k + output_padding

    # universal tap window over all phases: kh_tap = t*s + r + p, 0 <= kh_tap < k
    t_lo = min(-((r + p) // s) for r in range(s))
    t_hi = max((k - 1 - r - p) // s for r in range(s))
    KT = t_hi - t_lo + 1
    Hq = -(-OH // s)
    Wq = -(-OW // s)

    pad_t = t_hi
    pad_b = Hq + KT - 1 - H - t_hi
    pad_l = t_hi
    pad_r = Wq + KT - 1 - W - t_hi
    assert min(pad_t, pad_b, pad_l, pad_r) >= 0, \
        "TODO(synk): exotic deconv configs not covered by the sub-pixel path"
    xpad = jnp.pad(x, ((0, 0), (0, 0), (pad_t, pad_b), (pad_l, pad_r)))

    # Build the phase-decomposed weight: (s*s*Cout, Cin, KT, KT).
    offset = t_lo * s + p
    ext = KT * s
    lo = max(0, -offset)
    hi = min(ext, k - offset)
    wext = jnp.zeros((Cin, Cout, ext, ext), w.dtype)
    wext = wext.at[:, :, lo:hi, lo:hi].set(
        w[:, :, lo + offset:hi + offset, lo + offset:hi + offset])
    w6 = jnp.flip(wext.reshape(Cin, Cout, KT, s, KT, s), axis=(2, 4))
    w_comb = w6.transpose(3, 5, 1, 0, 2, 4).reshape(s * s * Cout, Cin, KT, KT)
    b_comb = jnp.tile(b, s * s)

    y = conv2d(xpad, w_comb, b_comb, stride=1, pad=0)          # (N, s*s*Cout, Hq, Wq)
    y = y.reshape(N, s, s, Cout, Hq, Wq).transpose(0, 3, 4, 1, 5, 2)
    y = y.reshape(N, Cout, Hq * s, Wq * s)
    return y[:, :, :OH, :OW]


# ----------------------------------------------------------------------------- bicubic (PyTorch a=-0.75, align_corners=False)

def _cubic_weight(x, a=-0.75):
    ax = abs(x)
    if ax <= 1:
        return (a + 2) * ax ** 3 - (a + 3) * ax ** 2 + 1
    if ax < 2:
        return a * ax ** 3 - 5 * a * ax ** 2 + 8 * a * ax - 4 * a
    return 0.0


def _bicubic_matrix(in_size, scale):
    out_size = in_size * scale
    W = np.zeros((out_size, in_size), np.float32)
    for o in range(out_size):
        src = (o + 0.5) / scale - 0.5
        i0 = int(np.floor(src))
        for t in range(-1, 3):
            idx = i0 + t
            w = _cubic_weight(src - idx)
            W[o, min(max(idx, 0), in_size - 1)] += w
    return jnp.asarray(W)


def bicubic_upsample(x, scale):
    N, C, H, W = x.shape
    Wr = _bicubic_matrix(H, scale)   # (OH, H)
    Wc = _bicubic_matrix(W, scale)   # (OW, W)
    OH, OW = H * scale, W * scale
    # rows:  (OH, H) @ (H, N*C*W)
    t = pallas_matmul_T(Wr, x.transpose(2, 0, 1, 3).reshape(H, N * C * W))
    t = t.reshape(OH, N, C, W)
    # cols:  (OW, W) @ (W, N*C*OH)
    u = pallas_matmul_T(Wc, t.transpose(3, 1, 2, 0).reshape(W, N * C * OH))
    return u.reshape(OW, N, C, OH).transpose(1, 2, 3, 0)


# ----------------------------------------------------------------------------- FSR module

class FSRPallas:
    def __init__(self, in_channels=3, whichModule="fsrcnn", upscale=4, seed=0):
        assert whichModule == "fsrcnn"
        assert in_channels == 3, "MeanShift assumes 3 RGB channels"
        self.C = in_channels
        self.scale = upscale
        self._key = jax.random.PRNGKey(seed + 1)

        C = self.C
        p = {}
        # SCBlock: TODO(synk): exact SCBlock definition not provided; using conv3x3(s2)+LReLU+conv3x3.
        p["sc1"] = self._init_conv(C, C, 3)
        p["sc2"] = self._init_conv(C, C, 3)
        # TABlocks: TODO(synk): exact TABlock definition not provided; using channel cross-attention.
        for name in ("ta1", "ta2", "ta3", "ta4"):
            p[name] = {"q": self._init_conv(C, C, 1),
                       "k": self._init_conv(C, 3 * C, 1),
                       "v": self._init_conv(C, 3 * C, 1),
                       "proj": self._init_conv(C, C, 1)}
        # FSRCNN SR nets (fsrcnn branch of FSR.__init__)
        p["sr_a"] = self._init_fsrcnn(6 * C, C, d=64, s=12, m=4)
        p["sr_h"] = self._init_fsrcnn(6 * C, C, d=16, s=12, m=4)
        p["sr_v"] = self._init_fsrcnn(6 * C, C, d=16, s=12, m=4)
        p["sr_d"] = self._init_fsrcnn(6 * C, C, d=14, s=12, m=4)
        self.p = p

        self.rgb_mean = jnp.array([0.4488, 0.4371, 0.404], jnp.float32)
        self.rgb_std = jnp.array([1.0, 1.0, 1.0], jnp.float32)

    # ----- parameter init ------------------------------------------------------
    def _next(self):
        self._key, sub = jax.random.split(self._key)
        return sub

    def _init_conv(self, cout, cin, k):
        fan = cin * k * k
        w = jax.random.normal(self._next(), (cout, cin, k, k), jnp.float32) / math.sqrt(fan)
        b = jnp.zeros((cout,), jnp.float32)
        return (w, b)

    def _init_fsrcnn(self, cin, cout, d, s, m):
        p = {}
        p["head"] = self._init_conv(d, cin, 5)
        p["head_a"] = jnp.full((d,), 0.25, jnp.float32)
        p["shrink"] = self._init_conv(s, d, 1)
        p["shrink_a"] = jnp.full((s,), 0.25, jnp.float32)
        p["map"] = [self._init_conv(s, s, 3) for _ in range(m)]
        p["map_a"] = jnp.full((s,), 0.25, jnp.float32)
        p["expand"] = self._init_conv(d, s, 1)
        p["expand_a"] = jnp.full((d,), 0.25, jnp.float32)
        p["deconv_w"] = jax.random.normal(self._next(), (d, cout, 9, 9), jnp.float32) / math.sqrt(d * 81)
        p["deconv_b"] = jnp.zeros((cout,), jnp.float32)
        return p

    # ----- submodules ----------------------------------------------------------
    def _mean_shift(self, x, sign):
        w = (jnp.eye(3, dtype=jnp.float32) / self.rgb_std[:, None]).reshape(3, 3, 1, 1)
        b = sign * 1.0 * self.rgb_mean / self.rgb_std
        return conv2d(x, w, b)

    def _scblock(self, x):
        (w1, b1), (w2, b2) = self.p["sc1"], self.p["sc2"]
        lrelu_alpha = jnp.full((self.C,), 0.2, jnp.float32)
        h = conv2d(x, w1, b1, stride=2, pad=1, act="prelu", alpha=lrelu_alpha)
        return conv2d(h, w2, b2, stride=1, pad=1)

    def _tablock(self, p, xq, xkv, spa):
        q = conv2d(xq, *p["q"])
        k = conv2d(xkv, *p["k"])
        v = conv2d(xkv, *p["v"])
        N, C, h, w = q.shape
        HW = h * w
        qf, kf, vf = q.reshape(N, C, HW), k.reshape(N, C, HW), v.reshape(N, C, HW)
        # Tiny CxC channel attention: a batched einsum + softmax (plain JAX) is strictly
        # faster than per-sample padded 128^3 Pallas matmuls.
        attn = jnp.einsum('ncx,ndx->ncd', qf, kf) / math.sqrt(HW)   # (N, C, C)
        attn = jax.nn.softmax(attn, axis=-1)
        o = jnp.einsum('ncd,ndx->ncx', attn, vf).reshape(N, C, h, w)
        return conv2d(o, *p["proj"]) + spa

    def _fsrcnn(self, p, x):
        x = conv2d(x, *p["head"], stride=1, pad=2, act="prelu", alpha=p["head_a"])
        x = conv2d(x, *p["shrink"], act="prelu", alpha=p["shrink_a"])
        # TODO(synk): exact PReLU placement in FSRCNN mapping layers assumed (one per conv).
        for (w, b) in p["map"]:
            x = conv2d(x, w, b, pad=1, act="prelu", alpha=p["map_a"])
        x = conv2d(x, *p["expand"], act="prelu", alpha=p["expand_a"])
        return conv_transpose2d(x, p["deconv_w"], p["deconv_b"],
                                stride=self.scale, padding=3,
                                output_padding=self.scale - 3)

    # ----- forward -------------------------------------------------------------
    def forward(self, x):
        C = self.C
        x = self._mean_shift(x, -1.0)                       # sub_mean
        out = haar_forward(x)                               # (N, 4C, H/2, W/2)
        spa = self._scblock(x)                              # (N, C, H/2, W/2)

        a, h = out[:, :C], out[:, C:2 * C]
        v, d = out[:, 2 * C:3 * C], out[:, 3 * C:4 * C]
        ahv = jnp.concatenate([a, h, v], 1)
        ahd = jnp.concatenate([a, h, d], 1)
        avd = jnp.concatenate([a, v, d], 1)
        hvd = jnp.concatenate([h, v, d], 1)

        atn_a = self._tablock(self.p["ta1"], a, hvd, spa)
        atn_h = self._tablock(self.p["ta2"], h, avd, spa)
        atn_v = self._tablock(self.p["ta3"], v, ahd, spa)
        atn_d = self._tablock(self.p["ta4"], d, ahv, spa)

        fea_a = jnp.concatenate([out, atn_a, spa], 1)
        fea_h = jnp.concatenate([out, atn_h, spa], 1)
        fea_v = jnp.concatenate([out, atn_v, spa], 1)
        fea_d = jnp.concatenate([out, atn_d, spa], 1)

        sr_a = self._fsrcnn(self.p["sr_a"], fea_a)
        sr_h = self._fsrcnn(self.p["sr_h"], fea_h)
        sr_v = self._fsrcnn(self.p["sr_v"], fea_v)
        sr_d = self._fsrcnn(self.p["sr_d"], fea_d)

        x2 = bicubic_upsample(x, self.scale)
        out2 = haar_forward(x2)
        sr_a = sr_a + out2[:, :C]
        sr_h = sr_h + out2[:, C:2 * C]
        sr_v = sr_v + out2[:, 2 * C:3 * C]
        sr_d = sr_d + out2[:, 3 * C:4 * C]

        sr_ahvd = jnp.concatenate([sr_a, sr_h, sr_v, sr_d], 1)
        sr = haar_reverse(sr_ahvd)
        sr = self._mean_shift(sr, 1.0)                      # add_mean

        sr2 = haar_forward(sr)
        return (sr2[:, :C], sr2[:, C:2 * C],
                sr2[:, 2 * C:3 * C], sr2[:, 3 * C:4 * C], sr)


# ----------------------------------------------------------------------------- main

if __name__ == "__main__":
    key = jax.random.PRNGKey(0)
    N, C, H, W = 2, 3, 16, 16
    x = jax.random.uniform(key, (N, C, H, W), jnp.float32)

    model = FSRPallas(in_channels=C, whichModule="fsrcnn", upscale=4, seed=0)
    fwd = jax.jit(model.forward)
    outs = fwd(x)
    outs = jax.block_until_ready(outs)

    scale = 4
    assert outs[0].shape == (N, C, H * scale // 2, W * scale // 2)
    assert outs[1].shape == (N, C, H * scale // 2, W * scale // 2)
    assert outs[2].shape == (N, C, H * scale // 2, W * scale // 2)
    assert outs[3].shape == (N, C, H * scale // 2, W * scale // 2)
    assert outs[4].shape == (N, C, H * scale, W * scale)
    assert all(bool(jnp.all(jnp.isfinite(o))) for o in outs)
    print("KERNEL_OK")
</pallas_src>

<mosaic_0001>
module attributes {stable_mosaic.version = 11 : i64} {
  func.func @_mmT_kernel(%arg0: i32, %arg1: memref<8x8xf32, #tpu.memory_space<vmem>>, %arg2: memref<8x512xf32, #tpu.memory_space<vmem>>, %arg3: memref<8x2xf32, #tpu.memory_space<vmem>>, %arg4: memref<8x512xf32, #tpu.memory_space<vmem>>) attributes {dimension_semantics = [#tpu.dimension_semantics<parallel>], iteration_bounds = array<i64: 1>, scalar_prefetch = 0 : i64, scratch_operands = 0 : i64, tpu.core_type = #tpu.core_type<tc>, window_params = [{pipeline_mode = #tpu.pipeline_mode<synchronous>, transform_indices = @transform_0, window_bounds = array<i64: 8, 8>}, {transform_indices = @transform_1, window_bounds = array<i64: 8, 512>}, {pipeline_mode = #tpu.pipeline_mode<synchronous>, transform_indices = @transform_2, window_bounds = array<i64: 8, 2>}, {transform_indices = @transform_3, window_bounds = array<i64: 8, 512>}]} {
    %c0 = arith.constant 0 : index
    %c0_0 = arith.constant 0 : index
    %0 = vector.load %arg1[%c0, %c0_0] : memref<8x8xf32, #tpu.memory_space<vmem>>, vector<8x8xf32>
    %c0_1 = arith.constant 0 : index
    %c0_2 = arith.constant 0 : index
    %1 = vector.load %arg2[%c0_1, %c0_2] : memref<8x512xf32, #tpu.memory_space<vmem>>, vector<8x512xf32>
    %cst = arith.constant dense<0.000000e+00> : vector<8x512xf32>
    %2 = tpu.matmul %0, %1, %cst {dimension_numbers = #tpu.dot_dimension_numbers<[1], [0], [0], [1], [0, 0, 1, 1], [], []>} : vector<8x8xf32>, vector<8x512xf32>, vector<8x512xf32> -> vector<8x512xf32>
    %c0_3 = arith.constant 0 : index
    %c0_4 = arith.constant 0 : index
    %3 = vector.load %arg3[%c0_3, %c0_4] : memref<8x2xf32, #tpu.memory_space<vmem>>, vector<8x1xf32>
    %4 = vector.broadcast %3 : vector<8x1xf32> to vector<8x512xf32>
    %5 = arith.addf %2, %4 : vector<8x512xf32>
    %c0_5 = arith.constant 0 : index
    %c0_6 = arith.constant 0 : index
    %6 = vector.load %arg4[%c0_5, %c0_6] : memref<8x512xf32, #tpu.memory_space<vmem>>, vector<8x512xf32>
    tpu.vector_store %arg4[%c0_5, %c0_6], %5 {strides = array<i32>} : memref<8x512xf32, #tpu.memory_space<vmem>>, vector<8x512xf32>,
    return
  }
  func.func @transform_0(%arg0: i32) -> (i32, i32) {
    %c0_i32 = arith.constant 0 : i32
    %c0_i32_0 = arith.constant 0 : i32
    %c0_i32_1 = arith.constant 0 : i32
    return %c0_i32, %c0_i32_0 : i32, i32
  }
  func.func @transform_1(%arg0: i32) -> (i32, i32) {
    %c0_i32 = arith.constant 0 : i32
    %c0_i32_0 = arith.constant 0 : i32
    return %c0_i32, %arg0 : i32, i32
  }
  func.func @transform_2(%arg0: i32) -> (i32, i32) {
    %c0_i32 = arith.constant 0 : i32
    %c0_i32_0 = arith.constant 0 : i32
    %c0_i32_1 = arith.constant 0 : i32
    return %c0_i32, %c0_i32_0 : i32, i32
  }
  func.func @transform_3(%arg0: i32) -> (i32, i32) {
    %c0_i32 = arith.constant 0 : i32
    %c0_i32_0 = arith.constant 0 : i32
    return %c0_i32, %arg0 : i32, i32
  }
}

module attributes {stable_mosaic.version = 11 : i64} {
  func.func @_mmT_kernel(%arg0: i32, %arg1: memref<64x16xf32, #tpu.memory_space<vmem>>, %arg2: memref<16x96xf32, #tpu.memory_space<vmem>>, %arg3: memref<64x2xf32, #tpu.memory_space<vmem>>, %arg4: memref<64x96xf32, #tpu.memory_space<vmem>>) attributes {dimension_semantics = [#tpu.dimension_semantics<parallel>], iteration_bounds = array<i64: 1>, scalar_prefetch = 0 : i64, scratch_operands = 0 : i64, tpu.core_type = #tpu.core_type<tc>, window_params = [{pipeline_mode = #tpu.pipeline_mode<synchronous>, transform_indices = @transform_0, window_bounds = array<i64: 64, 16>}, {transform_indices = @transform_1, window_bounds = array<i64: 16, 96>}, {pipeline_mode = #tpu.pipeline_mode<synchronous>, transform_indices = @transform_2, window_bounds = array<i64: 64, 2>}, {transform_indices = @transform_3, window_bounds = array<i64: 64, 96>}]} {
    %c0 = arith.constant 0 : index
    %c0_0 = arith.constant 0 : index
    %0 = vector.load %arg1[%c0, %c0_0] : memref<64x16xf32, #tpu.memory_space<vmem>>, vector<64x16xf32>
    %c0_1 = arith.constant 0 : index
    %c0_2 = arith.constant 0 : index
    %1 = vector.load %arg2[%c0_1, %c0_2] : memref<16x96xf32, #tpu.memory_space<vmem>>, vector<16x96xf32>
    %cst = arith.constant dense<0.000000e+00> : vector<64x96xf32>
    %2 = tpu.matmul %0, %1, %cst {dimension_numbers = #tpu.dot_dimension_numbers<[1], [0], [0], [1], [0, 0, 1, 1], [], []>} : vector<64x16xf32>, vector<16x96xf32>, vector<64x96xf32> -> vector<64x96xf32>
    %c0_3 = arith.constant 0 : index
    %c0_4 = arith.constant 0 : index
    %3 = vector.load %arg3[%c0_3, %c0_4] : memref<64x2xf32, #tpu.memory_space<vmem>>, vector<64x1xf32>
    %4 = vector.broadcast %3 : vector<64x1xf32> to vector<64x96xf32>
    %5 = arith.addf %2, %4 : vector<64x96xf32>
    %c0_5 = arith.constant 0 : index
    %c0_6 = arith.constant 0 : index
    %6 = vector.load %arg4[%c0_5, %c0_6] : memref<64x96xf32, #tpu.memory_space<vmem>>, vector<64x96xf32>
    tpu.vector_store %arg4[%c0_5, %c0_6], %5 {strides = array<i32>} : memref<64x96xf32, #tpu.memory_space<vmem>>, vector<64x96xf32>,
    return
  }
  func.func @transform_0(%arg0: i32) -> (i32, i32) {
    %c0_i32 = arith.constant 0 : i32
    %c0_i32_0 = arith.constant 0 : i32
    %c0_i32_1 = arith.constant 0 : i32
    return %c0_i32, %c0_i32_0 : i32, i32
  }
  func.func @transform_1(%arg0: i32) -> (i32, i32) {
    %c0_i32 = arith.constant 0 : i32
    %c0_i32_0 = arith.constant 0 : i32
    return %c0_i32, %arg0 : i32, i32
  }
  func.func @transform_2(%arg0: i32) -> (i32, i32) {
    %c0_i32 = arith.constant 0 : i32
    %c0_i32_0 = arith.constant 0 : i32
    %c0_i32_1 = arith.constant 0 : i32
    return %c0_i32, %c0_i32_0 : i32, i32
  }
  func.func @transform_3(%arg0: i32) -> (i32, i32) {
    %c0_i32 = arith.constant 0 : i32
    %c0_i32_0 = arith.constant 0 : i32
    return %c0_i32, %arg0 : i32, i32
  }
}

module attributes {stable_mosaic.version = 11 : i64} {
  func.func @_mmT_kernel(%arg0: i32, %arg1: memref<64x16xf32, #tpu.memory_space<vmem>>, %arg2: memref<16x128xf32, #tpu.memory_space<vmem>>, %arg3: memref<64x2xf32, #tpu.memory_space<vmem>>, %arg4: memref<64x128xf32, #tpu.memory_space<vmem>>) attributes {dimension_semantics = [#tpu.dimension_semantics<parallel>], iteration_bounds = array<i64: 3>, scalar_prefetch = 0 : i64, scratch_operands = 0 : i64, tpu.core_type = #tpu.core_type<tc>, window_params = [{pipeline_mode = #tpu.pipeline_mode<synchronous>, transform_indices = @transform_0, window_bounds = array<i64: 64, 16>}, {transform_indices = @transform_1, window_bounds = array<i64: 16, 128>}, {pipeline_mode = #tpu.pipeline_mode<synchronous>, transform_indices = @transform_2, window_bounds = array<i64: 64, 2>}, {transform_indices = @transform_3, window_bounds = array<i64: 64, 128>}]} {
    %c0 = arith.constant 0 : index
    %c0_0 = arith.constant 0 : index
    %0 = vector.load %arg1[%c0, %c0_0] : memref<64x16xf32, #tpu.memory_space<vmem>>, vector<64x16xf32>
    %c0_1 = arith.constant 0 : index
    %c0_2 = arith.constant 0 : index
    %1 = vector.load %arg2[%c0_1, %c0_2] : memref<16x128xf32, #tpu.memory_space<vmem>>, vector<16x128xf32>
    %cst = arith.constant dense<0.000000e+00> : vector<64x128xf32>
    %2 = tpu.matmul %0, %1, %cst {dimension_numbers = #tpu.dot_dimension_numbers<[1], [0], [0], [1], [0, 0, 1, 1], [], []>} : vector<64x16xf32>, vector<16x128xf32>, vector<64x128xf32> -> vector<64x128xf32>
    %c0_3 = arith.constant 0 : index
    %c0_4 = arith.constant 0 : index
    %3 = vector.load %arg3[%c0_3, %c0_4] : memref<64x2xf32, #tpu.memory_space<vmem>>, vector<64x1xf32>
    %4 = vector.broadcast %3 : vector<64x1xf32> to vector<64x128xf32>
    %5 = arith.addf %2, %4 : vector<64x128xf32>
    %c0_5 = arith.constant 0 : index
    %c0_6 = arith.constant 0 : index
    %6 = vector.load %arg4[%c0_5, %c0_6] : memref<64x128xf32, #tpu.memory_space<vmem>>, vector<64x128xf32>
    tpu.vector_store %arg4[%c0_5, %c0_6], %5 {strides = array<i32>} : memref<64x128xf32, #tpu.memory_space<vmem>>, vector<64x128xf32>,
    return
  }
  func.func @transform_0(%arg0: i32) -> (i32, i32) {
    %c0_i32 = arith.constant 0 : i32
    %c0_i32_0 = arith.constant 0 : i32
    %c0_i32_1 = arith.constant 0 : i32
    return %c0_i32, %c0_i32_0 : i32, i32
  }
  func.func @transform_1(%arg0: i32) -> (i32, i32) {
    %c0_i32 = arith.constant 0 : i32
    %c0_i32_0 = arith.constant 0 : i32
    return %c0_i32, %arg0 : i32, i32
  }
  func.func @transform_2(%arg0: i32) -> (i32, i32) {
    %c0_i32 = arith.constant 0 : i32
    %c0_i32_0 = arith.constant 0 : i32
    %c0_i32_1 = arith.constant 0 : i32
    return %c0_i32, %c0_i32_0 : i32, i32
  }
  func.func @transform_3(%arg0: i32) -> (i32, i32) {
    %c0_i32 = arith.constant 0 : i32
    %c0_i32_0 = arith.constant 0 : i32
    return %c0_i32, %arg0 : i32, i32
  }
}

module attributes {stable_mosaic.version = 11 : i64} {
  func.func @_mmT_kernel(%arg0: i32, %arg1: memref<8x32xf32, #tpu.memory_space<vmem>>, %arg2: memref<32x128xf32, #tpu.memory_space<vmem>>, %arg3: memref<8x2xf32, #tpu.memory_space<vmem>>, %arg4: memref<8x128xf32, #tpu.memory_space<vmem>>) attributes {dimension_semantics = [#tpu.dimension_semantics<parallel>], iteration_bounds = array<i64: 1>, scalar_prefetch = 0 : i64, scratch_operands = 0 : i64, tpu.core_type = #tpu.core_type<tc>, window_params = [{pipeline_mode = #tpu.pipeline_mode<synchronous>, transform_indices = @transform_0, window_bounds = array<i64: 8, 32>}, {transform_indices = @transform_1, window_bounds = array<i64: 32, 128>}, {pipeline_mode = #tpu.pipeline_mode<synchronous>, transform_indices = @transform_2, window_bounds = array<i64: 8, 2>}, {transform_indices = @transform_3, window_bounds = array<i64: 8, 128>}]} {
    %c0 = arith.constant 0 : index
    %c0_0 = arith.constant 0 : index
    %0 = vector.load %arg1[%c0, %c0_0] : memref<8x32xf32, #tpu.memory_space<vmem>>, vector<8x32xf32>
    %c0_1 = arith.constant 0 : index
    %c0_2 = arith.constant 0 : index
    %1 = vector.load %arg2[%c0_1, %c0_2] : memref<32x128xf32, #tpu.memory_space<vmem>>, vector<32x128xf32>
    %cst = arith.constant dense<0.000000e+00> : vector<8x128xf32>
    %2 = tpu.matmul %0, %1, %cst {dimension_numbers = #tpu.dot_dimension_numbers<[1], [0], [0], [1], [0, 0, 1, 1], [], []>} : vector<8x32xf32>, vector<32x128xf32>, vector<8x128xf32> -> vector<8x128xf32>
    %c0_3 = arith.constant 0 : index
    %c0_4 = arith.constant 0 : index
    %3 = vector.load %arg3[%c0_3, %c0_4] : memref<8x2xf32, #tpu.memory_space<vmem>>, vector<8x1xf32>
    %4 = vector.broadcast %3 : vector<8x1xf32> to vector<8x128xf32>
    %5 = arith.addf %2, %4 : vector<8x128xf32>
    %cst_5 = arith.constant 0.000000e+00 : f32
    %6 = vector.broadcast %cst_5 : f32 to vector<8x128xf32>
    %7 = arith.cmpf oge, %5, %6 : vector<8x128xf32>
    %c0_6 = arith.constant 0 : index
    %c1 = arith.constant 1 : index
    %8 = vector.load %arg3[%c0_6, %c1] : memref<8x2xf32, #tpu.memory_space<vmem>>, vector<8x1xf32>
    %9 = vector.broadcast %8 : vector<8x1xf32> to vector<8x128xf32>
    %10 = arith.mulf %9, %5 : vector<8x128xf32>
    %11 = arith.select %7, %5, %10 : vector<8x128xi1>, vector<8x128xf32>
    %c0_7 = arith.constant 0 : index
    %c0_8 = arith.constant 0 : index
    %12 = vector.load %arg4[%c0_7, %c0_8] : memref<8x128xf32, #tpu.memory_space<vmem>>, vector<8x128xf32>
    tpu.vector_store %arg4[%c0_7, %c0_8], %11 {strides = array<i32>} : memref<8x128xf32, #tpu.memory_space<vmem>>, vector<8x128xf32>,
    return
  }
  func.func @transform_0(%arg0: i32) -> (i32, i32) {
    %c0_i32 = arith.constant 0 : i32
    %c0_i32_0 = arith.constant 0 : i32
    %c0_i32_1 = arith.constant 0 : i32
    return %c0_i32, %c0_i32_0 : i32, i32
  }
  func.func @transform_1(%arg0: i32) -> (i32, i32) {
    %c0_i32 = arith.constant 0 : i32
    %c0_i32_0 = arith.constant 0 : i32
    return %c0_i32, %arg0 : i32, i32
  }
  func.func @transform_2(%arg0: i32) -> (i32, i32) {
    %c0_i32 = arith.constant 0 : i32
    %c0_i32_0 = arith.constant 0 : i32
    %c0_i32_1 = arith.constant 0 : i32
    return %c0_i32, %c0_i32_0 : i32, i32
  }
  func.func @transform_3(%arg0: i32) -> (i32, i32) {
    %c0_i32 = arith.constant 0 : i32
    %c0_i32_0 = arith.constant 0 : i32
    return %c0_i32, %arg0 : i32, i32
  }
}

module attributes {stable_mosaic.version = 11 : i64} {
  func.func @_mmT_kernel(%arg0: i32, %arg1: memref<8x32xf32, #tpu.memory_space<vmem>>, %arg2: memref<32x128xf32, #tpu.memory_space<vmem>>, %arg3: memref<8x2xf32, #tpu.memory_space<vmem>>, %arg4: memref<8x128xf32, #tpu.memory_space<vmem>>) attributes {dimension_semantics = [#tpu.dimension_semantics<parallel>], iteration_bounds = array<i64: 1>, scalar_prefetch = 0 : i64, scratch_operands = 0 : i64, tpu.core_type = #tpu.core_type<tc>, window_params = [{pipeline_mode = #tpu.pipeline_mode<synchronous>, transform_indices = @transform_0, window_bounds = array<i64: 8, 32>}, {transform_indices = @transform_1, window_bounds = array<i64: 32, 128>}, {pipeline_mode = #tpu.pipeline_mode<synchronous>, transform_indices = @transform_2, window_bounds = array<i64: 8, 2>}, {transform_indices = @transform_3, window_bounds = array<i64: 8, 128>}]} {
    %c0 = arith.constant 0 : index
    %c0_0 = arith.constant 0 : index
    %0 = vector.load %arg1[%c0, %c0_0] : memref<8x32xf32, #tpu.memory_space<vmem>>, vector<8x32xf32>
    %c0_1 = arith.constant 0 : index
    %c0_2 = arith.constant 0 : index
    %1 = vector.load %arg2[%c0_1, %c0_2] : memref<32x128xf32, #tpu.memory_space<vmem>>, vector<32x128xf32>
    %cst = arith.constant dense<0.000000e+00> : vector<8x128xf32>
    %2 = tpu.matmul %0, %1, %cst {dimension_numbers = #tpu.dot_dimension_numbers<[1], [0], [0], [1], [0, 0, 1, 1], [], []>} : vector<8x32xf32>, vector<32x128xf32>, vector<8x128xf32> -> vector<8x128xf32>
    %c0_3 = arith.constant 0 : index
    %c0_4 = arith.constant 0 : index
    %3 = vector.load %arg3[%c0_3, %c0_4] : memref<8x2xf32, #tpu.memory_space<vmem>>, vector<8x1xf32>
    %4 = vector.broadcast %3 : vector<8x1xf32> to vector<8x128xf32>
    %5 = arith.addf %2, %4 : vector<8x128xf32>
    %c0_5 = arith.constant 0 : index
    %c0_6 = arith.constant 0 : index
    %6 = vector.load %arg4[%c0_5, %c0_6] : memref<8x128xf32, #tpu.memory_space<vmem>>, vector<8x128xf32>
    tpu.vector_store %arg4[%c0_5, %c0_6], %5 {strides = array<i32>} : memref<8x128xf32, #tpu.memory_space<vmem>>, vector<8x128xf32>,
    return
  }
  func.func @transform_0(%arg0: i32) -> (i32, i32) {
    %c0_i32 = arith.constant 0 : i32
    %c0_i32_0 = arith.constant 0 : i32
    %c0_i32_1 = arith.constant 0 : i32
    return %c0_i32, %c0_i32_0 : i32, i32
  }
  func.func @transform_1(%arg0: i32) -> (i32, i32) {
    %c0_i32 = arith.constant 0 : i32
    %c0_i32_0 = arith.constant 0 : i32
    return %c0_i32, %arg0 : i32, i32
  }
  func.func @transform_2(%arg0: i32) -> (i32, i32) {
    %c0_i32 = arith.constant 0 : i32
    %c0_i32_0 = arith.constant 0 : i32
    %c0_i32_1 = arith.constant 0 : i32
    return %c0_i32, %c0_i32_0 : i32, i32
  }
  func.func @transform_3(%arg0: i32) -> (i32, i32) {
    %c0_i32 = arith.constant 0 : i32
    %c0_i32_0 = arith.constant 0 : i32
    return %c0_i32, %arg0 : i32, i32
  }
}

module attributes {stable_mosaic.version = 11 : i64} {
  func.func @_haar_kernel(%arg0: i32, %arg1: memref<8x128xf32, #tpu.memory_space<vmem>>, %arg2: memref<8x128xf32, #tpu.memory_space<vmem>>, %arg3: memref<8x128xf32, #tpu.memory_space<vmem>>, %arg4: memref<8x128xf32, #tpu.memory_space<vmem>>, %arg5: memref<8x128xf32, #tpu.memory_space<vmem>>, %arg6: memref<8x128xf32, #tpu.memory_space<vmem>>, %arg7: memref<8x128xf32, #tpu.memory_space<vmem>>, %arg8: memref<8x128xf32, #tpu.memory_space<vmem>>) attributes {dimension_semantics = [#tpu.dimension_semantics<parallel>], iteration_bounds = array<i64: 1>, scalar_prefetch = 0 : i64, scratch_operands = 0 : i64, tpu.core_type = #tpu.core_type<tc>, window_params = [{transform_indices = @transform_0, window_bounds = array<i64: 8, 128>}, {transform_indices = @transform_1, window_bounds = array<i64: 8, 128>}, {transform_indices = @transform_2, window_bounds = array<i64: 8, 128>}, {transform_indices = @transform_3, window_bounds = array<i64: 8, 128>}, {transform_indices = @transform_4, window_bounds = array<i64: 8, 128>}, {transform_indices = @transform_5, window_bounds = array<i64: 8, 128>}, {transform_indices = @transform_6, window_bounds = array<i64: 8, 128>}, {transform_indices = @transform_7, window_bounds = array<i64: 8, 128>}]} {
    %c0 = arith.constant 0 : index
    %c0_0 = arith.constant 0 : index
    %0 = vector.load %arg1[%c0, %c0_0] : memref<8x128xf32, #tpu.memory_space<vmem>>, vector<8x128xf32>
    %c0_1 = arith.constant 0 : index
    %c0_2 = arith.constant 0 : index
    %1 = vector.load %arg2[%c0_1, %c0_2] : memref<8x128xf32, #tpu.memory_space<vmem>>, vector<8x128xf32>
    %c0_3 = arith.constant 0 : index
    %c0_4 = arith.constant 0 : index
    %2 = vector.load %arg3[%c0_3, %c0_4] : memref<8x128xf32, #tpu.memory_space<vmem>>, vector<8x128xf32>
    %c0_5 = arith.constant 0 : index
    %c0_6 = arith.constant 0 : index
    %3 = vector.load %arg4[%c0_5, %c0_6] : memref<8x128xf32, #tpu.memory_space<vmem>>, vector<8x128xf32>
    %4 = arith.addf %0, %1 : vector<8x128xf32>
    %5 = arith.addf %4, %2 : vector<8x128xf32>
    %6 = arith.addf %5, %3 : vector<8x128xf32>
    %cst = arith.constant 2.500000e-01 : f32
    %7 = vector.broadcast %cst : f32 to vector<8x128xf32>
    %8 = arith.mulf %6, %7 : vector<8x128xf32>
    %c0_7 = arith.constant 0 : index
    %c0_8 = arith.constant 0 : index
    %9 = vector.load %arg5[%c0_7, %c0_8] : memref<8x128xf32, #tpu.memory_space<vmem>>, vector<8x128xf32>
    tpu.vector_store %arg5[%c0_7, %c0_8], %8 {strides = array<i32>} : memref<8x128xf32, #tpu.memory_space<vmem>>, vector<8x128xf32>,
    %10 = arith.subf %0, %1 : vector<8x128xf32>
    %11 = arith.addf %10, %2 : vector<8x128xf32>
    %12 = arith.subf %11, %3 : vector<8x128xf32>
    %cst_9 = arith.constant 2.500000e-01 : f32
    %13 = vector.broadcast %cst_9 : f32 to vector<8x128xf32>
    %14 = arith.mulf %12, %13 : vector<8x128xf32>
    %c0_10 = arith.constant 0 : index
    %c0_11 = arith.constant 0 : index
    %15 = vector.load %arg6[%c0_10, %c0_11] : memref<8x128xf32, #tpu.memory_space<vmem>>, vector<8x128xf32>
    tpu.vector_store %arg6[%c0_10, %c0_11], %14 {strides = array<i32>} : memref<8x128xf32, #tpu.memory_space<vmem>>, vector<8x128xf32>,
    %16 = arith.addf %0, %1 : vector<8x128xf32>
    %17 = arith.subf %16, %2 : vector<8x128xf32>
    %18 = arith.subf %17, %3 : vector<8x128xf32>
    %cst_12 = arith.constant 2.500000e-01 : f32
    %19 = vector.broadcast %cst_12 : f32 to vector<8x128xf32>
    %20 = arith.mulf %18, %19 : vector<8x128xf32>
    %c0_13 = arith.constant 0 : index
    %c0_14 = arith.constant 0 : index
    %21 = vector.load %arg7[%c0_13, %c0_14] : memref<8x128xf32, #tpu.memory_space<vmem>>, vector<8x128xf32>
    tpu.vector_store %arg7[%c0_13, %c0_14], %20 {strides = array<i32>} : memref<8x128xf32, #tpu.memory_space<vmem>>, vector<8x128xf32>,
    %22 = arith.subf %0, %1 : vector<8x128xf32>
    %23 = arith.subf %22, %2 : vector<8x128xf32>
    %24 = arith.addf %23, %3 : vector<8x128xf32>
    %cst_15 = arith.constant 2.500000e-01 : f32
    %25 = vector.broadcast %cst_15 : f32 to vector<8x128xf32>
    %26 = arith.mulf %24, %25 : vector<8x128xf32>
    %c0_16 = arith.constant 0 : index
    %c0_17 = arith.constant 0 : index
    %27 = vector.load %arg8[%c0_16, %c0_17] : memref<8x128xf32, #tpu.memory_space<vmem>>, vector<8x128xf32>
    tpu.vector_store %arg8[%c0_16, %c0_17], %26 {strides = array<i32>} : memref<8x128xf32, #tpu.memory_space<vmem>>, vector<8x128xf32>,
    return
  }
  func.func @transform_0(%arg0: i32) -> (i32, i32) {
    %c0_i32 = arith.constant 0 : i32
    %c0_i32_0 = arith.constant 0 : i32
    return %arg0, %c0_i32 : i32, i32
  }
  func.func @transform_1(%arg0: i32) -> (i32, i32) {
    %c0_i32 = arith.constant 0 : i32
    %c0_i32_0 = arith.constant 0 : i32
    return %arg0, %c0_i32 : i32, i32
  }
  func.func @transform_2(%arg0: i32) -> (i32, i32) {
    %c0_i32 = arith.constant 0 : i32
    %c0_i32_0 = arith.constant 0 : i32
    return %arg0, %c0_i32 : i32, i32
  }
  func.func @transform_3(%arg0: i32) -> (i32, i32) {
    %c0_i32 = arith.constant 0 : i32
    %c0_i32_0 = arith.constant 0 : i32
    return %arg0, %c0_i32 : i32, i32
  }
  func.func @transform_4(%arg0: i32) -> (i32, i32) {
    %c0_i32 = arith.constant 0 : i32
    %c0_i32_0 = arith.constant 0 : i32
    return %arg0, %c0_i32 : i32, i32
  }
  func.func @transform_5(%arg0: i32) -> (i32, i32) {
    %c0_i32 = arith.constant 0 : i32
    %c0_i32_0 = arith.constant 0 : i32
    return %arg0, %c0_i32 : i32, i32
  }
  func.func @transform_6(%arg0: i32) -> (i32, i32) {
    %c0_i32 = arith.constant 0 : i32
    %c0_i32_0 = arith.constant 0 : i32
    return %arg0, %c0_i32 : i32, i32
  }
  func.func @transform_7(%arg0: i32) -> (i32, i32) {
    %c0_i32 = arith.constant 0 : i32
    %c0_i32_0 = arith.constant 0 : i32
    return %arg0, %c0_i32 : i32, i32
  }
}

module attributes {stable_mosaic.version = 11 : i64} {
  func.func @_mmT_kernel(%arg0: i32, %arg1: memref<8x8xf32, #tpu.memory_space<vmem>>, %arg2: memref<8x128xf32, #tpu.memory_space<vmem>>, %arg3: memref<8x2xf32, #tpu.memory_space<vmem>>, %arg4: memref<8x128xf32, #tpu.memory_space<vmem>>) attributes {dimension_semantics = [#tpu.dimension_semantics<parallel>], iteration_bounds = array<i64: 1>, scalar_prefetch = 0 : i64, scratch_operands = 0 : i64, tpu.core_type = #tpu.core_type<tc>, window_params = [{pipeline_mode = #tpu.pipeline_mode<synchronous>, transform_indices = @transform_0, window_bounds = array<i64: 8, 8>}, {transform_indices = @transform_1, window_bounds = array<i64: 8, 128>}, {pipeline_mode = #tpu.pipeline_mode<synchronous>, transform_indices = @transform_2, window_bounds = array<i64: 8, 2>}, {transform_indices = @transform_3, window_bounds = array<i64: 8, 128>}]} {
    %c0 = arith.constant 0 : index
    %c0_0 = arith.constant 0 : index
    %0 = vector.load %arg1[%c0, %c0_0] : memref<8x8xf32, #tpu.memory_space<vmem>>, vector<8x8xf32>
    %c0_1 = arith.constant 0 : index
    %c0_2 = arith.constant 0 : index
    %1 = vector.load %arg2[%c0_1, %c0_2] : memref<8x128xf32, #tpu.memory_space<vmem>>, vector<8x128xf32>
    %cst = arith.constant dense<0.000000e+00> : vector<8x128xf32>
    %2 = tpu.matmul %0, %1, %cst {dimension_numbers = #tpu.dot_dimension_numbers<[1], [0], [0], [1], [0, 0, 1, 1], [], []>} : vector<8x8xf32>, vector<8x128xf32>, vector<8x128xf32> -> vector<8x128xf32>
    %c0_3 = arith.constant 0 : index
    %c0_4 = arith.constant 0 : index
    %3 = vector.load %arg3[%c0_3, %c0_4] : memref<8x2xf32, #tpu.memory_space<vmem>>, vector<8x1xf32>
    %4 = vector.broadcast %3 : vector<8x1xf32> to vector<8x128xf32>
    %5 = arith.addf %2, %4 : vector<8x128xf32>
    %c0_5 = arith.constant 0 : index
    %c0_6 = arith.constant 0 : index
    %6 = vector.load %arg4[%c0_5, %c0_6] : memref<8x128xf32, #tpu.memory_space<vmem>>, vector<8x128xf32>
    tpu.vector_store %arg4[%c0_5, %c0_6], %5 {strides = array<i32>} : memref<8x128xf32, #tpu.memory_space<vmem>>, vector<8x128xf32>,
    return
  }
  func.func @transform_0(%arg0: i32) -> (i32, i32) {
    %c0_i32 = arith.constant 0 : i32
    %c0_i32_0 = arith.constant 0 : i32
    %c0_i32_1 = arith.constant 0 : i32
    return %c0_i32, %c0_i32_0 : i32, i32
  }
  func.func @transform_1(%arg0: i32) -> (i32, i32) {
    %c0_i32 = arith.constant 0 : i32
    %c0_i32_0 = arith.constant 0 : i32
    return %c0_i32, %arg0 : i32, i32
  }
  func.func @transform_2(%arg0: i32) -> (i32, i32) {
    %c0_i32 = arith.constant 0 : i32
    %c0_i32_0 = arith.constant 0 : i32
    %c0_i32_1 = arith.constant 0 : i32
    return %c0_i32, %c0_i32_0 : i32, i32
  }
  func.func @transform_3(%arg0: i32) -> (i32, i32) {
    %c0_i32 = arith.constant 0 : i32
    %c0_i32_0 = arith.constant 0 : i32
    return %c0_i32, %arg0 : i32, i32
  }
}

module attributes {stable_mosaic.version = 11 : i64} {
  func.func @_mmT_kernel(%arg0: i32, %arg1: memref<8x16xf32, #tpu.memory_space<vmem>>, %arg2: memref<16x128xf32, #tpu.memory_space<vmem>>, %arg3: memref<8x2xf32, #tpu.memory_space<vmem>>, %arg4: memref<8x128xf32, #tpu.memory_space<vmem>>) attributes {dimension_semantics = [#tpu.dimension_semantics<parallel>], iteration_bounds = array<i64: 1>, scalar_prefetch = 0 : i64, scratch_operands = 0 : i64, tpu.core_type = #tpu.core_type<tc>, window_params = [{pipeline_mode = #tpu.pipeline_mode<synchronous>, transform_indices = @transform_0, window_bounds = array<i64: 8, 16>}, {transform_indices = @transform_1, window_bounds = array<i64: 16, 128>}, {pipeline_mode = #tpu.pipeline_mode<synchronous>, transform_indices = @transform_2, window_bounds = array<i64: 8, 2>}, {transform_indices = @transform_3, window_bounds = array<i64: 8, 128>}]} {
    %c0 = arith.constant 0 : index
    %c0_0 = arith.constant 0 : index
    %0 = vector.load %arg1[%c0, %c0_0] : memref<8x16xf32, #tpu.memory_space<vmem>>, vector<8x16xf32>
    %c0_1 = arith.constant 0 : index
    %c0_2 = arith.constant 0 : index
    %1 = vector.load %arg2[%c0_1, %c0_2] : memref<16x128xf32, #tpu.memory_space<vmem>>, vector<16x128xf32>
    %cst = arith.constant dense<0.000000e+00> : vector<8x128xf32>
    %2 = tpu.matmul %0, %1, %cst {dimension_numbers = #tpu.dot_dimension_numbers<[1], [0], [0], [1], [0, 0, 1, 1], [], []>} : vector<8x16xf32>, vector<16x128xf32>, vector<8x128xf32> -> vector<8x128xf32>
    %c0_3 = arith.constant 0 : index
    %c0_4 = arith.constant 0 : index
    %3 = vector.load %arg3[%c0_3, %c0_4] : memref<8x2xf32, #tpu.memory_space<vmem>>, vector<8x1xf32>
    %4 = vector.broadcast %3 : vector<8x1xf32> to vector<8x128xf32>
    %5 = arith.addf %2, %4 : vector<8x128xf32>
    %c0_5 = arith.constant 0 : index
    %c0_6 = arith.constant 0 : index
    %6 = vector.load %arg4[%c0_5, %c0_6] : memref<8x128xf32, #tpu.memory_space<vmem>>, vector<8x128xf32>
    tpu.vector_store %arg4[%c0_5, %c0_6], %5 {strides = array<i32>} : memref<8x128xf32, #tpu.memory_space<vmem>>, vector<8x128xf32>,
    return
  }
  func.func @transform_0(%arg0: i32) -> (i32, i32) {
    %c0_i32 = arith.constant 0 : i32
    %c0_i32_0 = arith.constant 0 : i32
    %c0_i32_1 = arith.constant 0 : i32
    return %c0_i32, %c0_i32_0 : i32, i32
  }
  func.func @transform_1(%arg0: i32) -> (i32, i32) {
    %c0_i32 = arith.constant 0 : i32
    %c0_i32_0 = arith.constant 0 : i32
    return %c0_i32, %arg0 : i32, i32
  }
  func.func @transform_2(%arg0: i32) -> (i32, i32) {
    %c0_i32 = arith.constant 0 : i32
    %c0_i32_0 = arith.constant 0 : i32
    %c0_i32_1 = arith.constant 0 : i32
    return %c0_i32, %c0_i32_0 : i32, i32
  }
  func.func @transform_3(%arg0: i32) -> (i32, i32) {
    %c0_i32 = arith.constant 0 : i32
    %c0_i32_0 = arith.constant 0 : i32
    return %c0_i32, %arg0 : i32, i32
  }
}

module attributes {stable_mosaic.version = 11 : i64} {
  func.func @_mmT_kernel(%arg0: i32, %arg1: memref<64x456xf32, #tpu.memory_space<vmem>>, %arg2: memref<456x128xf32, #tpu.memory_space<vmem>>, %arg3: memref<64x2xf32, #tpu.memory_space<vmem>>, %arg4: memref<64x128xf32, #tpu.memory_space<vmem>>) attributes {dimension_semantics = [#tpu.dimension_semantics<parallel>], iteration_bounds = array<i64: 1>, scalar_prefetch = 0 : i64, scratch_operands = 0 : i64, tpu.core_type = #tpu.core_type<tc>, window_params = [{pipeline_mode = #tpu.pipeline_mode<synchronous>, transform_indices = @transform_0, window_bounds = array<i64: 64, 456>}, {transform_indices = @transform_1, window_bounds = array<i64: 456, 128>}, {pipeline_mode = #tpu.pipeline_mode<synchronous>, transform_indices = @transform_2, window_bounds = array<i64: 64, 2>}, {transform_indices = @transform_3, window_bounds = array<i64: 64, 128>}]} {
    %c0 = arith.constant 0 : index
    %c0_0 = arith.constant 0 : index
    %0 = vector.load %arg1[%c0, %c0_0] : memref<64x456xf32, #tpu.memory_space<vmem>>, vector<64x456xf32>
    %c0_1 = arith.constant 0 : index
    %c0_2 = arith.constant 0 : index
    %1 = vector.load %arg2[%c0_1, %c0_2] : memref<456x128xf32, #tpu.memory_space<vmem>>, vector<456x128xf32>
    %cst = arith.constant dense<0.000000e+00> : vector<64x128xf32>
    %2 = tpu.matmul %0, %1, %cst {dimension_numbers = #tpu.dot_dimension_numbers<[1], [0], [0], [1], [0, 0, 1, 1], [], []>} : vector<64x456xf32>, vector<456x128xf32>, vector<64x128xf32> -> vector<64x128xf32>
    %c0_3 = arith.constant 0 : index
    %c0_4 = arith.constant 0 : index
    %3 = vector.load %arg3[%c0_3, %c0_4] : memref<64x2xf32, #tpu.memory_space<vmem>>, vector<64x1xf32>
    %4 = vector.broadcast %3 : vector<64x1xf32> to vector<64x128xf32>
    %5 = arith.addf %2, %4 : vector<64x128xf32>
    %cst_5 = arith.constant 0.000000e+00 : f32
    %6 = vector.broadcast %cst_5 : f32 to vector<64x128xf32>
    %7 = arith.cmpf oge, %5, %6 : vector<64x128xf32>
    %c0_6 = arith.constant 0 : index
    %c1 = arith.constant 1 : index
    %8 = vector.load %arg3[%c0_6, %c1] : memref<64x2xf32, #tpu.memory_space<vmem>>, vector<64x1xf32>
    %9 = vector.broadcast %8 : vector<64x1xf32> to vector<64x128xf32>
    %10 = arith.mulf %9, %5 : vector<64x128xf32>
    %11 = arith.select %7, %5, %10 : vector<64x128xi1>, vector<64x128xf32>
    %c0_7 = arith.constant 0 : index
    %c0_8 = arith.constant 0 : index
    %12 = vector.load %arg4[%c0_7, %c0_8] : memref<64x128xf32, #tpu.memory_space<vmem>>, vector<64x128xf32>
    tpu.vector_store %arg4[%c0_7, %c0_8], %11 {strides = array<i32>} : memref<64x128xf32, #tpu.memory_space<vmem>>, vector<64x128xf32>,
    return
  }
  func.func @transform_0(%arg0: i32) -> (i32, i32) {
    %c0_i32 = arith.constant 0 : i32
    %c0_i32_0 = arith.constant 0 : i32
    %c0_i32_1 = arith.constant 0 : i32
    return %c0_i32, %c0_i32_0 : i32, i32
  }
  func.func @transform_1(%arg0: i32) -> (i32, i32) {
    %c0_i32 = arith.constant 0 : i32
    %c0_i32_0 = arith.constant 0 : i32
    return %c0_i32, %arg0 : i32, i32
  }
  func.func @transform_2(%arg0: i32) -> (i32, i32) {
    %c0_i32 = arith.constant 0 : i32
    %c0_i32_0 = arith.constant 0 : i32
    %c0_i32_1 = arith.constant 0 : i32
    return %c0_i32, %c0_i32_0 : i32, i32
  }
  func.func @transform_3(%arg0: i32) -> (i32, i32) {
    %c0_i32 = arith.constant 0 : i32
    %c0_i32_0 = arith.constant 0 : i32
    return %c0_i32, %arg0 : i32, i32
  }
}

module attributes {stable_mosaic.version = 11 : i64} {
  func.func @_mmT_kernel(%arg0: i32, %arg1: memref<16x64xf32, #tpu.memory_space<vmem>>, %arg2: memref<64x128xf32, #tpu.memory_space<vmem>>, %arg3: memref<16x2xf32, #tpu.memory_space<vmem>>, %arg4: memref<16x128xf32, #tpu.memory_space<vmem>>) attributes {dimension_semantics = [#tpu.dimension_semantics<parallel>], iteration_bounds = array<i64: 1>, scalar_prefetch = 0 : i64, scratch_operands = 0 : i64, tpu.core_type = #tpu.core_type<tc>, window_params = [{pipeline_mode = #tpu.pipeline_mode<synchronous>, transform_indices = @transform_0, window_bounds = array<i64: 16, 64>}, {transform_indices = @transform_1, window_bounds = array<i64: 64, 128>}, {pipeline_mode = #tpu.pipeline_mode<synchronous>, transform_indices = @transform_2, window_bounds = array<i64: 16, 2>}, {transform_indices = @transform_3, window_bounds = array<i64: 16, 128>}]} {
    %c0 = arith.constant 0 : index
    %c0_0 = arith.constant 0 : index
    %0 = vector.load %arg1[%c0, %c0_0] : memref<16x64xf32, #tpu.memory_space<vmem>>, vector<16x64xf32>
    %c0_1 = arith.constant 0 : index
    %c0_2 = arith.constant 0 : index
    %1 = vector.load %arg2[%c0_1, %c0_2] : memref<64x128xf32, #tpu.memory_space<vmem>>, vector<64x128xf32>
    %cst = arith.constant dense<0.000000e+00> : vector<16x128xf32>
    %2 = tpu.matmul %0, %1, %cst {dimension_numbers = #tpu.dot_dimension_numbers<[1], [0], [0], [1], [0, 0, 1, 1], [], []>} : vector<16x64xf32>, vector<64x128xf32>, vector<16x128xf32> -> vector<16x128xf32>
    %c0_3 = arith.constant 0 : index
    %c0_4 = arith.constant 0 : index
    %3 = vector.load %arg3[%c0_3, %c0_4] : memref<16x2xf32, #tpu.memory_space<vmem>>, vector<16x1xf32>
    %4 = vector.broadcast %3 : vector<16x1xf32> to vector<16x128xf32>
    %5 = arith.addf %2, %4 : vector<16x128xf32>
    %cst_5 = arith.constant 0.000000e+00 : f32
    %6 = vector.broadcast %cst_5 : f32 to vector<16x128xf32>
    %7 = arith.cmpf oge, %5, %6 : vector<16x128xf32>
    %c0_6 = arith.constant 0 : index
    %c1 = arith.constant 1 : index
    %8 = vector.load %arg3[%c0_6, %c1] : memref<16x2xf32, #tpu.memory_space<vmem>>, vector<16x1xf32>
    %9 = vector.broadcast %8 : vector<16x1xf32> to vector<16x128xf32>
    %10 = arith.mulf %9, %5 : vector<16x128xf32>
    %11 = arith.select %7, %5, %10 : vector<16x128xi1>, vector<16x128xf32>
    %c0_7 = arith.constant 0 : index
    %c0_8 = arith.constant 0 : index
    %12 = vector.load %arg4[%c0_7, %c0_8] : memref<16x128xf32, #tpu.memory_space<vmem>>, vector<16x128xf32>
    tpu.vector_store %arg4[%c0_7, %c0_8], %11 {strides = array<i32>} : memref<16x128xf32, #tpu.memory_space<vmem>>, vector<16x128xf32>,
    return
  }
  func.func @transform_0(%arg0: i32) -> (i32, i32) {
    %c0_i32 = arith.constant 0 : i32
    %c0_i32_0 = arith.constant 0 : i32
    %c0_i32_1 = arith.constant 0 : i32
    return %c0_i32, %c0_i32_0 : i32, i32
  }
  func.func @transform_1(%arg0: i32) -> (i32, i32) {
    %c0_i32 = arith.constant 0 : i32
    %c0_i32_0 = arith.constant 0 : i32
    return %c0_i32, %arg0 : i32, i32
  }
  func.func @transform_2(%arg0: i32) -> (i32, i32) {
    %c0_i32 = arith.constant 0 : i32
    %c0_i32_0 = arith.constant 0 : i32
    %c0_i32_1 = arith.constant 0 : i32
    return %c0_i32, %c0_i32_0 : i32, i32
  }
  func.func @transform_3(%arg0: i32) -> (i32, i32) {
    %c0_i32 = arith.constant 0 : i32
    %c0_i32_0 = arith.constant 0 : i32
    return %c0_i32, %arg0 : i32, i32
  }
}

module attributes {stable_mosaic.version = 11 : i64} {
  func.func @_mmT_kernel(%arg0: i32, %arg1: memref<16x112xf32, #tpu.memory_space<vmem>>, %arg2: memref<112x128xf32, #tpu.memory_space<vmem>>, %arg3: memref<16x2xf32, #tpu.memory_space<vmem>>, %arg4: memref<16x128xf32, #tpu.memory_space<vmem>>) attributes {dimension_semantics = [#tpu.dimension_semantics<parallel>], iteration_bounds = array<i64: 1>, scalar_prefetch = 0 : i64, scratch_operands = 0 : i64, tpu.core_type = #tpu.core_type<tc>, window_params = [{pipeline_mode = #tpu.pipeline_mode<synchronous>, transform_indices = @transform_0, window_bounds = array<i64: 16, 112>}, {transform_indices = @transform_1, window_bounds = array<i64: 112, 128>}, {pipeline_mode = #tpu.pipeline_mode<synchronous>, transform_indices = @transform_2, window_bounds = array<i64: 16, 2>}, {transform_indices = @transform_3, window_bounds = array<i64: 16, 128>}]} {
    %c0 = arith.constant 0 : index
    %c0_0 = arith.constant 0 : index
    %0 = vector.load %arg1[%c0, %c0_0] : memref<16x112xf32, #tpu.memory_space<vmem>>, vector<16x112xf32>
    %c0_1 = arith.constant 0 : index
    %c0_2 = arith.constant 0 : index
    %1 = vector.load %arg2[%c0_1, %c0_2] : memref<112x128xf32, #tpu.memory_space<vmem>>, vector<112x128xf32>
    %cst = arith.constant dense<0.000000e+00> : vector<16x128xf32>
    %2 = tpu.matmul %0, %1, %cst {dimension_numbers = #tpu.dot_dimension_numbers<[1], [0], [0], [1], [0, 0, 1, 1], [], []>} : vector<16x112xf32>, vector<112x128xf32>, vector<16x128xf32> -> vector<16x128xf32>
    %c0_3 = arith.constant 0 : index
    %c0_4 = arith.constant 0 : index
    %3 = vector.load %arg3[%c0_3, %c0_4] : memref<16x2xf32, #tpu.memory_space<vmem>>, vector<16x1xf32>
    %4 = vector.broadcast %3 : vector<16x1xf32> to vector<16x128xf32>
    %5 = arith.addf %2, %4 : vector<16x128xf32>
    %cst_5 = arith.constant 0.000000e+00 : f32
    %6 = vector.broadcast %cst_5 : f32 to vector<16x128xf32>
    %7 = arith.cmpf oge, %5, %6 : vector<16x128xf32>
    %c0_6 = arith.constant 0 : index
    %c1 = arith.constant 1 : index
    %8 = vector.load %arg3[%c0_6, %c1] : memref<16x2xf32, #tpu.memory_space<vmem>>, vector<16x1xf32>
    %9 = vector.broadcast %8 : vector<16x1xf32> to vector<16x128xf32>
    %10 = arith.mulf %9, %5 : vector<16x128xf32>
    %11 = arith.select %7, %5, %10 : vector<16x128xi1>, vector<16x128xf32>
    %c0_7 = arith.constant 0 : index
    %c0_8 = arith.constant 0 : index
    %12 = vector.load %arg4[%c0_7, %c0_8] : memref<16x128xf32, #tpu.memory_space<vmem>>, vector<16x128xf32>
    tpu.vector_store %arg4[%c0_7, %c0_8], %11 {strides = array<i32>} : memref<16x128xf32, #tpu.memory_space<vmem>>, vector<16x128xf32>,
    return
  }
  func.func @transform_0(%arg0: i32) -> (i32, i32) {
    %c0_i32 = arith.constant 0 : i32
    %c0_i32_0 = arith.constant 0 : i32
    %c0_i32_1 = arith.constant 0 : i32
    return %c0_i32, %c0_i32_0 : i32, i32
  }
  func.func @transform_1(%arg0: i32) -> (i32, i32) {
    %c0_i32 = arith.constant 0 : i32
    %c0_i32_0 = arith.constant 0 : i32
    return %c0_i32, %arg0 : i32, i32
  }
  func.func @transform_2(%arg0: i32) -> (i32, i32) {
    %c0_i32 = arith.constant 0 : i32
    %c0_i32_0 = arith.constant 0 : i32
    %c0_i32_1 = arith.constant 0 : i32
    return %c0_i32, %c0_i32_0 : i32, i32
  }
  func.func @transform_3(%arg0: i32) -> (i32, i32) {
    %c0_i32 = arith.constant 0 : i32
    %c0_i32_0 = arith.constant 0 : i32
    return %c0_i32, %arg0 : i32, i32
  }
}

module attributes {stable_mosaic.version = 11 : i64} {
  func.func @_mmT_kernel(%arg0: i32, %arg1: memref<64x16xf32, #tpu.memory_space<vmem>>, %arg2: memref<16x128xf32, #tpu.memory_space<vmem>>, %arg3: memref<64x2xf32, #tpu.memory_space<vmem>>, %arg4: memref<64x128xf32, #tpu.memory_space<vmem>>) attributes {dimension_semantics = [#tpu.dimension_semantics<parallel>], iteration_bounds = array<i64: 1>, scalar_prefetch = 0 : i64, scratch_operands = 0 : i64, tpu.core_type = #tpu.core_type<tc>, window_params = [{pipeline_mode = #tpu.pipeline_mode<synchronous>, transform_indices = @transform_0, window_bounds = array<i64: 64, 16>}, {transform_indices = @transform_1, window_bounds = array<i64: 16, 128>}, {pipeline_mode = #tpu.pipeline_mode<synchronous>, transform_indices = @transform_2, window_bounds = array<i64: 64, 2>}, {transform_indices = @transform_3, window_bounds = array<i64: 64, 128>}]} {
    %c0 = arith.constant 0 : index
    %c0_0 = arith.constant 0 : index
    %0 = vector.load %arg1[%c0, %c0_0] : memref<64x16xf32, #tpu.memory_space<vmem>>, vector<64x16xf32>
    %c0_1 = arith.constant 0 : index
    %c0_2 = arith.constant 0 : index
    %1 = vector.load %arg2[%c0_1, %c0_2] : memref<16x128xf32, #tpu.memory_space<vmem>>, vector<16x128xf32>
    %cst = arith.constant dense<0.000000e+00> : vector<64x128xf32>
    %2 = tpu.matmul %0, %1, %cst {dimension_numbers = #tpu.dot_dimension_numbers<[1], [0], [0], [1], [0, 0, 1, 1], [], []>} : vector<64x16xf32>, vector<16x128xf32>, vector<64x128xf32> -> vector<64x128xf32>
    %c0_3 = arith.constant 0 : index
    %c0_4 = arith.constant 0 : index
    %3 = vector.load %arg3[%c0_3, %c0_4] : memref<64x2xf32, #tpu.memory_space<vmem>>, vector<64x1xf32>
    %4 = vector.broadcast %3 : vector<64x1xf32> to vector<64x128xf32>
    %5 = arith.addf %2, %4 : vector<64x128xf32>
    %cst_5 = arith.constant 0.000000e+00 : f32
    %6 = vector.broadcast %cst_5 : f32 to vector<64x128xf32>
    %7 = arith.cmpf oge, %5, %6 : vector<64x128xf32>
    %c0_6 = arith.constant 0 : index
    %c1 = arith.constant 1 : index
    %8 = vector.load %arg3[%c0_6, %c1] : memref<64x2xf32, #tpu.memory_space<vmem>>, vector<64x1xf32>
    %9 = vector.broadcast %8 : vector<64x1xf32> to vector<64x128xf32>
    %10 = arith.mulf %9, %5 : vector<64x128xf32>
    %11 = arith.select %7, %5, %10 : vector<64x128xi1>, vector<64x128xf32>
    %c0_7 = arith.constant 0 : index
    %c0_8 = arith.constant 0 : index
    %12 = vector.load %arg4[%c0_7, %c0_8] : memref<64x128xf32, #tpu.memory_space<vmem>>, vector<64x128xf32>
    tpu.vector_store %arg4[%c0_7, %c0_8], %11 {strides = array<i32>} : memref<64x128xf32, #tpu.memory_space<vmem>>, vector<64x128xf32>,
    return
  }
  func.func @transform_0(%arg0: i32) -> (i32, i32) {
    %c0_i32 = arith.constant 0 : i32
    %c0_i32_0 = arith.constant 0 : i32
    %c0_i32_1 = arith.constant 0 : i32
    return %c0_i32, %c0_i32_0 : i32, i32
  }
  func.func @transform_1(%arg0: i32) -> (i32, i32) {
    %c0_i32 = arith.constant 0 : i32
    %c0_i32_0 = arith.constant 0 : i32
    return %c0_i32, %arg0 : i32, i32
  }
  func.func @transform_2(%arg0: i32) -> (i32, i32) {
    %c0_i32 = arith.constant 0 : i32
    %c0_i32_0 = arith.constant 0 : i32
    %c0_i32_1 = arith.constant 0 : i32
    return %c0_i32, %c0_i32_0 : i32, i32
  }
  func.func @transform_3(%arg0: i32) -> (i32, i32) {
    %c0_i32 = arith.constant 0 : i32
    %c0_i32_0 = arith.constant 0 : i32
    return %c0_i32, %arg0 : i32, i32
  }
}

module attributes {stable_mosaic.version = 11 : i64} {
  func.func @_mmT_kernel(%arg0: i32, %arg1: memref<16x456xf32, #tpu.memory_space<vmem>>, %arg2: memref<456x128xf32, #tpu.memory_space<vmem>>, %arg3: memref<16x2xf32, #tpu.memory_space<vmem>>, %arg4: memref<16x128xf32, #tpu.memory_space<vmem>>) attributes {dimension_semantics = [#tpu.dimension_semantics<parallel>], iteration_bounds = array<i64: 1>, scalar_prefetch = 0 : i64, scratch_operands = 0 : i64, tpu.core_type = #tpu.core_type<tc>, window_params = [{pipeline_mode = #tpu.pipeline_mode<synchronous>, transform_indices = @transform_0, window_bounds = array<i64: 16, 456>}, {transform_indices = @transform_1, window_bounds = array<i64: 456, 128>}, {pipeline_mode = #tpu.pipeline_mode<synchronous>, transform_indices = @transform_2, window_bounds = array<i64: 16, 2>}, {transform_indices = @transform_3, window_bounds = array<i64: 16, 128>}]} {
    %c0 = arith.constant 0 : index
    %c0_0 = arith.constant 0 : index
    %0 = vector.load %arg1[%c0, %c0_0] : memref<16x456xf32, #tpu.memory_space<vmem>>, vector<16x456xf32>
    %c0_1 = arith.constant 0 : index
    %c0_2 = arith.constant 0 : index
    %1 = vector.load %arg2[%c0_1, %c0_2] : memref<456x128xf32, #tpu.memory_space<vmem>>, vector<456x128xf32>
    %cst = arith.constant dense<0.000000e+00> : vector<16x128xf32>
    %2 = tpu.matmul %0, %1, %cst {dimension_numbers = #tpu.dot_dimension_numbers<[1], [0], [0], [1], [0, 0, 1, 1], [], []>} : vector<16x456xf32>, vector<456x128xf32>, vector<16x128xf32> -> vector<16x128xf32>
    %c0_3 = arith.constant 0 : index
    %c0_4 = arith.constant 0 : index
    %3 = vector.load %arg3[%c0_3, %c0_4] : memref<16x2xf32, #tpu.memory_space<vmem>>, vector<16x1xf32>
    %4 = vector.broadcast %3 : vector<16x1xf32> to vector<16x128xf32>
    %5 = arith.addf %2, %4 : vector<16x128xf32>
    %cst_5 = arith.constant 0.000000e+00 : f32
    %6 = vector.broadcast %cst_5 : f32 to vector<16x128xf32>
    %7 = arith.cmpf oge, %5, %6 : vector<16x128xf32>
    %c0_6 = arith.constant 0 : index
    %c1 = arith.constant 1 : index
    %8 = vector.load %arg3[%c0_6, %c1] : memref<16x2xf32, #tpu.memory_space<vmem>>, vector<16x1xf32>
    %9 = vector.broadcast %8 : vector<16x1xf32> to vector<16x128xf32>
    %10 = arith.mulf %9, %5 : vector<16x128xf32>
    %11 = arith.select %7, %5, %10 : vector<16x128xi1>, vector<16x128xf32>
    %c0_7 = arith.constant 0 : index
    %c0_8 = arith.constant 0 : index
    %12 = vector.load %arg4[%c0_7, %c0_8] : memref<16x128xf32, #tpu.memory_space<vmem>>, vector<16x128xf32>
    tpu.vector_store %arg4[%c0_7, %c0_8], %11 {strides = array<i32>} : memref<16x128xf32, #tpu.memory_space<vmem>>, vector<16x128xf32>,
    return
  }
  func.func @transform_0(%arg0: i32) -> (i32, i32) {
    %c0_i32 = arith.constant 0 : i32
    %c0_i32_0 = arith.constant 0 : i32
    %c0_i32_1 = arith.constant 0 : i32
    return %c0_i32, %c0_i32_0 : i32, i32
  }
  func.func @transform_1(%arg0: i32) -> (i32, i32) {
    %c0_i32 = arith.constant 0 : i32
    %c0_i32_0 = arith.constant 0 : i32
    return %c0_i32, %arg0 : i32, i32
  }
  func.func @transform_2(%arg0: i32) -> (i32, i32) {
    %c0_i32 = arith.constant 0 : i32
    %c0_i32_0 = arith.constant 0 : i32
    %c0_i32_1 = arith.constant 0 : i32
    return %c0_i32, %c0_i32_0 : i32, i32
  }
  func.func @transform_3(%arg0: i32) -> (i32, i32) {
    %c0_i32 = arith.constant 0 : i32
    %c0_i32_0 = arith.constant 0 : i32
    return %c0_i32, %arg0 : i32, i32
  }
}

module attributes {stable_mosaic.version = 11 : i64} {
  func.func @_mmT_kernel(%arg0: i32, %arg1: memref<16x16xf32, #tpu.memory_space<vmem>>, %arg2: memref<16x128xf32, #tpu.memory_space<vmem>>, %arg3: memref<16x2xf32, #tpu.memory_space<vmem>>, %arg4: memref<16x128xf32, #tpu.memory_space<vmem>>) attributes {dimension_semantics = [#tpu.dimension_semantics<parallel>], iteration_bounds = array<i64: 1>, scalar_prefetch = 0 : i64, scratch_operands = 0 : i64, tpu.core_type = #tpu.core_type<tc>, window_params = [{pipeline_mode = #tpu.pipeline_mode<synchronous>, transform_indices = @transform_0, window_bounds = array<i64: 16, 16>}, {transform_indices = @transform_1, window_bounds = array<i64: 16, 128>}, {pipeline_mode = #tpu.pipeline_mode<synchronous>, transform_indices = @transform_2, window_bounds = array<i64: 16, 2>}, {transform_indices = @transform_3, window_bounds = array<i64: 16, 128>}]} {
    %c0 = arith.constant 0 : index
    %c0_0 = arith.constant 0 : index
    %0 = vector.load %arg1[%c0, %c0_0] : memref<16x16xf32, #tpu.memory_space<vmem>>, vector<16x16xf32>
    %c0_1 = arith.constant 0 : index
    %c0_2 = arith.constant 0 : index
    %1 = vector.load %arg2[%c0_1, %c0_2] : memref<16x128xf32, #tpu.memory_space<vmem>>, vector<16x128xf32>
    %cst = arith.constant dense<0.000000e+00> : vector<16x128xf32>
    %2 = tpu.matmul %0, %1, %cst {dimension_numbers = #tpu.dot_dimension_numbers<[1], [0], [0], [1], [0, 0, 1, 1], [], []>} : vector<16x16xf32>, vector<16x128xf32>, vector<16x128xf32> -> vector<16x128xf32>
    %c0_3 = arith.constant 0 : index
    %c0_4 = arith.constant 0 : index
    %3 = vector.load %arg3[%c0_3, %c0_4] : memref<16x2xf32, #tpu.memory_space<vmem>>, vector<16x1xf32>
    %4 = vector.broadcast %3 : vector<16x1xf32> to vector<16x128xf32>
    %5 = arith.addf %2, %4 : vector<16x128xf32>
    %cst_5 = arith.constant 0.000000e+00 : f32
    %6 = vector.broadcast %cst_5 : f32 to vector<16x128xf32>
    %7 = arith.cmpf oge, %5, %6 : vector<16x128xf32>
    %c0_6 = arith.constant 0 : index
    %c1 = arith.constant 1 : index
    %8 = vector.load %arg3[%c0_6, %c1] : memref<16x2xf32, #tpu.memory_space<vmem>>, vector<16x1xf32>
    %9 = vector.broadcast %8 : vector<16x1xf32> to vector<16x128xf32>
    %10 = arith.mulf %9, %5 : vector<16x128xf32>
    %11 = arith.select %7, %5, %10 : vector<16x128xi1>, vector<16x128xf32>
    %c0_7 = arith.constant 0 : index
    %c0_8 = arith.constant 0 : index
    %12 = vector.load %arg4[%c0_7, %c0_8] : memref<16x128xf32, #tpu.memory_space<vmem>>, vector<16x128xf32>
    tpu.vector_store %arg4[%c0_7, %c0_8], %11 {strides = array<i32>} : memref<16x128xf32, #tpu.memory_space<vmem>>, vector<16x128xf32>,
    return
  }
  func.func @transform_0(%arg0: i32) -> (i32, i32) {
    %c0_i32 = arith.constant 0 : i32
    %c0_i32_0 = arith.constant 0 : i32
    %c0_i32_1 = arith.constant 0 : i32
    return %c0_i32, %c0_i32_0 : i32, i32
  }
  func.func @transform_1(%arg0: i32) -> (i32, i32) {
    %c0_i32 = arith.constant 0 : i32
    %c0_i32_0 = arith.constant 0 : i32
    return %c0_i32, %arg0 : i32, i32
  }
  func.func @transform_2(%arg0: i32) -> (i32, i32) {
    %c0_i32 = arith.constant 0 : i32
    %c0_i32_0 = arith.constant 0 : i32
    %c0_i32_1 = arith.constant 0 : i32
    return %c0_i32, %c0_i32_0 : i32, i32
  }
  func.func @transform_3(%arg0: i32) -> (i32, i32) {
    %c0_i32 = arith.constant 0 : i32
    %c0_i32_0 = arith.constant 0 : i32
    return %c0_i32, %arg0 : i32, i32
  }
}

module attributes {stable_mosaic.version = 11 : i64} {
  func.func @_mmT_kernel(%arg0: i32, %arg1: memref<48x144xf32, #tpu.memory_space<vmem>>, %arg2: memref<144x128xf32, #tpu.memory_space<vmem>>, %arg3: memref<48x2xf32, #tpu.memory_space<vmem>>, %arg4: memref<48x128xf32, #tpu.memory_space<vmem>>) attributes {dimension_semantics = [#tpu.dimension_semantics<parallel>], iteration_bounds = array<i64: 1>, scalar_prefetch = 0 : i64, scratch_operands = 0 : i64, tpu.core_type = #tpu.core_type<tc>, window_params = [{pipeline_mode = #tpu.pipeline_mode<synchronous>, transform_indices = @transform_0, window_bounds = array<i64: 48, 144>}, {transform_indices = @transform_1, window_bounds = array<i64: 144, 128>}, {pipeline_mode = #tpu.pipeline_mode<synchronous>, transform_indices = @transform_2, window_bounds = array<i64: 48, 2>}, {transform_indices = @transform_3, window_bounds = array<i64: 48, 128>}]} {
    %c0 = arith.constant 0 : index
    %c0_0 = arith.constant 0 : index
    %0 = vector.load %arg1[%c0, %c0_0] : memref<48x144xf32, #tpu.memory_space<vmem>>, vector<48x144xf32>
    %c0_1 = arith.constant 0 : index
    %c0_2 = arith.constant 0 : index
    %1 = vector.load %arg2[%c0_1, %c0_2] : memref<144x128xf32, #tpu.memory_space<vmem>>, vector<144x128xf32>
    %cst = arith.constant dense<0.000000e+00> : vector<48x128xf32>
    %2 = tpu.matmul %0, %1, %cst {dimension_numbers = #tpu.dot_dimension_numbers<[1], [0], [0], [1], [0, 0, 1, 1], [], []>} : vector<48x144xf32>, vector<144x128xf32>, vector<48x128xf32> -> vector<48x128xf32>
    %c0_3 = arith.constant 0 : index
    %c0_4 = arith.constant 0 : index
    %3 = vector.load %arg3[%c0_3, %c0_4] : memref<48x2xf32, #tpu.memory_space<vmem>>, vector<48x1xf32>
    %4 = vector.broadcast %3 : vector<48x1xf32> to vector<48x128xf32>
    %5 = arith.addf %2, %4 : vector<48x128xf32>
    %c0_5 = arith.constant 0 : index
    %c0_6 = arith.constant 0 : index
    %6 = vector.load %arg4[%c0_5, %c0_6] : memref<48x128xf32, #tpu.memory_space<vmem>>, vector<48x128xf32>
    tpu.vector_store %arg4[%c0_5, %c0_6], %5 {strides = array<i32>} : memref<48x128xf32, #tpu.memory_space<vmem>>, vector<48x128xf32>,
    return
  }
  func.func @transform_0(%arg0: i32) -> (i32, i32) {
    %c0_i32 = arith.constant 0 : i32
    %c0_i32_0 = arith.constant 0 : i32
    %c0_i32_1 = arith.constant 0 : i32
    return %c0_i32, %c0_i32_0 : i32, i32
  }
  func.func @transform_1(%arg0: i32) -> (i32, i32) {
    %c0_i32 = arith.constant 0 : i32
    %c0_i32_0 = arith.constant 0 : i32
    return %c0_i32, %arg0 : i32, i32
  }
  func.func @transform_2(%arg0: i32) -> (i32, i32) {
    %c0_i32 = arith.constant 0 : i32
    %c0_i32_0 = arith.constant 0 : i32
    %c0_i32_1 = arith.constant 0 : i32
    return %c0_i32, %c0_i32_0 : i32, i32
  }
  func.func @transform_3(%arg0: i32) -> (i32, i32) {
    %c0_i32 = arith.constant 0 : i32
    %c0_i32_0 = arith.constant 0 : i32
    return %c0_i32, %arg0 : i32, i32
  }
}

module attributes {stable_mosaic.version = 11 : i64} {
  func.func @_mmT_kernel(%arg0: i32, %arg1: memref<48x128xf32, #tpu.memory_space<vmem>>, %arg2: memref<128x128xf32, #tpu.memory_space<vmem>>, %arg3: memref<48x2xf32, #tpu.memory_space<vmem>>, %arg4: memref<48x128xf32, #tpu.memory_space<vmem>>) attributes {dimension_semantics = [#tpu.dimension_semantics<parallel>], iteration_bounds = array<i64: 1>, scalar_prefetch = 0 : i64, scratch_operands = 0 : i64, tpu.core_type = #tpu.core_type<tc>, window_params = [{pipeline_mode = #tpu.pipeline_mode<synchronous>, transform_indices = @transform_0, window_bounds = array<i64: 48, 128>}, {transform_indices = @transform_1, window_bounds = array<i64: 128, 128>}, {pipeline_mode = #tpu.pipeline_mode<synchronous>, transform_indices = @transform_2, window_bounds = array<i64: 48, 2>}, {transform_indices = @transform_3, window_bounds = array<i64: 48, 128>}]} {
    %c0 = arith.constant 0 : index
    %c0_0 = arith.constant 0 : index
    %0 = vector.load %arg1[%c0, %c0_0] : memref<48x128xf32, #tpu.memory_space<vmem>>, vector<48x128xf32>
    %c0_1 = arith.constant 0 : index
    %c0_2 = arith.constant 0 : index
    %1 = vector.load %arg2[%c0_1, %c0_2] : memref<128x128xf32, #tpu.memory_space<vmem>>, vector<128x128xf32>
    %cst = arith.constant dense<0.000000e+00> : vector<48x128xf32>
    %2 = tpu.matmul %0, %1, %cst {dimension_numbers = #tpu.dot_dimension_numbers<[1], [0], [0], [1], [0, 0, 1, 1], [], []>} : vector<48x128xf32>, vector<128x128xf32>, vector<48x128xf32> -> vector<48x128xf32>
    %c0_3 = arith.constant 0 : index
    %c0_4 = arith.constant 0 : index
    %3 = vector.load %arg3[%c0_3, %c0_4] : memref<48x2xf32, #tpu.memory_space<vmem>>, vector<48x1xf32>
    %4 = vector.broadcast %3 : vector<48x1xf32> to vector<48x128xf32>
    %5 = arith.addf %2, %4 : vector<48x128xf32>
    %c0_5 = arith.constant 0 : index
    %c0_6 = arith.constant 0 : index
    %6 = vector.load %arg4[%c0_5, %c0_6] : memref<48x128xf32, #tpu.memory_space<vmem>>, vector<48x128xf32>
    tpu.vector_store %arg4[%c0_5, %c0_6], %5 {strides = array<i32>} : memref<48x128xf32, #tpu.memory_space<vmem>>, vector<48x128xf32>,
    return
  }
  func.func @transform_0(%arg0: i32) -> (i32, i32) {
    %c0_i32 = arith.constant 0 : i32
    %c0_i32_0 = arith.constant 0 : i32
    %c0_i32_1 = arith.constant 0 : i32
    return %c0_i32, %c0_i32_0 : i32, i32
  }
  func.func @transform_1(%arg0: i32) -> (i32, i32) {
    %c0_i32 = arith.constant 0 : i32
    %c0_i32_0 = arith.constant 0 : i32
    return %c0_i32, %arg0 : i32, i32
  }
  func.func @transform_2(%arg0: i32) -> (i32, i32) {
    %c0_i32 = arith.constant 0 : i32
    %c0_i32_0 = arith.constant 0 : i32
    %c0_i32_1 = arith.constant 0 : i32
    return %c0_i32, %c0_i32_0 : i32, i32
  }
  func.func @transform_3(%arg0: i32) -> (i32, i32) {
    %c0_i32 = arith.constant 0 : i32
    %c0_i32_0 = arith.constant 0 : i32
    return %c0_i32, %arg0 : i32, i32
  }
}

module attributes {stable_mosaic.version = 11 : i64} {
  func.func @_mmT_kernel(%arg0: i32, %arg1: memref<48x576xf32, #tpu.memory_space<vmem>>, %arg2: memref<576x128xf32, #tpu.memory_space<vmem>>, %arg3: memref<48x2xf32, #tpu.memory_space<vmem>>, %arg4: memref<48x128xf32, #tpu.memory_space<vmem>>) attributes {dimension_semantics = [#tpu.dimension_semantics<parallel>], iteration_bounds = array<i64: 1>, scalar_prefetch = 0 : i64, scratch_operands = 0 : i64, tpu.core_type = #tpu.core_type<tc>, window_params = [{pipeline_mode = #tpu.pipeline_mode<synchronous>, transform_indices = @transform_0, window_bounds = array<i64: 48, 576>}, {transform_indices = @transform_1, window_bounds = array<i64: 576, 128>}, {pipeline_mode = #tpu.pipeline_mode<synchronous>, transform_indices = @transform_2, window_bounds = array<i64: 48, 2>}, {transform_indices = @transform_3, window_bounds = array<i64: 48, 128>}]} {
    %c0 = arith.constant 0 : index
    %c0_0 = arith.constant 0 : index
    %0 = vector.load %arg1[%c0, %c0_0] : memref<48x576xf32, #tpu.memory_space<vmem>>, vector<48x576xf32>
    %c0_1 = arith.constant 0 : index
    %c0_2 = arith.constant 0 : index
    %1 = vector.load %arg2[%c0_1, %c0_2] : memref<576x128xf32, #tpu.memory_space<vmem>>, vector<576x128xf32>
    %cst = arith.constant dense<0.000000e+00> : vector<48x128xf32>
    %2 = tpu.matmul %0, %1, %cst {dimension_numbers = #tpu.dot_dimension_numbers<[1], [0], [0], [1], [0, 0, 1, 1], [], []>} : vector<48x576xf32>, vector<576x128xf32>, vector<48x128xf32> -> vector<48x128xf32>
    %c0_3 = arith.constant 0 : index
    %c0_4 = arith.constant 0 : index
    %3 = vector.load %arg3[%c0_3, %c0_4] : memref<48x2xf32, #tpu.memory_space<vmem>>, vector<48x1xf32>
    %4 = vector.broadcast %3 : vector<48x1xf32> to vector<48x128xf32>
    %5 = arith.addf %2, %4 : vector<48x128xf32>
    %c0_5 = arith.constant 0 : index
    %c0_6 = arith.constant 0 : index
    %6 = vector.load %arg4[%c0_5, %c0_6] : memref<48x128xf32, #tpu.memory_space<vmem>>, vector<48x128xf32>
    tpu.vector_store %arg4[%c0_5, %c0_6], %5 {strides = array<i32>} : memref<48x128xf32, #tpu.memory_space<vmem>>, vector<48x128xf32>,
    return
  }
  func.func @transform_0(%arg0: i32) -> (i32, i32) {
    %c0_i32 = arith.constant 0 : i32
    %c0_i32_0 = arith.constant 0 : i32
    %c0_i32_1 = arith.constant 0 : i32
    return %c0_i32, %c0_i32_0 : i32, i32
  }
  func.func @transform_1(%arg0: i32) -> (i32, i32) {
    %c0_i32 = arith.constant 0 : i32
    %c0_i32_0 = arith.constant 0 : i32
    return %c0_i32, %arg0 : i32, i32
  }
  func.func @transform_2(%arg0: i32) -> (i32, i32) {
    %c0_i32 = arith.constant 0 : i32
    %c0_i32_0 = arith.constant 0 : i32
    %c0_i32_1 = arith.constant 0 : i32
    return %c0_i32, %c0_i32_0 : i32, i32
  }
  func.func @transform_3(%arg0: i32) -> (i32, i32) {
    %c0_i32 = arith.constant 0 : i32
    %c0_i32_0 = arith.constant 0 : i32
    return %c0_i32, %arg0 : i32, i32
  }
}

module attributes {stable_mosaic.version = 11 : i64} {
  func.func @_haar_kernel(%arg0: i32, %arg1: memref<48x128xf32, #tpu.memory_space<vmem>>, %arg2: memref<48x128xf32, #tpu.memory_space<vmem>>, %arg3: memref<48x128xf32, #tpu.memory_space<vmem>>, %arg4: memref<48x128xf32, #tpu.memory_space<vmem>>, %arg5: memref<48x128xf32, #tpu.memory_space<vmem>>, %arg6: memref<48x128xf32, #tpu.memory_space<vmem>>, %arg7: memref<48x128xf32, #tpu.memory_space<vmem>>, %arg8: memref<48x128xf32, #tpu.memory_space<vmem>>) attributes {dimension_semantics = [#tpu.dimension_semantics<parallel>], iteration_bounds = array<i64: 1>, scalar_prefetch = 0 : i64, scratch_operands = 0 : i64, tpu.core_type = #tpu.core_type<tc>, window_params = [{transform_indices = @transform_0, window_bounds = array<i64: 48, 128>}, {transform_indices = @transform_1, window_bounds = array<i64: 48, 128>}, {transform_indices = @transform_2, window_bounds = array<i64: 48, 128>}, {transform_indices = @transform_3, window_bounds = array<i64: 48, 128>}, {transform_indices = @transform_4, window_bounds = array<i64: 48, 128>}, {transform_indices = @transform_5, window_bounds = array<i64: 48, 128>}, {transform_indices = @transform_6, window_bounds = array<i64: 48, 128>}, {transform_indices = @transform_7, window_bounds = array<i64: 48, 128>}]} {
    %c0 = arith.constant 0 : index
    %c0_0 = arith.constant 0 : index
    %0 = vector.load %arg1[%c0, %c0_0] : memref<48x128xf32, #tpu.memory_space<vmem>>, vector<48x128xf32>
    %c0_1 = arith.constant 0 : index
    %c0_2 = arith.constant 0 : index
    %1 = vector.load %arg2[%c0_1, %c0_2] : memref<48x128xf32, #tpu.memory_space<vmem>>, vector<48x128xf32>
    %c0_3 = arith.constant 0 : index
    %c0_4 = arith.constant 0 : index
    %2 = vector.load %arg3[%c0_3, %c0_4] : memref<48x128xf32, #tpu.memory_space<vmem>>, vector<48x128xf32>
    %c0_5 = arith.constant 0 : index
    %c0_6 = arith.constant 0 : index
    %3 = vector.load %arg4[%c0_5, %c0_6] : memref<48x128xf32, #tpu.memory_space<vmem>>, vector<48x128xf32>
    %4 = arith.addf %0, %1 : vector<48x128xf32>
    %5 = arith.addf %4, %2 : vector<48x128xf32>
    %6 = arith.addf %5, %3 : vector<48x128xf32>
    %cst = arith.constant 2.500000e-01 : f32
    %7 = vector.broadcast %cst : f32 to vector<48x128xf32>
    %8 = arith.mulf %6, %7 : vector<48x128xf32>
    %c0_7 = arith.constant 0 : index
    %c0_8 = arith.constant 0 : index
    %9 = vector.load %arg5[%c0_7, %c0_8] : memref<48x128xf32, #tpu.memory_space<vmem>>, vector<48x128xf32>
    tpu.vector_store %arg5[%c0_7, %c0_8], %8 {strides = array<i32>} : memref<48x128xf32, #tpu.memory_space<vmem>>, vector<48x128xf32>,
    %10 = arith.subf %0, %1 : vector<48x128xf32>
    %11 = arith.addf %10, %2 : vector<48x128xf32>
    %12 = arith.subf %11, %3 : vector<48x128xf32>
    %cst_9 = arith.constant 2.500000e-01 : f32
    %13 = vector.broadcast %cst_9 : f32 to vector<48x128xf32>
    %14 = arith.mulf %12, %13 : vector<48x128xf32>
    %c0_10 = arith.constant 0 : index
    %c0_11 = arith.constant 0 : index
    %15 = vector.load %arg6[%c0_10, %c0_11] : memref<48x128xf32, #tpu.memory_space<vmem>>, vector<48x128xf32>
    tpu.vector_store %arg6[%c0_10, %c0_11], %14 {strides = array<i32>} : memref<48x128xf32, #tpu.memory_space<vmem>>, vector<48x128xf32>,
    %16 = arith.addf %0, %1 : vector<48x128xf32>
    %17 = arith.subf %16, %2 : vector<48x128xf32>
    %18 = arith.subf %17, %3 : vector<48x128xf32>
    %cst_12 = arith.constant 2.500000e-01 : f32
    %19 = vector.broadcast %cst_12 : f32 to vector<48x128xf32>
    %20 = arith.mulf %18, %19 : vector<48x128xf32>
    %c0_13 = arith.constant 0 : index
    %c0_14 = arith.constant 0 : index
    %21 = vector.load %arg7[%c0_13, %c0_14] : memref<48x128xf32, #tpu.memory_space<vmem>>, vector<48x128xf32>
    tpu.vector_store %arg7[%c0_13, %c0_14], %20 {strides = array<i32>} : memref<48x128xf32, #tpu.memory_space<vmem>>, vector<48x128xf32>,
    %22 = arith.subf %0, %1 : vector<48x128xf32>
    %23 = arith.subf %22, %2 : vector<48x128xf32>
    %24 = arith.addf %23, %3 : vector<48x128xf32>
    %cst_15 = arith.constant 2.500000e-01 : f32
    %25 = vector.broadcast %cst_15 : f32 to vector<48x128xf32>
    %26 = arith.mulf %24, %25 : vector<48x128xf32>
    %c0_16 = arith.constant 0 : index
    %c0_17 = arith.constant 0 : index
    %27 = vector.load %arg8[%c0_16, %c0_17] : memref<48x128xf32, #tpu.memory_space<vmem>>, vector<48x128xf32>
    tpu.vector_store %arg8[%c0_16, %c0_17], %26 {strides = array<i32>} : memref<48x128xf32, #tpu.memory_space<vmem>>, vector<48x128xf32>,
    return
  }
  func.func @transform_0(%arg0: i32) -> (i32, i32) {
    %c0_i32 = arith.constant 0 : i32
    %c0_i32_0 = arith.constant 0 : i32
    return %arg0, %c0_i32 : i32, i32
  }
  func.func @transform_1(%arg0: i32) -> (i32, i32) {
    %c0_i32 = arith.constant 0 : i32
    %c0_i32_0 = arith.constant 0 : i32
    return %arg0, %c0_i32 : i32, i32
  }
  func.func @transform_2(%arg0: i32) -> (i32, i32) {
    %c0_i32 = arith.constant 0 : i32
    %c0_i32_0 = arith.constant 0 : i32
    return %arg0, %c0_i32 : i32, i32
  }
  func.func @transform_3(%arg0: i32) -> (i32, i32) {
    %c0_i32 = arith.constant 0 : i32
    %c0_i32_0 = arith.constant 0 : i32
    return %arg0, %c0_i32 : i32, i32
  }
  func.func @transform_4(%arg0: i32) -> (i32, i32) {
    %c0_i32 = arith.constant 0 : i32
    %c0_i32_0 = arith.constant 0 : i32
    return %arg0, %c0_i32 : i32, i32
  }
  func.func @transform_5(%arg0: i32) -> (i32, i32) {
    %c0_i32 = arith.constant 0 : i32
    %c0_i32_0 = arith.constant 0 : i32
    return %arg0, %c0_i32 : i32, i32
  }
  func.func @transform_6(%arg0: i32) -> (i32, i32) {
    %c0_i32 = arith.constant 0 : i32
    %c0_i32_0 = arith.constant 0 : i32
    return %arg0, %c0_i32 : i32, i32
  }
  func.func @transform_7(%arg0: i32) -> (i32, i32) {
    %c0_i32 = arith.constant 0 : i32
    %c0_i32_0 = arith.constant 0 : i32
    return %arg0, %c0_i32 : i32, i32
  }
}

module attributes {stable_mosaic.version = 11 : i64} {
  func.func @_haar_kernel(%arg0: i32, %arg1: memref<48x128xf32, #tpu.memory_space<vmem>>, %arg2: memref<48x128xf32, #tpu.memory_space<vmem>>, %arg3: memref<48x128xf32, #tpu.memory_space<vmem>>, %arg4: memref<48x128xf32, #tpu.memory_space<vmem>>, %arg5: memref<48x128xf32, #tpu.memory_space<vmem>>, %arg6: memref<48x128xf32, #tpu.memory_space<vmem>>, %arg7: memref<48x128xf32, #tpu.memory_space<vmem>>, %arg8: memref<48x128xf32, #tpu.memory_space<vmem>>) attributes {dimension_semantics = [#tpu.dimension_semantics<parallel>], iteration_bounds = array<i64: 1>, scalar_prefetch = 0 : i64, scratch_operands = 0 : i64, tpu.core_type = #tpu.core_type<tc>, window_params = [{transform_indices = @transform_0, window_bounds = array<i64: 48, 128>}, {transform_indices = @transform_1, window_bounds = array<i64: 48, 128>}, {transform_indices = @transform_2, window_bounds = array<i64: 48, 128>}, {transform_indices = @transform_3, window_bounds = array<i64: 48, 128>}, {transform_indices = @transform_4, window_bounds = array<i64: 48, 128>}, {transform_indices = @transform_5, window_bounds = array<i64: 48, 128>}, {transform_indices = @transform_6, window_bounds = array<i64: 48, 128>}, {transform_indices = @transform_7, window_bounds = array<i64: 48, 128>}]} {
    %c0 = arith.constant 0 : index
    %c0_0 = arith.constant 0 : index
    %0 = vector.load %arg1[%c0, %c0_0] : memref<48x128xf32, #tpu.memory_space<vmem>>, vector<48x128xf32>
    %c0_1 = arith.constant 0 : index
    %c0_2 = arith.constant 0 : index
    %1 = vector.load %arg2[%c0_1, %c0_2] : memref<48x128xf32, #tpu.memory_space<vmem>>, vector<48x128xf32>
    %c0_3 = arith.constant 0 : index
    %c0_4 = arith.constant 0 : index
    %2 = vector.load %arg3[%c0_3, %c0_4] : memref<48x128xf32, #tpu.memory_space<vmem>>, vector<48x128xf32>
    %c0_5 = arith.constant 0 : index
    %c0_6 = arith.constant 0 : index
    %3 = vector.load %arg4[%c0_5, %c0_6] : memref<48x128xf32, #tpu.memory_space<vmem>>, vector<48x128xf32>
    %4 = arith.addf %0, %1 : vector<48x128xf32>
    %5 = arith.addf %4, %2 : vector<48x128xf32>
    %6 = arith.addf %5, %3 : vector<48x128xf32>
    %cst = arith.constant 1.000000e+00 : f32
    %7 = vector.broadcast %cst : f32 to vector<48x128xf32>
    %8 = arith.mulf %6, %7 : vector<48x128xf32>
    %c0_7 = arith.constant 0 : index
    %c0_8 = arith.constant 0 : index
    %9 = vector.load %arg5[%c0_7, %c0_8] : memref<48x128xf32, #tpu.memory_space<vmem>>, vector<48x128xf32>
    tpu.vector_store %arg5[%c0_7, %c0_8], %8 {strides = array<i32>} : memref<48x128xf32, #tpu.memory_space<vmem>>, vector<48x128xf32>,
    %10 = arith.subf %0, %1 : vector<48x128xf32>
    %11 = arith.addf %10, %2 : vector<48x128xf32>
    %12 = arith.subf %11, %3 : vector<48x128xf32>
    %cst_9 = arith.constant 1.000000e+00 : f32
    %13 = vector.broadcast %cst_9 : f32 to vector<48x128xf32>
    %14 = arith.mulf %12, %13 : vector<48x128xf32>
    %c0_10 = arith.constant 0 : index
    %c0_11 = arith.constant 0 : index
    %15 = vector.load %arg6[%c0_10, %c0_11] : memref<48x128xf32, #tpu.memory_space<vmem>>, vector<48x128xf32>
    tpu.vector_store %arg6[%c0_10, %c0_11], %14 {strides = array<i32>} : memref<48x128xf32, #tpu.memory_space<vmem>>, vector<48x128xf32>,
    %16 = arith.addf %0, %1 : vector<48x128xf32>
    %17 = arith.subf %16, %2 : vector<48x128xf32>
    %18 = arith.subf %17, %3 : vector<48x128xf32>
    %cst_12 = arith.constant 1.000000e+00 : f32
    %19 = vector.broadcast %cst_12 : f32 to vector<48x128xf32>
    %20 = arith.mulf %18, %19 : vector<48x128xf32>
    %c0_13 = arith.constant 0 : index
    %c0_14 = arith.constant 0 : index
    %21 = vector.load %arg7[%c0_13, %c0_14] : memref<48x128xf32, #tpu.memory_space<vmem>>, vector<48x128xf32>
    tpu.vector_store %arg7[%c0_13, %c0_14], %20 {strides = array<i32>} : memref<48x128xf32, #tpu.memory_space<vmem>>, vector<48x128xf32>,
    %22 = arith.subf %0, %1 : vector<48x128xf32>
    %23 = arith.subf %22, %2 : vector<48x128xf32>
    %24 = arith.addf %23, %3 : vector<48x128xf32>
    %cst_15 = arith.constant 1.000000e+00 : f32
    %25 = vector.broadcast %cst_15 : f32 to vector<48x128xf32>
    %26 = arith.mulf %24, %25 : vector<48x128xf32>
    %c0_16 = arith.constant 0 : index
    %c0_17 = arith.constant 0 : index
    %27 = vector.load %arg8[%c0_16, %c0_17] : memref<48x128xf32, #tpu.memory_space<vmem>>, vector<48x128xf32>
    tpu.vector_store %arg8[%c0_16, %c0_17], %26 {strides = array<i32>} : memref<48x128xf32, #tpu.memory_space<vmem>>, vector<48x128xf32>,
    return
  }
  func.func @transform_0(%arg0: i32) -> (i32, i32) {
    %c0_i32 = arith.constant 0 : i32
    %c0_i32_0 = arith.constant 0 : i32
    return %arg0, %c0_i32 : i32, i32
  }
  func.func @transform_1(%arg0: i32) -> (i32, i32) {
    %c0_i32 = arith.constant 0 : i32
    %c0_i32_0 = arith.constant 0 : i32
    return %arg0, %c0_i32 : i32, i32
  }
  func.func @transform_2(%arg0: i32) -> (i32, i32) {
    %c0_i32 = arith.constant 0 : i32
    %c0_i32_0 = arith.constant 0 : i32
    return %arg0, %c0_i32 : i32, i32
  }
  func.func @transform_3(%arg0: i32) -> (i32, i32) {
    %c0_i32 = arith.constant 0 : i32
    %c0_i32_0 = arith.constant 0 : i32
    return %arg0, %c0_i32 : i32, i32
  }
  func.func @transform_4(%arg0: i32) -> (i32, i32) {
    %c0_i32 = arith.constant 0 : i32
    %c0_i32_0 = arith.constant 0 : i32
    return %arg0, %c0_i32 : i32, i32
  }
  func.func @transform_5(%arg0: i32) -> (i32, i32) {
    %c0_i32 = arith.constant 0 : i32
    %c0_i32_0 = arith.constant 0 : i32
    return %arg0, %c0_i32 : i32, i32
  }
  func.func @transform_6(%arg0: i32) -> (i32, i32) {
    %c0_i32 = arith.constant 0 : i32
    %c0_i32_0 = arith.constant 0 : i32
    return %arg0, %c0_i32 : i32, i32
  }
  func.func @transform_7(%arg0: i32) -> (i32, i32) {
    %c0_i32 = arith.constant 0 : i32
    %c0_i32_0 = arith.constant 0 : i32
    return %arg0, %c0_i32 : i32, i32
  }
}

module attributes {stable_mosaic.version = 11 : i64} {
  func.func @_mmT_kernel(%arg0: i32, %arg1: memref<8x8xf32, #tpu.memory_space<vmem>>, %arg2: memref<8x1024xf32, #tpu.memory_space<vmem>>, %arg3: memref<8x2xf32, #tpu.memory_space<vmem>>, %arg4: memref<8x1024xf32, #tpu.memory_space<vmem>>) attributes {dimension_semantics = [#tpu.dimension_semantics<parallel>], iteration_bounds = array<i64: 8>, scalar_prefetch = 0 : i64, scratch_operands = 0 : i64, tpu.core_type = #tpu.core_type<tc>, window_params = [{pipeline_mode = #tpu.pipeline_mode<synchronous>, transform_indices = @transform_0, window_bounds = array<i64: 8, 8>}, {transform_indices = @transform_1, window_bounds = array<i64: 8, 1024>}, {pipeline_mode = #tpu.pipeline_mode<synchronous>, transform_indices = @transform_2, window_bounds = array<i64: 8, 2>}, {transform_indices = @transform_3, window_bounds = array<i64: 8, 1024>}]} {
    %c0 = arith.constant 0 : index
    %c0_0 = arith.constant 0 : index
    %0 = vector.load %arg1[%c0, %c0_0] : memref<8x8xf32, #tpu.memory_space<vmem>>, vector<8x8xf32>
    %c0_1 = arith.constant 0 : index
    %c0_2 = arith.constant 0 : index
    %1 = vector.load %arg2[%c0_1, %c0_2] : memref<8x1024xf32, #tpu.memory_space<vmem>>, vector<8x1024xf32>
    %cst = arith.constant dense<0.000000e+00> : vector<8x1024xf32>
    %2 = tpu.matmul %0, %1, %cst {dimension_numbers = #tpu.dot_dimension_numbers<[1], [0], [0], [1], [0, 0, 1, 1], [], []>} : vector<8x8xf32>, vector<8x1024xf32>, vector<8x1024xf32> -> vector<8x1024xf32>
    %c0_3 = arith.constant 0 : index
    %c0_4 = arith.constant 0 : index
    %3 = vector.load %arg3[%c0_3, %c0_4] : memref<8x2xf32, #tpu.memory_space<vmem>>, vector<8x1xf32>
    %4 = vector.broadcast %3 : vector<8x1xf32> to vector<8x1024xf32>
    %5 = arith.addf %2, %4 : vector<8x1024xf32>
    %c0_5 = arith.constant 0 : index
    %c0_6 = arith.constant 0 : index
    %6 = vector.load %arg4[%c0_5, %c0_6] : memref<8x1024xf32, #tpu.memory_space<vmem>>, vector<8x1024xf32>
    tpu.vector_store %arg4[%c0_5, %c0_6], %5 {strides = array<i32>} : memref<8x1024xf32, #tpu.memory_space<vmem>>, vector<8x1024xf32>,
    return
  }
  func.func @transform_0(%arg0: i32) -> (i32, i32) {
    %c0_i32 = arith.constant 0 : i32
    %c0_i32_0 = arith.constant 0 : i32
    %c0_i32_1 = arith.constant 0 : i32
    return %c0_i32, %c0_i32_0 : i32, i32
  }
  func.func @transform_1(%arg0: i32) -> (i32, i32) {
    %c0_i32 = arith.constant 0 : i32
    %c0_i32_0 = arith.constant 0 : i32
    return %c0_i32, %arg0 : i32, i32
  }
  func.func @transform_2(%arg0: i32) -> (i32, i32) {
    %c0_i32 = arith.constant 0 : i32
    %c0_i32_0 = arith.constant 0 : i32
    %c0_i32_1 = arith.constant 0 : i32
    return %c0_i32, %c0_i32_0 : i32, i32
  }
  func.func @transform_3(%arg0: i32) -> (i32, i32) {
    %c0_i32 = arith.constant 0 : i32
    %c0_i32_0 = arith.constant 0 : i32
    return %c0_i32, %arg0 : i32, i32
  }
}

</mosaic_0001>

<llo_original>
// kernel: forward.58
$region0: #{forward.58}
  #allocation0 [shape = 'u32[]', space=smem, size = 0x4, offset = 0x4, fixed_abs, tag = 'smem constant byte address 0x4 - core index']
  #allocation1 [shape = 'u32[72,128]{1,0:T(1,128)}', space=vmem, size = 0x9000, scoped, tag = 'internal scratch']
  %s0 = inlined_call_operand.vmem [shape: f32[8,8], index: 0, kind: input, shape index: {}]
  %s1 = inlined_call_operand.vmem [shape: f32[8,512], index: 1, kind: input, shape index: {}]
  %s2 = inlined_call_operand.hbm [shape: f32[8,2], index: 2, kind: input, shape index: {}]
  %s3 = inlined_call_operand.vmem [shape: f32[8,512], index: 3, kind: output, shape index: {}]
  %s4 = sld [smem:[#allocation0]]
  $region26: #{forward.58} parent=0
    _
  %s6 = ssub.s32 1, %s4
  %s7 = scalar_select 0, %s6, %s4
  $region1: #{forward.58} parent=0
    #allocation2 [shape = 'u8[4096]{0}', space=vmem, size = 0x1000, scoped, tag = 'input window, operand 2, single buffered']
    #allocation3 [shape = 's32[1]{0}', space=sflag, size = 0x4, scoped, tag = 'scoped memory for forward.58']
    %8 = vsyncpa [#allocation3], 0
    // Predicated region
    $region2: #{forward.58} parent=1 // pred_check
      _
    $region3: #{forward.58} parent=1 // pred_check_branch
      %10 = sbr.rel (0) target = $region5
    $region4: #{forward.58} parent=1 // pred_region
      _
    $region5: #{forward.58} parent=1 // pred_fallthru
      _
    // Predicated region
    $region6: #{forward.58} parent=1 // pred_check
      _
    $region7: #{forward.58} parent=1 // pred_check_branch
      %12 = sbr.rel (0) target = $region9
    $region8: #{forward.58} parent=1 // pred_region
      _
    $region9: #{forward.58} parent=1 // pred_fallthru
      _
    // Predicated region
    $region10: #{forward.58} parent=1 // pred_check
      _
    $region11: #{forward.58} parent=1 // pred_check_branch
      %14 = sbr.rel (0) target = $region13
    $region12: #{forward.58} parent=1 // pred_region
      %16 = vsyncadd [#allocation3], 0
      %s18 = sshll.u32 %s2, 4
      %s19 = int_to_ptr.hbm [resolvable:$true] %s18
      %s20 = sshll.u32 [#allocation2], 4
      %s21 = int_to_ptr.vmem [resolvable:$true] %s20
      %23 = dma.hbm_to_vmem [thread:$0]  %s19, 128, %s21, [#allocation3]
    $region13: #{forward.58} parent=1 // pred_fallthru
      _
    // Predicated region
    $region14: #{forward.58} parent=1 // pred_check
      _
    $region15: #{forward.58} parent=1 // pred_check_branch
      %25 = sbr.rel (0) target = $region17
    $region16: #{forward.58} parent=1 // pred_region
      %27 = dma.done [#allocation3], 128
    $region17: #{forward.58} parent=1 // pred_fallthru
      _
    %v28 = vld [vmem:[%s0] sm:$0xff]
    %v29 = vld [vmem:[%s1] sm:$0xff]
    %v30 = vld [vmem:[%s1 + $0x8] sm:$0xff]
    %v31 = vld [vmem:[%s1 + $0x10] sm:$0xff]
    %v32 = vld [vmem:[%s1 + $0x18] sm:$0xff]
    %v33 = vld [vmem:[#allocation2] sm:$0xff]
    %35 = vset.pattern.permute.xlu0 0
    %36 = vperm.xlu0 %35, %v33
    %v37 = vpop.permute.xlu0 %36
    %vm39 = vcmask 64512
    %v41 = vsel %vm39, %v28, 0
    %43 = vmatpush.msra.mxu0 0.0
    %44 = vmatpush.msra.mxu0 0.0
    %45 = vmatpush.msra.mxu0 0.0
    %46 = vmatpush.msra.mxu0 0.0
    %47 = vmatpush.msra.mxu0 0.0
    %48 = vmatpush.msra.mxu0 0.0
    %49 = vmatpush.msra.mxu0 0.0
    %50 = vmatpush.msra.mxu0 0.0
    %51 = vmatpush.msra.mxu0 0.0
    %52 = vmatpush.msra.mxu0 0.0
    %53 = vmatpush.msra.mxu0 0.0
    %54 = vmatpush.msra.mxu0 0.0
    %55 = vmatpush.msra.mxu0 0.0
    %56 = vmatpush.msra.mxu0 0.0
    %57 = vmatpush.msra.mxu0 0.0
    %58 = vmatpush.msra.mxu0 %v29
    %59 = vmatmul.f32.gmra.mxu0 %v41
    %v60 = vpop.f32.mrf.mxu0
    %v61 = vadd.f32 %v37, %v60
    %62 = vdwg.mxu0
    %63 = vmatpush.msra.mxu0 0.0
    %64 = vmatpush.msra.mxu0 0.0
    %65 = vmatpush.msra.mxu0 0.0
    %66 = vmatpush.msra.mxu0 0.0
    %67 = vmatpush.msra.mxu0 0.0
    %68 = vmatpush.msra.mxu0 0.0
    %69 = vmatpush.msra.mxu0 0.0
    %70 = vmatpush.msra.mxu0 0.0
    %71 = vmatpush.msra.mxu0 0.0
    %72 = vmatpush.msra.mxu0 0.0
    %73 = vmatpush.msra.mxu0 0.0
    %74 = vmatpush.msra.mxu0 0.0
    %75 = vmatpush.msra.mxu0 0.0
    %76 = vmatpush.msra.mxu0 0.0
    %77 = vmatpush.msra.mxu0 0.0
    %78 = vmatpush.msra.mxu0 %v30
    %79 = vmatmul.f32.gmra.mxu0 %v41
    %v80 = vpop.f32.mrf.mxu0
    %v81 = vadd.f32 %v37, %v80
    %82 = vdwg.mxu0
    %83 = vmatpush.msra.mxu0 0.0
    %84 = vmatpush.msra.mxu0 0.0
    %85 = vmatpush.msra.mxu0 0.0
    %86 = vmatpush.msra.mxu0 0.0
    %87 = vmatpush.msra.mxu0 0.0
    %88 = vmatpush.msra.mxu0 0.0
    %89 = vmatpush.msra.mxu0 0.0
    %90 = vmatpush.msra.mxu0 0.0
    %91 = vmatpush.msra.mxu0 0.0
    %92 = vmatpush.msra.mxu0 0.0
    %93 = vmatpush.msra.mxu0 0.0
    %94 = vmatpush.msra.mxu0 0.0
    %95 = vmatpush.msra.mxu0 0.0
    %96 = vmatpush.msra.mxu0 0.0
    %97 = vmatpush.msra.mxu0 0.0
    %98 = vmatpush.msra.mxu0 %v31
    %99 = vmatmul.f32.gmra.mxu0 %v41
    %v100 = vpop.f32.mrf.mxu0
    %v101 = vadd.f32 %v37, %v100
    %102 = vdwg.mxu0
    %103 = vmatpush.msra.mxu0 0.0
    %104 = vmatpush.msra.mxu0 0.0
    %105 = vmatpush.msra.mxu0 0.0
    %106 = vmatpush.msra.mxu0 0.0
    %107 = vmatpush.msra.mxu0 0.0
    %108 = vmatpush.msra.mxu0 0.0
    %109 = vmatpush.msra.mxu0 0.0
    %110 = vmatpush.msra.mxu0 0.0
    %111 = vmatpush.msra.mxu0 0.0
    %112 = vmatpush.msra.mxu0 0.0
    %113 = vmatpush.msra.mxu0 0.0
    %114 = vmatpush.msra.mxu0 0.0
    %115 = vmatpush.msra.mxu0 0.0
    %116 = vmatpush.msra.mxu0 0.0
    %117 = vmatpush.msra.mxu0 0.0
    %118 = vmatpush.msra.mxu0 %v32
    %119 = vmatmul.f32.gmra.mxu0 %v41
    %v120 = vpop.f32.mrf.mxu0
    %v121 = vadd.f32 %v37, %v120
    %122 = vdwg.mxu0
    %123 = vst [vmem:[%s3] sm:$0xff] %v61
    %124 = vst [vmem:[%s3 + $0x8] sm:$0xff] %v81
    %125 = vst [vmem:[%s3 + $0x10] sm:$0xff] %v101
    %126 = vst [vmem:[%s3 + $0x18] sm:$0xff] %v121
    // Predicated region
    $region18: #{forward.58} parent=1 // pred_check
      _
    $region19: #{forward.58} parent=1 // pred_check_branch
      %128 = sbr.rel (0) target = $region21
    $region20: #{forward.58} parent=1 // pred_region
      _
    $region21: #{forward.58} parent=1 // pred_fallthru
      _
    // Predicated region
    $region22: #{forward.58} parent=1 // pred_check
      _
    $region23: #{forward.58} parent=1 // pred_check_branch
      %130 = sbr.rel (0) target = $region25
    $region24: #{forward.58} parent=1 // pred_region
      _
    $region25: #{forward.58} parent=1 // pred_fallthru
      _
    %131 = vsyncpa [#allocation3], 1

// kernel: forward.110
$region0: #{forward.110}
  #allocation0 [shape = 'u32[]', space=smem, size = 0x4, offset = 0x4, fixed_abs, tag = 'smem constant byte address 0x4 - core index']
  #allocation1 [shape = 'u32[72,128]{1,0:T(1,128)}', space=vmem, size = 0x9000, scoped, tag = 'internal scratch']
  %s0 = inlined_call_operand.hbm [shape: f32[64,16], index: 0, kind: input, shape index: {}]
  %s1 = inlined_call_operand.vmem [shape: f32[16,96], index: 1, kind: input, shape index: {}]
  %s2 = inlined_call_operand.vmem [shape: f32[64,2], index: 2, kind: input, shape index: {}]
  %s3 = inlined_call_operand.vmem [shape: f32[64,96], index: 3, kind: output, shape index: {}]
  %s4 = sld [smem:[#allocation0]]
  $region26: #{forward.110} parent=0
    _
  %s6 = ssub.s32 1, %s4
  %s7 = scalar_select 0, %s6, %s4
  $region1: #{forward.110} parent=0
    #allocation2 [shape = 'u8[32768]{0}', space=vmem, size = 0x8000, scoped, tag = 'input window, operand 0, single buffered']
    #allocation3 [shape = 's32[1]{0}', space=sflag, size = 0x4, scoped, tag = 'scoped memory for forward.110']
    %8 = vsyncpa [#allocation3], 0
    // Predicated region
    $region2: #{forward.110} parent=1 // pred_check
      _
    $region3: #{forward.110} parent=1 // pred_check_branch
      %10 = sbr.rel (0) target = $region5
    $region4: #{forward.110} parent=1 // pred_region
      %12 = vsyncadd [#allocation3], 0
      %s13 = sshll.u32 %s0, 4
      %s14 = int_to_ptr.hbm [resolvable:$true] %s13
      %s15 = sshll.u32 [#allocation2], 4
      %s16 = int_to_ptr.vmem [resolvable:$true] %s15
      %21 = dma.hbm_to_vmem [thread:$0]  %s14, 1024, %s16, [#allocation3], 128, 128, 8
    $region5: #{forward.110} parent=1 // pred_fallthru
      _
    // Predicated region
    $region6: #{forward.110} parent=1 // pred_check
      _
    $region7: #{forward.110} parent=1 // pred_check_branch
      %23 = sbr.rel (0) target = $region9
    $region8: #{forward.110} parent=1 // pred_region
      _
    $region9: #{forward.110} parent=1 // pred_fallthru
      _
    // Predicated region
    $region10: #{forward.110} parent=1 // pred_check
      _
    $region11: #{forward.110} parent=1 // pred_check_branch
      %25 = sbr.rel (0) target = $region13
    $region12: #{forward.110} parent=1 // pred_region
      _
    $region13: #{forward.110} parent=1 // pred_fallthru
      _
    // Predicated region
    $region14: #{forward.110} parent=1 // pred_check
      _
    $region15: #{forward.110} parent=1 // pred_check_branch
      %27 = sbr.rel (0) target = $region17
    $region16: #{forward.110} parent=1 // pred_region
      %29 = dma.done [#allocation3], 1024
    $region17: #{forward.110} parent=1 // pred_fallthru
      _
    %v30 = vld [vmem:[#allocation2] sm:$0xff]
    %v31 = vld [vmem:[#allocation2 + $0x8] sm:$0xff]
    %v32 = vld [vmem:[#allocation2 + $0x10] sm:$0xff]
    %v33 = vld [vmem:[#allocation2 + $0x18] sm:$0xff]
    %v34 = vld [vmem:[#allocation2 + $0x20] sm:$0xff]
    %v35 = vld [vmem:[#allocation2 + $0x28] sm:$0xff]
    %v36 = vld [vmem:[#allocation2 + $0x30] sm:$0xff]
    %v37 = vld [vmem:[#allocation2 + $0x38] sm:$0xff]
    %v38 = vld [vmem:[%s1] sm:$0xff]
    %v39 = vld [vmem:[%s1 + $0x8] sm:$0xff]
    %v40 = vld [vmem:[%s2] sm:$0xff]
    %v41 = vld [vmem:[%s2 + $0x8] sm:$0xff]
    %v42 = vld [vmem:[%s2 + $0x10] sm:$0xff]
    %v43 = vld [vmem:[%s2 + $0x18] sm:$0xff]
    %v44 = vld [vmem:[%s2 + $0x20] sm:$0xff]
    %v45 = vld [vmem:[%s2 + $0x28] sm:$0xff]
    %v46 = vld [vmem:[%s2 + $0x30] sm:$0xff]
    %v47 = vld [vmem:[%s2 + $0x38] sm:$0xff]
    %49 = vset.pattern.permute.xlu0 0
    %50 = vperm.xlu0 %49, %v40
    %v51 = vpop.permute.xlu0 %50
    %54 = vset.pattern.permute.xlu0 0
    %55 = vperm.xlu0 %54, %v41
    %v56 = vpop.permute.xlu0 %55
    %59 = vset.pattern.permute.xlu0 0
    %60 = vperm.xlu0 %59, %v42
    %v61 = vpop.permute.xlu0 %60
    %64 = vset.pattern.permute.xlu0 0
    %65 = vperm.xlu0 %64, %v43
    %v66 = vpop.permute.xlu0 %65
    %69 = vset.pattern.permute.xlu0 0
    %70 = vperm.xlu0 %69, %v44
    %v71 = vpop.permute.xlu0 %70
    %74 = vset.pattern.permute.xlu0 0
    %75 = vperm.xlu0 %74, %v45
    %v76 = vpop.permute.xlu0 %75
    %79 = vset.pattern.permute.xlu0 0
    %80 = vperm.xlu0 %79, %v46
    %v81 = vpop.permute.xlu0 %80
    %84 = vset.pattern.permute.xlu0 0
    %85 = vperm.xlu0 %84, %v47
    %v86 = vpop.permute.xlu0 %85
    %vm88 = vcmask 130048
    %v90 = vsel %vm88, %v30, 0
    %v93 = vsel %vm88, %v31, 0
    %v96 = vsel %vm88, %v32, 0
    %v99 = vsel %vm88, %v33, 0
    %v102 = vsel %vm88, %v34, 0
    %v105 = vsel %vm88, %v35, 0
    %v108 = vsel %vm88, %v36, 0
    %v111 = vsel %vm88, %v37, 0
    %113 = vmatpush.msra.mxu0 0.0
    %114 = vmatpush.msra.mxu0 0.0
    %115 = vmatpush.msra.mxu0 0.0
    %116 = vmatpush.msra.mxu0 0.0
    %117 = vmatpush.msra.mxu0 0.0
    %118 = vmatpush.msra.mxu0 0.0
    %119 = vmatpush.msra.mxu0 0.0
    %120 = vmatpush.msra.mxu0 0.0
    %121 = vmatpush.msra.mxu0 0.0
    %122 = vmatpush.msra.mxu0 0.0
    %123 = vmatpush.msra.mxu0 0.0
    %124 = vmatpush.msra.mxu0 0.0
    %125 = vmatpush.msra.mxu0 0.0
    %126 = vmatpush.msra.mxu0 0.0
    %127 = vmatpush.msra.mxu0 %v39
    %128 = vmatpush.msra.mxu0 %v38
    %129 = vmatmul.f32.gmra.mxu0 %v90
    %v130 = vpop.f32.mrf.mxu0
    %v131 = vadd.f32 %v51, %v130
    %132 = vmatmul.f32.gmra.mxu0 %v93
    %v133 = vpop.f32.mrf.mxu0
    %v134 = vadd.f32 %v56, %v133
    %135 = vmatmul.f32.gmra.mxu0 %v96
    %v136 = vpop.f32.mrf.mxu0
    %v137 = vadd.f32 %v61, %v136
    %138 = vmatmul.f32.gmra.mxu0 %v99
    %v139 = vpop.f32.mrf.mxu0
    %v140 = vadd.f32 %v66, %v139
    %141 = vmatmul.f32.gmra.mxu0 %v102
    %v142 = vpop.f32.mrf.mxu0
    %v143 = vadd.f32 %v71, %v142
    %144 = vmatmul.f32.gmra.mxu0 %v105
    %v145 = vpop.f32.mrf.mxu0
    %v146 = vadd.f32 %v76, %v145
    %147 = vmatmul.f32.gmra.mxu0 %v108
    %v148 = vpop.f32.mrf.mxu0
    %v149 = vadd.f32 %v81, %v148
    %150 = vmatmul.f32.gmra.mxu0 %v111
    %v151 = vpop.f32.mrf.mxu0
    %v152 = vadd.f32 %v86, %v151
    %153 = vdwg.mxu0
    %vm154 = vcmask 785408
    %155 = vst.msk [vmem:[%s3] sm:$0xff] %vm154, %v131
    %156 = vst.msk [vmem:[%s3 + $0x8] sm:$0xff] %vm154, %v134
    %157 = vst.msk [vmem:[%s3 + $0x10] sm:$0xff] %vm154, %v137
    %158 = vst.msk [vmem:[%s3 + $0x18] sm:$0xff] %vm154, %v140
    %159 = vst.msk [vmem:[%s3 + $0x20] sm:$0xff] %vm154, %v143
    %160 = vst.msk [vmem:[%s3 + $0x28] sm:$0xff] %vm154, %v146
    %161 = vst.msk [vmem:[%s3 + $0x30] sm:$0xff] %vm154, %v149
    %162 = vst.msk [vmem:[%s3 + $0x38] sm:$0xff] %vm154, %v152
    // Predicated region
    $region18: #{forward.110} parent=1 // pred_check
      _
    $region19: #{forward.110} parent=1 // pred_check_branch
      %164 = sbr.rel (0) target = $region21
    $region20: #{forward.110} parent=1 // pred_region
      _
    $region21: #{forward.110} parent=1 // pred_fallthru
      _
    // Predicated region
    $region22: #{forward.110} parent=1 // pred_check
      _
    $region23: #{forward.110} parent=1 // pred_check_branch
      %166 = sbr.rel (0) target = $region25
    $region24: #{forward.110} parent=1 // pred_region
      _
    $region25: #{forward.110} parent=1 // pred_fallthru
      _
    %167 = vsyncpa [#allocation3], 1

// kernel: forward.111
$region0: #{forward.111}
  #allocation0 [shape = 'u32[]', space=smem, size = 0x4, offset = 0x4, fixed_abs, tag = 'smem constant byte address 0x4 - core index']
  #allocation1 [shape = 'u32[72,128]{1,0:T(1,128)}', space=vmem, size = 0x9000, scoped, tag = 'internal scratch']
  %s0 = inlined_call_operand.hbm [shape: f32[64,16], index: 0, kind: input, shape index: {}]
  %s1 = inlined_call_operand.vmem [shape: f32[16,384], index: 1, kind: input, shape index: {}]
  %s2 = inlined_call_operand.vmem [shape: f32[64,2], index: 2, kind: input, shape index: {}]
  %s3 = inlined_call_operand.vmem [shape: f32[64,384], index: 3, kind: output, shape index: {}]
  %s4 = sld [smem:[#allocation0]]
  $region121: #{forward.111} parent=0
    _
  %s6 = ssub.s32 1, %s4
  %s7 = scalar_select 0, %s6, %s4
  $region1: #{forward.111} parent=0
    #allocation2 [shape = 'u8[32768]{0}', space=vmem, size = 0x8000, scoped, tag = 'input window, operand 0, single buffered']
    #allocation3 [shape = 's32[2]{0}', space=sflag, size = 0x8, scoped, tag = 'scoped memory for forward.111']
    #allocation4 [shape = 'u8[16384]{0}', space=vmem, size = 0x4000, scoped, tag = 'input window, operand 1']
    #allocation5 [shape = 'u8[65536]{0}', space=vmem, size = 0x10000, scoped, tag = 'output window, operand 0']
    %8 = vsyncpa [#allocation3], 0
    loop: start=0, step=1, limit=5
    $region2: #{forward.111} parent=1 // loop_pre_header
      _
    $region3: #{forward.111} parent=1 // loop_header
      %s10 = sphi 0, %s14
      %p11 = scmp.ge.s32.totalorder %s10, 5
      %s18 = sphi 0, %s18
      %s20 = sphi 0, %s18
      %s21 = sphi 0, %s20
      %s35 = sphi 0, %s21
      %s41 = sphi 0, %s43
      %s44 = sphi 0, %s41
      %s45 = sphi 0, %s44
      %s61 = sphi 0, %s45
      %s65 = sphi 0, %s65
      %s67 = sphi 0, %s65
      %s68 = sphi 0, %s67
      %s82 = sphi 0, %s68
      %s88 = sphi 0, %s90
      %s91 = sphi 0, %s88
      %s92 = sphi 0, %s91
      %s108 = sphi 0, %s92
    $region4: #{forward.111} parent=1 // loop_header_branch
      %13 = sbr.rel (%p11) target = $region8
    $region5: #{forward.111} parent=1 // loop_body
      %s15 = ssub.s32 %s10, 1
      %s16 = ssub.s32 %s10, 2
      %s17 = sadd.s32 %s10, 1
      %s19 = sadd.s32 %s18, 1
      %p22 = scmp.eq.s32.totalorder %s10, 2
      %p23 = scmp.ne.s32.totalorder %s18, %s20
      %p24 = scmp.eq.s32.totalorder %s10, 0
      %p25 = por %p23, %p24
      %p26 = scmp.ne.s32.totalorder %s18, %s20
      %p27 = scmp.eq.s32.totalorder %s15, 2
      %p28 = por %p26, %p27
      %p29 = scmp.ne.s32.totalorder %s20, %s21
      %p30 = scmp.eq.s32.totalorder %s15, 0
      %p31 = por %p29, %p30
      %p32 = scmp.ne.s32.totalorder %s20, %s21
      %p33 = scmp.eq.s32.totalorder %s16, 2
      %p34 = por %p32, %p33
      %p36 = scmp.ne.s32.totalorder %s21, %s35
      %p37 = scmp.eq.s32.totalorder %s16, 0
      %p38 = por %p36, %p37
      %s39 = ssub.s32 %s10, %s17
      %p40 = scmp.eq.s32.totalorder %s39, 0
      %s42 = sadd.s32 %s41, 1
      %s43 = scalar_select %p40, %s41, %s42
      %p46 = pneg %p40
      %p47 = scmp.eq.s32.totalorder %s10, 2
      %p48 = por %p46, %p47
      %p49 = scmp.ne.s32.totalorder %s41, %s44
      %p50 = scmp.eq.s32.totalorder %s10, 0
      %p51 = por %p49, %p50
      %p52 = scmp.ne.s32.totalorder %s41, %s44
      %p53 = scmp.eq.s32.totalorder %s15, 2
      %p54 = por %p52, %p53
      %p55 = scmp.ne.s32.totalorder %s44, %s45
      %p56 = scmp.eq.s32.totalorder %s15, 0
      %p57 = por %p55, %p56
      %p58 = scmp.ne.s32.totalorder %s44, %s45
      %p59 = scmp.eq.s32.totalorder %s16, 2
      %p60 = por %p58, %p59
      %p62 = scmp.ne.s32.totalorder %s45, %s61
      %p63 = scmp.eq.s32.totalorder %s16, 0
      %p64 = por %p62, %p63
      %s66 = sadd.s32 %s65, 1
      %p69 = scmp.eq.s32.totalorder %s10, 2
      %p70 = scmp.ne.s32.totalorder %s65, %s67
      %p71 = scmp.eq.s32.totalorder %s10, 0
      %p72 = por %p70, %p71
      %p73 = scmp.ne.s32.totalorder %s65, %s67
      %p74 = scmp.eq.s32.totalorder %s15, 2
      %p75 = por %p73, %p74
      %p76 = scmp.ne.s32.totalorder %s67, %s68
      %p77 = scmp.eq.s32.totalorder %s15, 0
      %p78 = por %p76, %p77
      %p79 = scmp.ne.s32.totalorder %s67, %s68
      %p80 = scmp.eq.s32.totalorder %s16, 2
      %p81 = por %p79, %p80
      %p83 = scmp.ne.s32.totalorder %s68, %s82
      %p84 = scmp.eq.s32.totalorder %s16, 0
      %p85 = por %p83, %p84
      %s86 = ssub.s32 %s10, %s17
      %p87 = scmp.eq.s32.totalorder %s86, 0
      %s89 = sadd.s32 %s88, 1
      %s90 = scalar_select %p87, %s88, %s89
      %p93 = pneg %p87
      %p94 = scmp.eq.s32.totalorder %s10, 2
      %p95 = por %p93, %p94
      %p96 = scmp.ne.s32.totalorder %s88, %s91
      %p97 = scmp.eq.s32.totalorder %s10, 0
      %p98 = por %p96, %p97
      %p99 = scmp.ne.s32.totalorder %s88, %s91
      %p100 = scmp.eq.s32.totalorder %s15, 2
      %p101 = por %p99, %p100
      %p102 = scmp.ne.s32.totalorder %s91, %s92
      %p103 = scmp.eq.s32.totalorder %s15, 0
      %p104 = por %p102, %p103
      %p105 = scmp.ne.s32.totalorder %s91, %s92
      %p106 = scmp.eq.s32.totalorder %s16, 2
      %p107 = por %p105, %p106
      %p109 = scmp.ne.s32.totalorder %s92, %s108
      %p110 = scmp.eq.s32.totalorder %s16, 0
      %p111 = por %p109, %p110
      %p112 = scmp.le.s32.totalorder 1, %s10
      %p113 = scmp.lt.s32.totalorder %s10, 4
      %p114 = pnand %p112, %p113
      %p115 = pneg %p114
      // Predicated region
      $region9: #{forward.111} parent=5 // pred_check
        _
      $region10: #{forward.111} parent=5 // pred_check_branch
        %117 = sbr.rel (%p114) target = $region12
      $region11: #{forward.111} parent=5 // pred_region
        %s118 = ssub.s32 %s10, 1
        // Predicated region
        $region13: #{forward.111} parent=11 // pred_check
          %p119 = pneg %p31
        $region14: #{forward.111} parent=11 // pred_check_branch
          %121 = sbr.rel (%p119) target = $region16
        $region15: #{forward.111} parent=11 // pred_region
          %123 = vsyncadd [#allocation3], 0
          %s124 = sshll.u32 %s0, 4
          %s125 = int_to_ptr.hbm [resolvable:$true] %s124
          %s126 = sshll.u32 [#allocation2], 4
          %s127 = int_to_ptr.vmem [resolvable:$true] %s126
          %132 = dma.hbm_to_vmem [thread:$0]  %s125, 1024, %s127, [#allocation3], 128, 128, 8
        $region16: #{forward.111} parent=11 // pred_fallthru
          _
        // Predicated region
        $region17: #{forward.111} parent=11 // pred_check
          %p133 = pneg %p78
        $region18: #{forward.111} parent=11 // pred_check_branch
          %135 = sbr.rel (%p133) target = $region20
        $region19: #{forward.111} parent=11 // pred_region
          _
        $region20: #{forward.111} parent=11 // pred_fallthru
          _
      $region12: #{forward.111} parent=5 // pred_fallthru
        _
      %p136 = scmp.lt.s32.totalorder %s10, 3
      // Predicated region
      $region21: #{forward.111} parent=5 // pred_check
        %p137 = pneg %p136
      $region22: #{forward.111} parent=5 // pred_check_branch
        %139 = sbr.rel (%p137) target = $region24
      $region23: #{forward.111} parent=5 // pred_region
        // Predicated region
        $region25: #{forward.111} parent=23 // pred_check
          %p140 = pneg %p51
        $region26: #{forward.111} parent=23 // pred_check_branch
          %142 = sbr.rel (%p140) target = $region28
        $region27: #{forward.111} parent=23 // pred_region
          %s143 = sand.u32 %s41, 1
          %s144 = sand.u32 %s41, 1
          %s145 = smul.addr %s144, 16
          %s146 = scalar_lea.vmem [#allocation4], %s145
          %s147 = smul.addr %s10, 8
          %s148 = scalar_lea.vmem %s1, %s147
          // Predicated region
          $region29: #{forward.111} parent=27 // pred_check
            _
          $region30: #{forward.111} parent=27 // pred_check_branch
            %150 = sbr.rel (0) target = $region32
          $region31: #{forward.111} parent=27 // pred_region
            // Predicated region
            $region33: #{forward.111} parent=31 // pred_check
              _
            $region34: #{forward.111} parent=31 // pred_check_branch
              %152 = sbr.rel (0) target = $region36
            $region35: #{forward.111} parent=31 // pred_region
              // Predicated region
              $region48: #{forward.111} parent=35 // pred_check
                _
              $region49: #{forward.111} parent=35 // pred_check_branch
                %170 = sbr.rel (0) target = $region51
              $region50: #{forward.111} parent=35 // pred_region
                loop: start=0, step=1, limit=1
                $region52: #{forward.111} parent=50 // loop_pre_header
                  _
                $region53: #{forward.111} parent=50 // loop_header
                  %s172 = sphi 0, %s176
                  %p173 = scmp.ge.s32.totalorder %s172, 1
                  %s177 = sphi %s148, %s148
                  %s178 = sphi %s146, %s146
                $region54: #{forward.111} parent=50 // loop_header_branch
                  %175 = sbr.rel (%p173) target = $region58
                $region55: #{forward.111} parent=50 // loop_body
                  %v179 = vld [vmem:[%s177] sm:$0xff]
                  %180 = vst [vmem:[%s178] sm:$0xff] %v179
                  %v181 = vld [vmem:[%s177 + $0x18] sm:$0xff]
                  %182 = vst [vmem:[%s178 + $0x8] sm:$0xff] %v181
                $region56: #{forward.111} parent=50 // loop_footer
                  %s176 = sadd.s32 1, %s172
                $region57: #{forward.111} parent=50 // loop_footer_branch
                  %171 = sbr.rel target = $region53
                $region58: #{forward.111} parent=50 // loop_exit
                  _
              $region51: #{forward.111} parent=35 // pred_fallthru
                _
              // Predicated region
              $region59: #{forward.111} parent=35 // pred_check
                _
              $region60: #{forward.111} parent=35 // pred_check_branch
                %184 = sbr.rel target = $region62
              $region61: #{forward.111} parent=35 // pred_region
                _
              $region62: #{forward.111} parent=35 // pred_fallthru
                _
            $region36: #{forward.111} parent=31 // pred_fallthru
              _
            // Predicated region
            $region37: #{forward.111} parent=31 // pred_check
              _
            $region38: #{forward.111} parent=31 // pred_check_branch
              %154 = sbr.rel target = $region40
            $region39: #{forward.111} parent=31 // pred_region
              %s156 = ssub.s32 256, 1
              loop: start=0, step=1, limit=1
              $region41: #{forward.111} parent=39 // loop_pre_header
                _
              $region42: #{forward.111} parent=39 // loop_header
                %s158 = sphi 0, %s162
                %p159 = scmp.ge.s32.totalorder %s158, 1
                %s163 = sphi %s148, %s148
                %s164 = sphi %s146, %s146
              $region43: #{forward.111} parent=39 // loop_header_branch
                %161 = sbr.rel (%p159) target = $region47
              $region44: #{forward.111} parent=39 // loop_body
                %v165 = vld [vmem:[%s163] sm:%s156]
                %166 = vst [vmem:[%s164] sm:%s156] %v165
                %v167 = vld [vmem:[%s163 + $0x18] sm:%s156]
                %168 = vst [vmem:[%s164 + $0x8] sm:%s156] %v167
              $region45: #{forward.111} parent=39 // loop_footer
                %s162 = sadd.s32 1, %s158
              $region46: #{forward.111} parent=39 // loop_footer_branch
                %157 = sbr.rel target = $region42
              $region47: #{forward.111} parent=39 // loop_exit
                _
            $region40: #{forward.111} parent=31 // pred_fallthru
              _
          $region32: #{forward.111} parent=27 // pred_fallthru
            _
          %185 = vnop
        $region28: #{forward.111} parent=23 // pred_fallthru
          _
      $region24: #{forward.111} parent=5 // pred_fallthru
        _
      %p186 = scmp.le.s32.totalorder 1, %s10
      %p187 = scmp.lt.s32.totalorder %s10, 4
      %p188 = pnand %p186, %p187
      %p189 = pneg %p188
      // Predicated region
      $region63: #{forward.111} parent=5 // pred_check
        _
      $region64: #{forward.111} parent=5 // pred_check_branch
        %191 = sbr.rel (%p188) target = $region66
      $region65: #{forward.111} parent=5 // pred_region
        %s192 = ssub.s32 %s10, 1
        // Predicated region
        $region67: #{forward.111} parent=65 // pred_check
          %p193 = pneg %p31
        $region68: #{forward.111} parent=65 // pred_check_branch
          %195 = sbr.rel (%p193) target = $region70
        $region69: #{forward.111} parent=65 // pred_region
          %197 = dma.done [#allocation3], 1024
        $region70: #{forward.111} parent=65 // pred_fallthru
          _
        %s198 = sand.u32 %s44, 1
        %s199 = sand.u32 %s44, 1
        %s200 = smul.addr %s199, 16
        %s201 = scalar_lea.vmem [#allocation4], %s200
        // Predicated region
        $region71: #{forward.111} parent=65 // pred_check
          %p202 = pneg %p57
        $region72: #{forward.111} parent=65 // pred_check_branch
          %204 = sbr.rel (%p202) target = $region74
        $region73: #{forward.111} parent=65 // pred_region
          _
        $region74: #{forward.111} parent=65 // pred_fallthru
          _
        %p205 = pneg %p31
        %p206 = pneg %p28
        %s207 = sand.u32 %s44, 1
        %s208 = sand.u32 %s44, 1
        %s209 = smul.addr %s208, 16
        %s210 = scalar_lea.vmem [#allocation4], %s209
        %p211 = pneg %p57
        %p212 = pneg %p54
        %p213 = pneg %p78
        %p214 = pneg %p75
        %p215 = pneg %p104
        %p216 = pneg %p101
        %s217 = sand.u32 %s91, 1
        %s218 = sand.u32 %s91, 1
        %s219 = smul.addr %s218, 64
        %s220 = scalar_lea.vmem [#allocation5], %s219
        %v221 = vld [vmem:[#allocation2] sm:$0xff]
        %v222 = vld [vmem:[#allocation2 + $0x8] sm:$0xff]
        %v223 = vld [vmem:[#allocation2 + $0x10] sm:$0xff]
        %v224 = vld [vmem:[#allocation2 + $0x18] sm:$0xff]
        %v225 = vld [vmem:[#allocation2 + $0x20] sm:$0xff]
        %v226 = vld [vmem:[#allocation2 + $0x28] sm:$0xff]
        %v227 = vld [vmem:[#allocation2 + $0x30] sm:$0xff]
        %v228 = vld [vmem:[#allocation2 + $0x38] sm:$0xff]
        %v229 = vld [vmem:[%s201] sm:$0xff]
        %v230 = vld [vmem:[%s201 + $0x8] sm:$0xff]
        %v231 = vld [vmem:[%s2] sm:$0xff]
        %v232 = vld [vmem:[%s2 + $0x8] sm:$0xff]
        %v233 = vld [vmem:[%s2 + $0x10] sm:$0xff]
        %v234 = vld [vmem:[%s2 + $0x18] sm:$0xff]
        %v235 = vld [vmem:[%s2 + $0x20] sm:$0xff]
        %v236 = vld [vmem:[%s2 + $0x28] sm:$0xff]
        %v237 = vld [vmem:[%s2 + $0x30] sm:$0xff]
        %v238 = vld [vmem:[%s2 + $0x38] sm:$0xff]
        %240 = vset.pattern.permute.xlu0 0
        %241 = vperm.xlu0 %240, %v231
        %v242 = vpop.permute.xlu0 %241
        %245 = vset.pattern.permute.xlu0 0
        %246 = vperm.xlu0 %245, %v232
        %v247 = vpop.permute.xlu0 %246
        %250 = vset.pattern.permute.xlu0 0
        %251 = vperm.xlu0 %250, %v233
        %v252 = vpop.permute.xlu0 %251
        %255 = vset.pattern.permute.xlu0 0
        %256 = vperm.xlu0 %255, %v234
        %v257 = vpop.permute.xlu0 %256
        %260 = vset.pattern.permute.xlu0 0
        %261 = vperm.xlu0 %260, %v235
        %v262 = vpop.permute.xlu0 %261
        %265 = vset.pattern.permute.xlu0 0
        %266 = vperm.xlu0 %265, %v236
        %v267 = vpop.permute.xlu0 %266
        %270 = vset.pattern.permute.xlu0 0
        %271 = vperm.xlu0 %270, %v237
        %v272 = vpop.permute.xlu0 %271
        %275 = vset.pattern.permute.xlu0 0
        %276 = vperm.xlu0 %275, %v238
        %v277 = vpop.permute.xlu0 %276
        %vm279 = vcmask 130048
        %v281 = vsel %vm279, %v221, 0
        %v284 = vsel %vm279, %v222, 0
        %v287 = vsel %vm279, %v223, 0
        %v290 = vsel %vm279, %v224, 0
        %v293 = vsel %vm279, %v225, 0
        %v296 = vsel %vm279, %v226, 0
        %v299 = vsel %vm279, %v227, 0
        %v302 = vsel %vm279, %v228, 0
        %304 = vmatpush.msra.mxu0 0.0
        %305 = vmatpush.msra.mxu0 0.0
        %306 = vmatpush.msra.mxu0 0.0
        %307 = vmatpush.msra.mxu0 0.0
        %308 = vmatpush.msra.mxu0 0.0
        %309 = vmatpush.msra.mxu0 0.0
        %310 = vmatpush.msra.mxu0 0.0
        %311 = vmatpush.msra.mxu0 0.0
        %312 = vmatpush.msra.mxu0 0.0
        %313 = vmatpush.msra.mxu0 0.0
        %314 = vmatpush.msra.mxu0 0.0
        %315 = vmatpush.msra.mxu0 0.0
        %316 = vmatpush.msra.mxu0 0.0
        %317 = vmatpush.msra.mxu0 0.0
        %318 = vmatpush.msra.mxu0 %v230
        %319 = vmatpush.msra.mxu0 %v229
        %320 = vmatmul.f32.gmra.mxu0 %v281
        %v321 = vpop.f32.mrf.mxu0
        %v322 = vadd.f32 %v242, %v321
        %323 = vmatmul.f32.gmra.mxu0 %v284
        %v324 = vpop.f32.mrf.mxu0
        %v325 = vadd.f32 %v247, %v324
        %326 = vmatmul.f32.gmra.mxu0 %v287
        %v327 = vpop.f32.mrf.mxu0
        %v328 = vadd.f32 %v252, %v327
        %329 = vmatmul.f32.gmra.mxu0 %v290
        %v330 = vpop.f32.mrf.mxu0
        %v331 = vadd.f32 %v257, %v330
        %332 = vmatmul.f32.gmra.mxu0 %v293
        %v333 = vpop.f32.mrf.mxu0
        %v334 = vadd.f32 %v262, %v333
        %335 = vmatmul.f32.gmra.mxu0 %v296
        %v336 = vpop.f32.mrf.mxu0
        %v337 = vadd.f32 %v267, %v336
        %338 = vmatmul.f32.gmra.mxu0 %v299
        %v339 = vpop.f32.mrf.mxu0
        %v340 = vadd.f32 %v272, %v339
        %341 = vmatmul.f32.gmra.mxu0 %v302
        %v342 = vpop.f32.mrf.mxu0
        %v343 = vadd.f32 %v277, %v342
        %344 = vdwg.mxu0
        %345 = vst [vmem:[%s220] sm:$0xff] %v322
        %346 = vst [vmem:[%s220 + $0x8] sm:$0xff] %v325
        %347 = vst [vmem:[%s220 + $0x10] sm:$0xff] %v328
        %348 = vst [vmem:[%s220 + $0x18] sm:$0xff] %v331
        %349 = vst [vmem:[%s220 + $0x20] sm:$0xff] %v334
        %350 = vst [vmem:[%s220 + $0x28] sm:$0xff] %v337
        %351 = vst [vmem:[%s220 + $0x30] sm:$0xff] %v340
        %352 = vst [vmem:[%s220 + $0x38] sm:$0xff] %v343
        %s353 = sand.u32 %s91, 1
        %s354 = sand.u32 %s91, 1
        %s355 = smul.addr %s354, 64
        %s356 = scalar_lea.vmem [#allocation5], %s355
        // Predicated region
        $region75: #{forward.111} parent=65 // pred_check
          %p357 = pneg %p101
        $region76: #{forward.111} parent=65 // pred_check_branch
          %359 = sbr.rel (%p357) target = $region78
        $region77: #{forward.111} parent=65 // pred_region
          %s360 = smul.addr %s15, 8
          %s361 = scalar_lea.vmem %s3, %s360
          // Predicated region
          $region79: #{forward.111} parent=77 // pred_check
            _
          $region80: #{forward.111} parent=77 // pred_check_branch
            %363 = sbr.rel (0) target = $region82
          $region81: #{forward.111} parent=77 // pred_region
            // Predicated region
            $region83: #{forward.111} parent=81 // pred_check
              _
            $region84: #{forward.111} parent=81 // pred_check_branch
              %365 = sbr.rel (0) target = $region86
            $region85: #{forward.111} parent=81 // pred_region
              // Predicated region
              $region98: #{forward.111} parent=85 // pred_check
                _
              $region99: #{forward.111} parent=85 // pred_check_branch
                %395 = sbr.rel (0) target = $region101
              $region100: #{forward.111} parent=85 // pred_region
                loop: start=0, step=1, limit=1
                $region102: #{forward.111} parent=100 // loop_pre_header
                  _
                $region103: #{forward.111} parent=100 // loop_header
                  %s397 = sphi 0, %s401
                  %p398 = scmp.ge.s32.totalorder %s397, 1
                  %s402 = sphi %s356, %s356
                  %s403 = sphi %s361, %s361
                $region104: #{forward.111} parent=100 // loop_header_branch
                  %400 = sbr.rel (%p398) target = $region108
                $region105: #{forward.111} parent=100 // loop_body
                  %v404 = vld [vmem:[%s402] sm:$0xff]
                  %405 = vst [vmem:[%s403] sm:$0xff] %v404
                  %v406 = vld [vmem:[%s402 + $0x8] sm:$0xff]
                  %407 = vst [vmem:[%s403 + $0x18] sm:$0xff] %v406
                  %v408 = vld [vmem:[%s402 + $0x10] sm:$0xff]
                  %409 = vst [vmem:[%s403 + $0x30] sm:$0xff] %v408
                  %v410 = vld [vmem:[%s402 + $0x18] sm:$0xff]
                  %411 = vst [vmem:[%s403 + $0x48] sm:$0xff] %v410
                  %v412 = vld [vmem:[%s402 + $0x20] sm:$0xff]
                  %413 = vst [vmem:[%s403 + $0x60] sm:$0xff] %v412
                  %v414 = vld [vmem:[%s402 + $0x28] sm:$0xff]
                  %415 = vst [vmem:[%s403 + $0x78] sm:$0xff] %v414
                  %v416 = vld [vmem:[%s402 + $0x30] sm:$0xff]
                  %417 = vst [vmem:[%s403 + $0x90] sm:$0xff] %v416
                  %v418 = vld [vmem:[%s402 + $0x38] sm:$0xff]
                  %419 = vst [vmem:[%s403 + $0xa8] sm:$0xff] %v418
                $region106: #{forward.111} parent=100 // loop_footer
                  %s401 = sadd.s32 1, %s397
                $region107: #{forward.111} parent=100 // loop_footer_branch
                  %396 = sbr.rel target = $region103
                $region108: #{forward.111} parent=100 // loop_exit
                  _
              $region101: #{forward.111} parent=85 // pred_fallthru
                _
              // Predicated region
              $region109: #{forward.111} parent=85 // pred_check
                _
              $region110: #{forward.111} parent=85 // pred_check_branch
                %421 = sbr.rel target = $region112
              $region111: #{forward.111} parent=85 // pred_region
                _
              $region112: #{forward.111} parent=85 // pred_fallthru
                _
            $region86: #{forward.111} parent=81 // pred_fallthru
              _
            // Predicated region
            $region87: #{forward.111} parent=81 // pred_check
              _
            $region88: #{forward.111} parent=81 // pred_check_branch
              %367 = sbr.rel target = $region90
            $region89: #{forward.111} parent=81 // pred_region
              %s369 = ssub.s32 256, 1
              loop: start=0, step=1, limit=1
              $region91: #{forward.111} parent=89 // loop_pre_header
                _
              $region92: #{forward.111} parent=89 // loop_header
                %s371 = sphi 0, %s375
                %p372 = scmp.ge.s32.totalorder %s371, 1
                %s376 = sphi %s356, %s356
                %s377 = sphi %s361, %s361
              $region93: #{forward.111} parent=89 // loop_header_branch
                %374 = sbr.rel (%p372) target = $region97
              $region94: #{forward.111} parent=89 // loop_body
                %v378 = vld [vmem:[%s376] sm:%s369]
                %379 = vst [vmem:[%s377] sm:%s369] %v378
                %v380 = vld [vmem:[%s376 + $0x8] sm:%s369]
                %381 = vst [vmem:[%s377 + $0x18] sm:%s369] %v380
                %v382 = vld [vmem:[%s376 + $0x10] sm:%s369]
                %383 = vst [vmem:[%s377 + $0x30] sm:%s369] %v382
                %v384 = vld [vmem:[%s376 + $0x18] sm:%s369]
                %385 = vst [vmem:[%s377 + $0x48] sm:%s369] %v384
                %v386 = vld [vmem:[%s376 + $0x20] sm:%s369]
                %387 = vst [vmem:[%s377 + $0x60] sm:%s369] %v386
                %v388 = vld [vmem:[%s376 + $0x28] sm:%s369]
                %389 = vst [vmem:[%s377 + $0x78] sm:%s369] %v388
                %v390 = vld [vmem:[%s376 + $0x30] sm:%s369]
                %391 = vst [vmem:[%s377 + $0x90] sm:%s369] %v390
                %v392 = vld [vmem:[%s376 + $0x38] sm:%s369]
                %393 = vst [vmem:[%s377 + $0xa8] sm:%s369] %v392
              $region95: #{forward.111} parent=89 // loop_footer
                %s375 = sadd.s32 1, %s371
              $region96: #{forward.111} parent=89 // loop_footer_branch
                %370 = sbr.rel target = $region92
              $region97: #{forward.111} parent=89 // loop_exit
                _
            $region90: #{forward.111} parent=81 // pred_fallthru
              _
          $region82: #{forward.111} parent=77 // pred_fallthru
            _
          %422 = vnop
        $region78: #{forward.111} parent=65 // pred_fallthru
          _
      $region66: #{forward.111} parent=5 // pred_fallthru
        _
      %p423 = scmp.le.s32.totalorder 2, %s10
      // Predicated region
      $region113: #{forward.111} parent=5 // pred_check
        %p424 = pneg %p423
      $region114: #{forward.111} parent=5 // pred_check_branch
        %426 = sbr.rel (%p424) target = $region116
      $region115: #{forward.111} parent=5 // pred_region
        %s427 = ssub.s32 %s10, 2
        // Predicated region
        $region117: #{forward.111} parent=115 // pred_check
          %p428 = pneg %p107
        $region118: #{forward.111} parent=115 // pred_check_branch
          %430 = sbr.rel (%p428) target = $region120
        $region119: #{forward.111} parent=115 // pred_region
          %s431 = sand.u32 %s92, 1
          %s432 = sand.u32 %s92, 1
          %s433 = smul.addr %s432, 64
          %s434 = scalar_lea.vmem [#allocation5], %s433
        $region120: #{forward.111} parent=115 // pred_fallthru
          _
      $region116: #{forward.111} parent=5 // pred_fallthru
        _
    $region6: #{forward.111} parent=1 // loop_footer
      %s14 = sadd.s32 1, %s10
    $region7: #{forward.111} parent=1 // loop_footer_branch
      %9 = sbr.rel target = $region3
    $region8: #{forward.111} parent=1 // loop_exit
      _
    %435 = vsyncpa [#allocation3], 1
    %s436 = scalar_lea.sflag [#allocation3], 1
    %437 = vsyncpa %s436, 1

// kernel: forward.60
$region0: #{forward.60}
  #allocation0 [shape = 'u32[]', space=smem, size = 0x4, offset = 0x4, fixed_abs, tag = 'smem constant byte address 0x4 - core index']
  #allocation1 [shape = 'u32[72,128]{1,0:T(1,128)}', space=vmem, size = 0x9000, scoped, tag = 'internal scratch']
  %s0 = inlined_call_operand.vmem [shape: f32[8,32], index: 0, kind: input, shape index: {}]
  %s1 = inlined_call_operand.vmem [shape: f32[32,128], index: 1, kind: input, shape index: {}]
  %s2 = inlined_call_operand.vmem [shape: f32[8,2], index: 2, kind: input, shape index: {}]
  %s3 = inlined_call_operand.vmem [shape: f32[8,128], index: 3, kind: output, shape index: {}]
  %s4 = sld [smem:[#allocation0]]
  $region22: #{forward.60} parent=0
    _
  %s6 = ssub.s32 1, %s4
  %s7 = scalar_select 0, %s6, %s4
  // Predicated region
  $region2: #{forward.60} parent=0 // pred_check
    _
  $region3: #{forward.60} parent=0 // pred_check_branch
    %9 = sbr.rel (0) target = $region5
  $region4: #{forward.60} parent=0 // pred_region
    _
  $region5: #{forward.60} parent=0 // pred_fallthru
    _
  // Predicated region
  $region6: #{forward.60} parent=0 // pred_check
    _
  $region7: #{forward.60} parent=0 // pred_check_branch
    %11 = sbr.rel (0) target = $region9
  $region8: #{forward.60} parent=0 // pred_region
    _
  $region9: #{forward.60} parent=0 // pred_fallthru
    _
  // Predicated region
  $region10: #{forward.60} parent=0 // pred_check
    _
  $region11: #{forward.60} parent=0 // pred_check_branch
    %13 = sbr.rel (0) target = $region13
  $region12: #{forward.60} parent=0 // pred_region
    _
  $region13: #{forward.60} parent=0 // pred_fallthru
    _
  %v14 = vld [vmem:[%s0] sm:$0xff]
  %v15 = vld [vmem:[%s1] sm:$0xff]
  %v16 = vld [vmem:[%s1 + $0x8] sm:$0xff]
  %v17 = vld [vmem:[%s1 + $0x10] sm:$0xff]
  %v18 = vld [vmem:[%s1 + $0x18] sm:$0xff]
  %v19 = vld [vmem:[%s2] sm:$0xff]
  %21 = vset.pattern.permute.xlu0 0
  %22 = vperm.xlu0 %21, %v19
  %v23 = vpop.permute.xlu0 %22
  %vm25 = vcmask 261120
  %v27 = vsel %vm25, %v14, 0
  %29 = vmatpush.msra.mxu0 0.0
  %30 = vmatpush.msra.mxu0 0.0
  %31 = vmatpush.msra.mxu0 0.0
  %32 = vmatpush.msra.mxu0 0.0
  %33 = vmatpush.msra.mxu0 0.0
  %34 = vmatpush.msra.mxu0 0.0
  %35 = vmatpush.msra.mxu0 0.0
  %36 = vmatpush.msra.mxu0 0.0
  %37 = vmatpush.msra.mxu0 0.0
  %38 = vmatpush.msra.mxu0 0.0
  %39 = vmatpush.msra.mxu0 0.0
  %40 = vmatpush.msra.mxu0 0.0
  %41 = vmatpush.msra.mxu0 %v18
  %42 = vmatpush.msra.mxu0 %v17
  %43 = vmatpush.msra.mxu0 %v16
  %44 = vmatpush.msra.mxu0 %v15
  %45 = vmatmul.f32.gmra.mxu0 %v27
  %v46 = vpop.f32.mrf.mxu0
  %v47 = vadd.f32 %v23, %v46
  %48 = vdwg.mxu0
  %vm49 = vcmp.ge.f32.partialorder %v47, 0.0
  %50 = vset.pattern.permute.xlu0 1
  %51 = vperm.xlu0 %50, %v19
  %v52 = vpop.permute.xlu0 %51
  %v54 = vmul.f32 %v52, %v47
  %v55 = vsel %vm49, %v47, %v54
  %56 = vst [vmem:[%s3] sm:$0xff] %v55
  // Predicated region
  $region14: #{forward.60} parent=0 // pred_check
    _
  $region15: #{forward.60} parent=0 // pred_check_branch
    %58 = sbr.rel (0) target = $region17
  $region16: #{forward.60} parent=0 // pred_region
    _
  $region17: #{forward.60} parent=0 // pred_fallthru
    _
  // Predicated region
  $region18: #{forward.60} parent=0 // pred_check
    _
  $region19: #{forward.60} parent=0 // pred_check_branch
    %60 = sbr.rel (0) target = $region21
  $region20: #{forward.60} parent=0 // pred_region
    _
  $region21: #{forward.60} parent=0 // pred_fallthru
    _

// kernel: squeeze.15
$region0: #{squeeze.15}
  %s0 = inlined_call_operand.vmem [shape: f32[2,3,8,8], index: 0, kind: input, shape index: {}]
  %s1 = inlined_call_operand.vmem [shape: f32[384], index: 1, kind: output, shape index: {}]
  $region1: #{squeeze.15} parent=0
    #allocation0 [shape = 'u8[4096]{0}', space=vmem, size = 0x1000, scoped, tag = 'scoped mem for output reshape']
    %s2 = smov 3
    %v3 = vld [vmem:[%s0] ss:$16 sm:%s2]
    %s4 = scalar_lea.vmem %s0, 30
    %v5 = vld [vmem:[%s4] sm:$0x4]
    %vm6 = vcmask 1042434
    %v7 = vsel %vm6, %v5, %v3
    %vm8 = vcmask 64512
    %9 = vst.msk [vmem:[#allocation0] sm:$0x7] %vm8, %v7
    %s10 = scalar_lea.vmem %s0, 15
    %s11 = smov 3
    %v12 = vld [vmem:[%s10] ss:$16 sm:%s11]
    %s13 = scalar_lea.vmem %s0, 45
    %v14 = vld [vmem:[%s13] sm:$0x4]
    %vm15 = vcmask 1042434
    %v16 = vsel %vm15, %v14, %v12
    %17 = vrot.lane.b32.xlu0 %v16, 120
    %v18 = vpop.permute.xlu0 %17
    %vm19 = vcmask 1048512
    %20 = vst.msk [vmem:[#allocation0] sm:$0x7] %vm19, %v18
    %s21 = scalar_lea.vmem %s0, 14
    %s22 = smov 3
    %v23 = vld [vmem:[%s21] ss:$16 sm:%s22]
    %s24 = scalar_lea.vmem %s0, 44
    %v25 = vld [vmem:[%s24] sm:$0x4]
    %vm26 = vcmask 1042434
    %v27 = vsel %vm26, %v25, %v23
    %28 = vrot.lane.b32.xlu0 %v27, 112
    %v29 = vpop.permute.xlu0 %28
    %vm30 = vcmask 982912
    %31 = vst.msk [vmem:[#allocation0] sm:$0x7] %vm30, %v29
    %s32 = scalar_lea.vmem %s0, 13
    %s33 = smov 3
    %v34 = vld [vmem:[%s32] ss:$16 sm:%s33]
    %s35 = scalar_lea.vmem %s0, 43
    %v36 = vld [vmem:[%s35] sm:$0x4]
    %vm37 = vcmask 1042434
    %v38 = vsel %vm37, %v36, %v34
    %39 = vrot.lane.b32.xlu0 %v38, 104
    %v40 = vpop.permute.xlu0 %39
    %vm41 = vcmask 917312
    %42 = vst.msk [vmem:[#allocation0] sm:$0x7] %vm41, %v40
    %s43 = scalar_lea.vmem %s0, 12
    %s44 = smov 3
    %v45 = vld [vmem:[%s43] ss:$16 sm:%s44]
    %s46 = scalar_lea.vmem %s0, 42
    %v47 = vld [vmem:[%s46] sm:$0x4]
    %vm48 = vcmask 1042434
    %v49 = vsel %vm48, %v47, %v45
    %50 = vrot.lane.b32.xlu0 %v49, 96
    %v51 = vpop.permute.xlu0 %50
    %vm52 = vcmask 851712
    %53 = vst.msk [vmem:[#allocation0] sm:$0x7] %vm52, %v51
    %s54 = scalar_lea.vmem %s0, 11
    %s55 = smov 3
    %v56 = vld [vmem:[%s54] ss:$16 sm:%s55]
    %s57 = scalar_lea.vmem %s0, 41
    %v58 = vld [vmem:[%s57] sm:$0x4]
    %vm59 = vcmask 1042434
    %v60 = vsel %vm59, %v58, %v56
    %61 = vrot.lane.b32.xlu0 %v60, 88
    %v62 = vpop.permute.xlu0 %61
    %vm63 = vcmask 786112
    %64 = vst.msk [vmem:[#allocation0] sm:$0x7] %vm63, %v62
    %s65 = scalar_lea.vmem %s0, 10
    %s66 = smov 3
    %v67 = vld [vmem:[%s65] ss:$16 sm:%s66]
    %s68 = scalar_lea.vmem %s0, 40
    %v69 = vld [vmem:[%s68] sm:$0x4]
    %vm70 = vcmask 1042434
    %v71 = vsel %vm70, %v69, %v67
    %72 = vrot.lane.b32.xlu0 %v71, 80
    %v73 = vpop.permute.xlu0 %72
    %vm74 = vcmask 720512
    %75 = vst.msk [vmem:[#allocation0] sm:$0x7] %vm74, %v73
    %s76 = scalar_lea.vmem %s0, 9
    %s77 = smov 3
    %v78 = vld [vmem:[%s76] ss:$16 sm:%s77]
    %s79 = scalar_lea.vmem %s0, 39
    %v80 = vld [vmem:[%s79] sm:$0x4]
    %vm81 = vcmask 1042434
    %v82 = vsel %vm81, %v80, %v78
    %83 = vrot.lane.b32.xlu0 %v82, 72
    %v84 = vpop.permute.xlu0 %83
    %vm85 = vcmask 654912
    %86 = vst.msk [vmem:[#allocation0] sm:$0x7] %vm85, %v84
    %s87 = scalar_lea.vmem %s0, 8
    %s88 = smov 3
    %v89 = vld [vmem:[%s87] ss:$16 sm:%s88]
    %s90 = scalar_lea.vmem %s0, 38
    %v91 = vld [vmem:[%s90] sm:$0x4]
    %vm92 = vcmask 1042434
    %v93 = vsel %vm92, %v91, %v89
    %94 = vrot.lane.b32.xlu0 %v93, 64
    %v95 = vpop.permute.xlu0 %94
    %vm96 = vcmask 589312
    %97 = vst.msk [vmem:[#allocation0] sm:$0x7] %vm96, %v95
    %s98 = scalar_lea.vmem %s0, 7
    %s99 = smov 3
    %v100 = vld [vmem:[%s98] ss:$16 sm:%s99]
    %s101 = scalar_lea.vmem %s0, 37
    %v102 = vld [vmem:[%s101] sm:$0x4]
    %vm103 = vcmask 1042434
    %v104 = vsel %vm103, %v102, %v100
    %105 = vrot.lane.b32.xlu0 %v104, 56
    %v106 = vpop.permute.xlu0 %105
    %vm107 = vcmask 523712
    %108 = vst.msk [vmem:[#allocation0] sm:$0x7] %vm107, %v106
    %s109 = scalar_lea.vmem %s0, 6
    %s110 = smov 3
    %v111 = vld [vmem:[%s109] ss:$16 sm:%s110]
    %s112 = scalar_lea.vmem %s0, 36
    %v113 = vld [vmem:[%s112] sm:$0x4]
    %vm114 = vcmask 1042434
    %v115 = vsel %vm114, %v113, %v111
    %116 = vrot.lane.b32.xlu0 %v115, 48
    %v117 = vpop.permute.xlu0 %116
    %vm118 = vcmask 458112
    %119 = vst.msk [vmem:[#allocation0] sm:$0x7] %vm118, %v117
    %s120 = scalar_lea.vmem %s0, 5
    %s121 = smov 3
    %v122 = vld [vmem:[%s120] ss:$16 sm:%s121]
    %s123 = scalar_lea.vmem %s0, 35
    %v124 = vld [vmem:[%s123] sm:$0x4]
    %vm125 = vcmask 1042434
    %v126 = vsel %vm125, %v124, %v122
    %127 = vrot.lane.b32.xlu0 %v126, 40
    %v128 = vpop.permute.xlu0 %127
    %vm129 = vcmask 392512
    %130 = vst.msk [vmem:[#allocation0] sm:$0x7] %vm129, %v128
    %s131 = scalar_lea.vmem %s0, 4
    %s132 = smov 3
    %v133 = vld [vmem:[%s131] ss:$16 sm:%s132]
    %s134 = scalar_lea.vmem %s0, 34
    %v135 = vld [vmem:[%s134] sm:$0x4]
    %vm136 = vcmask 1042434
    %v137 = vsel %vm136, %v135, %v133
    %138 = vrot.lane.b32.xlu0 %v137, 32
    %v139 = vpop.permute.xlu0 %138
    %vm140 = vcmask 326912
    %141 = vst.msk [vmem:[#allocation0] sm:$0x7] %vm140, %v139
    %s142 = scalar_lea.vmem %s0, 3
    %s143 = smov 3
    %v144 = vld [vmem:[%s142] ss:$16 sm:%s143]
    %s145 = scalar_lea.vmem %s0, 33
    %v146 = vld [vmem:[%s145] sm:$0x4]
    %vm147 = vcmask 1042434
    %v148 = vsel %vm147, %v146, %v144
    %149 = vrot.lane.b32.xlu0 %v148, 24
    %v150 = vpop.permute.xlu0 %149
    %vm151 = vcmask 261312
    %152 = vst.msk [vmem:[#allocation0] sm:$0x7] %vm151, %v150
    %s153 = scalar_lea.vmem %s0, 2
    %s154 = smov 3
    %v155 = vld [vmem:[%s153] ss:$16 sm:%s154]
    %s156 = scalar_lea.vmem %s0, 32
    %v157 = vld [vmem:[%s156] sm:$0x4]
    %vm158 = vcmask 1042434
    %v159 = vsel %vm158, %v157, %v155
    %160 = vrot.lane.b32.xlu0 %v159, 16
    %v161 = vpop.permute.xlu0 %160
    %vm162 = vcmask 195712
    %163 = vst.msk [vmem:[#allocation0] sm:$0x7] %vm162, %v161
    %s164 = scalar_lea.vmem %s0, 1
    %s165 = smov 3
    %v166 = vld [vmem:[%s164] ss:$16 sm:%s165]
    %s167 = scalar_lea.vmem %s0, 31
    %v168 = vld [vmem:[%s167] sm:$0x4]
    %vm169 = vcmask 1042434
    %v170 = vsel %vm169, %v168, %v166
    %171 = vrot.lane.b32.xlu0 %v170, 8
    %v172 = vpop.permute.xlu0 %171
    %vm173 = vcmask 130112
    %174 = vst.msk [vmem:[#allocation0] sm:$0x7] %vm173, %v172
    %s176 = ssub.s32 16, 1
    %v177 = vld [vmem:[#allocation0] sm:%s176]
    %s179 = ssub.s32 16, 1
    %180 = vst [vmem:[%s1] sm:%s179] %v177

// kernel: forward.61
$region0: #{forward.61}
  #allocation0 [shape = 'u32[]', space=smem, size = 0x4, offset = 0x4, fixed_abs, tag = 'smem constant byte address 0x4 - core index']
  #allocation1 [shape = 'u32[72,128]{1,0:T(1,128)}', space=vmem, size = 0x9000, scoped, tag = 'internal scratch']
  %s0 = inlined_call_operand.vmem [shape: f32[8,32], index: 0, kind: input, shape index: {}]
  %s1 = inlined_call_operand.vmem [shape: f32[32,128], index: 1, kind: input, shape index: {}]
  %s2 = inlined_call_operand.vmem [shape: f32[8,2], index: 2, kind: input, shape index: {}]
  %s3 = inlined_call_operand.vmem [shape: f32[8,128], index: 3, kind: output, shape index: {}]
  %s4 = sld [smem:[#allocation0]]
  $region22: #{forward.61} parent=0
    _
  %s6 = ssub.s32 1, %s4
  %s7 = scalar_select 0, %s6, %s4
  // Predicated region
  $region2: #{forward.61} parent=0 // pred_check
    _
  $region3: #{forward.61} parent=0 // pred_check_branch
    %9 = sbr.rel (0) target = $region5
  $region4: #{forward.61} parent=0 // pred_region
    _
  $region5: #{forward.61} parent=0 // pred_fallthru
    _
  // Predicated region
  $region6: #{forward.61} parent=0 // pred_check
    _
  $region7: #{forward.61} parent=0 // pred_check_branch
    %11 = sbr.rel (0) target = $region9
  $region8: #{forward.61} parent=0 // pred_region
    _
  $region9: #{forward.61} parent=0 // pred_fallthru
    _
  // Predicated region
  $region10: #{forward.61} parent=0 // pred_check
    _
  $region11: #{forward.61} parent=0 // pred_check_branch
    %13 = sbr.rel (0) target = $region13
  $region12: #{forward.61} parent=0 // pred_region
    _
  $region13: #{forward.61} parent=0 // pred_fallthru
    _
  %v14 = vld [vmem:[%s0] sm:$0xff]
  %v15 = vld [vmem:[%s1] sm:$0xff]
  %v16 = vld [vmem:[%s1 + $0x8] sm:$0xff]
  %v17 = vld [vmem:[%s1 + $0x10] sm:$0xff]
  %v18 = vld [vmem:[%s1 + $0x18] sm:$0xff]
  %v19 = vld [vmem:[%s2] sm:$0xff]
  %21 = vset.pattern.permute.xlu0 0
  %22 = vperm.xlu0 %21, %v19
  %v23 = vpop.permute.xlu0 %22
  %vm25 = vcmask 261120
  %v27 = vsel %vm25, %v14, 0
  %29 = vmatpush.msra.mxu0 0.0
  %30 = vmatpush.msra.mxu0 0.0
  %31 = vmatpush.msra.mxu0 0.0
  %32 = vmatpush.msra.mxu0 0.0
  %33 = vmatpush.msra.mxu0 0.0
  %34 = vmatpush.msra.mxu0 0.0
  %35 = vmatpush.msra.mxu0 0.0
  %36 = vmatpush.msra.mxu0 0.0
  %37 = vmatpush.msra.mxu0 0.0
  %38 = vmatpush.msra.mxu0 0.0
  %39 = vmatpush.msra.mxu0 0.0
  %40 = vmatpush.msra.mxu0 0.0
  %41 = vmatpush.msra.mxu0 %v18
  %42 = vmatpush.msra.mxu0 %v17
  %43 = vmatpush.msra.mxu0 %v16
  %44 = vmatpush.msra.mxu0 %v15
  %45 = vmatmul.f32.gmra.mxu0 %v27
  %v46 = vpop.f32.mrf.mxu0
  %v47 = vadd.f32 %v23, %v46
  %48 = vdwg.mxu0
  %49 = vst [vmem:[%s3] sm:$0xff] %v47
  // Predicated region
  $region14: #{forward.61} parent=0 // pred_check
    _
  $region15: #{forward.61} parent=0 // pred_check_branch
    %51 = sbr.rel (0) target = $region17
  $region16: #{forward.61} parent=0 // pred_region
    _
  $region17: #{forward.61} parent=0 // pred_fallthru
    _
  // Predicated region
  $region18: #{forward.61} parent=0 // pred_check
    _
  $region19: #{forward.61} parent=0 // pred_check_branch
    %53 = sbr.rel (0) target = $region21
  $region20: #{forward.61} parent=0 // pred_region
    _
  $region21: #{forward.61} parent=0 // pred_fallthru
    _

// kernel: forward.59
$region0: #{forward.59}
  #allocation0 [shape = 'u32[]', space=smem, size = 0x4, offset = 0x4, fixed_abs, tag = 'smem constant byte address 0x4 - core index']
  #allocation1 [shape = 'u32[72,128]{1,0:T(1,128)}', space=vmem, size = 0x9000, scoped, tag = 'internal scratch']
  %s0 = inlined_call_operand.vmem [shape: f32[8,128], index: 0, kind: input, shape index: {}]
  %s1 = inlined_call_operand.vmem [shape: f32[8,128], index: 1, kind: input, shape index: {}]
  %s2 = inlined_call_operand.vmem [shape: f32[8,128], index: 2, kind: input, shape index: {}]
  %s3 = inlined_call_operand.vmem [shape: f32[8,128], index: 3, kind: input, shape index: {}]
  %s4 = inlined_call_operand.vmem [shape: f32[8,128], index: 4, kind: output, shape index: {0}]
  %s5 = inlined_call_operand.vmem [shape: f32[8,128], index: 5, kind: output, shape index: {1}]
  %s6 = inlined_call_operand.vmem [shape: f32[8,128], index: 6, kind: output, shape index: {2}]
  %s7 = inlined_call_operand.vmem [shape: f32[8,128], index: 7, kind: output, shape index: {3}]
  %8 = xla_tuple %s4, %s5, %s6, %s7
  %s9 = sld [smem:[#allocation0]]
  $region50: #{forward.59} parent=0
    _
  %s11 = ssub.s32 1, %s9
  %s12 = scalar_select 0, %s11, %s9
  // Predicated region
  $region2: #{forward.59} parent=0 // pred_check
    _
  $region3: #{forward.59} parent=0 // pred_check_branch
    %14 = sbr.rel (0) target = $region5
  $region4: #{forward.59} parent=0 // pred_region
    _
  $region5: #{forward.59} parent=0 // pred_fallthru
    _
  // Predicated region
  $region6: #{forward.59} parent=0 // pred_check
    _
  $region7: #{forward.59} parent=0 // pred_check_branch
    %16 = sbr.rel (0) target = $region9
  $region8: #{forward.59} parent=0 // pred_region
    _
  $region9: #{forward.59} parent=0 // pred_fallthru
    _
  // Predicated region
  $region10: #{forward.59} parent=0 // pred_check
    _
  $region11: #{forward.59} parent=0 // pred_check_branch
    %18 = sbr.rel (0) target = $region13
  $region12: #{forward.59} parent=0 // pred_region
    _
  $region13: #{forward.59} parent=0 // pred_fallthru
    _
  // Predicated region
  $region14: #{forward.59} parent=0 // pred_check
    _
  $region15: #{forward.59} parent=0 // pred_check_branch
    %20 = sbr.rel (0) target = $region17
  $region16: #{forward.59} parent=0 // pred_region
    _
  $region17: #{forward.59} parent=0 // pred_fallthru
    _
  %v21 = vld [vmem:[%s0] sm:$0xff]
  %v22 = vld [vmem:[%s1] sm:$0xff]
  %v23 = vld [vmem:[%s2] sm:$0xff]
  %v24 = vld [vmem:[%s3] sm:$0xff]
  %v25 = vadd.f32 %v21, %v22
  %v26 = vadd.f32 %v25, %v23
  %v27 = vadd.f32 %v26, %v24
  %v28 = vmul.f32 %v27, 0.25
  %29 = vst [vmem:[%s4] sm:$0xff] %v28
  %v30 = vsub.f32 %v21, %v22
  %v31 = vadd.f32 %v30, %v23
  %v32 = vsub.f32 %v31, %v24
  %v33 = vmul.f32 %v32, 0.25
  %34 = vst [vmem:[%s5] sm:$0xff] %v33
  %v35 = vsub.f32 %v25, %v23
  %v36 = vsub.f32 %v35, %v24
  %v37 = vmul.f32 %v36, 0.25
  %38 = vst [vmem:[%s6] sm:$0xff] %v37
  %v39 = vsub.f32 %v30, %v23
  %v40 = vadd.f32 %v39, %v24
  %v41 = vmul.f32 %v40, 0.25
  %42 = vst [vmem:[%s7] sm:$0xff] %v41
  // Predicated region
  $region18: #{forward.59} parent=0 // pred_check
    _
  $region19: #{forward.59} parent=0 // pred_check_branch
    %44 = sbr.rel (0) target = $region21
  $region20: #{forward.59} parent=0 // pred_region
    _
  $region21: #{forward.59} parent=0 // pred_fallthru
    _
  // Predicated region
  $region22: #{forward.59} parent=0 // pred_check
    _
  $region23: #{forward.59} parent=0 // pred_check_branch
    %46 = sbr.rel (0) target = $region25
  $region24: #{forward.59} parent=0 // pred_region
    _
  $region25: #{forward.59} parent=0 // pred_fallthru
    _
  // Predicated region
  $region26: #{forward.59} parent=0 // pred_check
    _
  $region27: #{forward.59} parent=0 // pred_check_branch
    %48 = sbr.rel (0) target = $region29
  $region28: #{forward.59} parent=0 // pred_region
    _
  $region29: #{forward.59} parent=0 // pred_fallthru
    _
  // Predicated region
  $region30: #{forward.59} parent=0 // pred_check
    _
  $region31: #{forward.59} parent=0 // pred_check_branch
    %50 = sbr.rel (0) target = $region33
  $region32: #{forward.59} parent=0 // pred_region
    _
  $region33: #{forward.59} parent=0 // pred_fallthru
    _
  // Predicated region
  $region34: #{forward.59} parent=0 // pred_check
    _
  $region35: #{forward.59} parent=0 // pred_check_branch
    %52 = sbr.rel (0) target = $region37
  $region36: #{forward.59} parent=0 // pred_region
    _
  $region37: #{forward.59} parent=0 // pred_fallthru
    _
  // Predicated region
  $region38: #{forward.59} parent=0 // pred_check
    _
  $region39: #{forward.59} parent=0 // pred_check_branch
    %54 = sbr.rel (0) target = $region41
  $region40: #{forward.59} parent=0 // pred_region
    _
  $region41: #{forward.59} parent=0 // pred_fallthru
    _
  // Predicated region
  $region42: #{forward.59} parent=0 // pred_check
    _
  $region43: #{forward.59} parent=0 // pred_check_branch
    %56 = sbr.rel (0) target = $region45
  $region44: #{forward.59} parent=0 // pred_region
    _
  $region45: #{forward.59} parent=0 // pred_fallthru
    _
  // Predicated region
  $region46: #{forward.59} parent=0 // pred_check
    _
  $region47: #{forward.59} parent=0 // pred_check_branch
    %58 = sbr.rel (0) target = $region49
  $region48: #{forward.59} parent=0 // pred_region
    _
  $region49: #{forward.59} parent=0 // pred_fallthru
    _

// kernel: forward.74
$region0: #{forward.74}
  #allocation0 [shape = 'u32[]', space=smem, size = 0x4, offset = 0x4, fixed_abs, tag = 'smem constant byte address 0x4 - core index']
  #allocation1 [shape = 'u32[72,128]{1,0:T(1,128)}', space=vmem, size = 0x9000, scoped, tag = 'internal scratch']
  %s0 = inlined_call_operand.vmem [shape: f32[8,8], index: 0, kind: input, shape index: {}]
  %s1 = inlined_call_operand.vmem [shape: f32[8,128], index: 1, kind: input, shape index: {}]
  %s2 = inlined_call_operand.vmem [shape: f32[8,2], index: 2, kind: input, shape index: {}]
  %s3 = inlined_call_operand.vmem [shape: f32[8,128], index: 3, kind: output, shape index: {}]
  %s4 = sld [smem:[#allocation0]]
  $region22: #{forward.74} parent=0
    _
  %s6 = ssub.s32 1, %s4
  %s7 = scalar_select 0, %s6, %s4
  // Predicated region
  $region2: #{forward.74} parent=0 // pred_check
    _
  $region3: #{forward.74} parent=0 // pred_check_branch
    %9 = sbr.rel (0) target = $region5
  $region4: #{forward.74} parent=0 // pred_region
    _
  $region5: #{forward.74} parent=0 // pred_fallthru
    _
  // Predicated region
  $region6: #{forward.74} parent=0 // pred_check
    _
  $region7: #{forward.74} parent=0 // pred_check_branch
    %11 = sbr.rel (0) target = $region9
  $region8: #{forward.74} parent=0 // pred_region
    _
  $region9: #{forward.74} parent=0 // pred_fallthru
    _
  // Predicated region
  $region10: #{forward.74} parent=0 // pred_check
    _
  $region11: #{forward.74} parent=0 // pred_check_branch
    %13 = sbr.rel (0) target = $region13
  $region12: #{forward.74} parent=0 // pred_region
    _
  $region13: #{forward.74} parent=0 // pred_fallthru
    _
  %v14 = vld [vmem:[%s0] sm:$0xff]
  %v15 = vld [vmem:[%s1] sm:$0xff]
  %v16 = vld [vmem:[%s2] sm:$0xff]
  %18 = vset.pattern.permute.xlu0 0
  %19 = vperm.xlu0 %18, %v16
  %v20 = vpop.permute.xlu0 %19
  %vm22 = vcmask 64512
  %v24 = vsel %vm22, %v14, 0
  %26 = vmatpush.msra.mxu0 0.0
  %27 = vmatpush.msra.mxu0 0.0
  %28 = vmatpush.msra.mxu0 0.0
  %29 = vmatpush.msra.mxu0 0.0
  %30 = vmatpush.msra.mxu0 0.0
  %31 = vmatpush.msra.mxu0 0.0
  %32 = vmatpush.msra.mxu0 0.0
  %33 = vmatpush.msra.mxu0 0.0
  %34 = vmatpush.msra.mxu0 0.0
  %35 = vmatpush.msra.mxu0 0.0
  %36 = vmatpush.msra.mxu0 0.0
  %37 = vmatpush.msra.mxu0 0.0
  %38 = vmatpush.msra.mxu0 0.0
  %39 = vmatpush.msra.mxu0 0.0
  %40 = vmatpush.msra.mxu0 0.0
  %41 = vmatpush.msra.mxu0 %v15
  %42 = vmatmul.f32.gmra.mxu0 %v24
  %v43 = vpop.f32.mrf.mxu0
  %v44 = vadd.f32 %v20, %v43
  %45 = vdwg.mxu0
  %46 = vst [vmem:[%s3] sm:$0xff] %v44
  // Predicated region
  $region14: #{forward.74} parent=0 // pred_check
    _
  $region15: #{forward.74} parent=0 // pred_check_branch
    %48 = sbr.rel (0) target = $region17
  $region16: #{forward.74} parent=0 // pred_region
    _
  $region17: #{forward.74} parent=0 // pred_fallthru
    _
  // Predicated region
  $region18: #{forward.74} parent=0 // pred_check
    _
  $region19: #{forward.74} parent=0 // pred_check_branch
    %50 = sbr.rel (0) target = $region21
  $region20: #{forward.74} parent=0 // pred_region
    _
  $region21: #{forward.74} parent=0 // pred_fallthru
    _

// kernel: forward.76
$region0: #{forward.76}
  #allocation0 [shape = 'u32[]', space=smem, size = 0x4, offset = 0x4, fixed_abs, tag = 'smem constant byte address 0x4 - core index']
  #allocation1 [shape = 'u32[72,128]{1,0:T(1,128)}', space=vmem, size = 0x9000, scoped, tag = 'internal scratch']
  %s0 = inlined_call_operand.vmem [shape: f32[8,16], index: 0, kind: input, shape index: {}]
  %s1 = inlined_call_operand.vmem [shape: f32[16,128], index: 1, kind: input, shape index: {}]
  %s2 = inlined_call_operand.vmem [shape: f32[8,2], index: 2, kind: input, shape index: {}]
  %s3 = inlined_call_operand.vmem [shape: f32[8,128], index: 3, kind: output, shape index: {}]
  %s4 = sld [smem:[#allocation0]]
  $region22: #{forward.76} parent=0
    _
  %s6 = ssub.s32 1, %s4
  %s7 = scalar_select 0, %s6, %s4
  // Predicated region
  $region2: #{forward.76} parent=0 // pred_check
    _
  $region3: #{forward.76} parent=0 // pred_check_branch
    %9 = sbr.rel (0) target = $region5
  $region4: #{forward.76} parent=0 // pred_region
    _
  $region5: #{forward.76} parent=0 // pred_fallthru
    _
  // Predicated region
  $region6: #{forward.76} parent=0 // pred_check
    _
  $region7: #{forward.76} parent=0 // pred_check_branch
    %11 = sbr.rel (0) target = $region9
  $region8: #{forward.76} parent=0 // pred_region
    _
  $region9: #{forward.76} parent=0 // pred_fallthru
    _
  // Predicated region
  $region10: #{forward.76} parent=0 // pred_check
    _
  $region11: #{forward.76} parent=0 // pred_check_branch
    %13 = sbr.rel (0) target = $region13
  $region12: #{forward.76} parent=0 // pred_region
    _
  $region13: #{forward.76} parent=0 // pred_fallthru
    _
  %v14 = vld [vmem:[%s0] sm:$0xff]
  %v15 = vld [vmem:[%s1] sm:$0xff]
  %v16 = vld [vmem:[%s1 + $0x8] sm:$0xff]
  %v17 = vld [vmem:[%s2] sm:$0xff]
  %19 = vset.pattern.permute.xlu0 0
  %20 = vperm.xlu0 %19, %v17
  %v21 = vpop.permute.xlu0 %20
  %vm23 = vcmask 130048
  %v25 = vsel %vm23, %v14, 0
  %27 = vmatpush.msra.mxu0 0.0
  %28 = vmatpush.msra.mxu0 0.0
  %29 = vmatpush.msra.mxu0 0.0
  %30 = vmatpush.msra.mxu0 0.0
  %31 = vmatpush.msra.mxu0 0.0
  %32 = vmatpush.msra.mxu0 0.0
  %33 = vmatpush.msra.mxu0 0.0
  %34 = vmatpush.msra.mxu0 0.0
  %35 = vmatpush.msra.mxu0 0.0
  %36 = vmatpush.msra.mxu0 0.0
  %37 = vmatpush.msra.mxu0 0.0
  %38 = vmatpush.msra.mxu0 0.0
  %39 = vmatpush.msra.mxu0 0.0
  %40 = vmatpush.msra.mxu0 0.0
  %41 = vmatpush.msra.mxu0 %v16
  %42 = vmatpush.msra.mxu0 %v15
  %43 = vmatmul.f32.gmra.mxu0 %v25
  %v44 = vpop.f32.mrf.mxu0
  %v45 = vadd.f32 %v21, %v44
  %46 = vdwg.mxu0
  %47 = vst [vmem:[%s3] sm:$0xff] %v45
  // Predicated region
  $region14: #{forward.76} parent=0 // pred_check
    _
  $region15: #{forward.76} parent=0 // pred_check_branch
    %49 = sbr.rel (0) target = $region17
  $region16: #{forward.76} parent=0 // pred_region
    _
  $region17: #{forward.76} parent=0 // pred_fallthru
    _
  // Predicated region
  $region18: #{forward.76} parent=0 // pred_check
    _
  $region19: #{forward.76} parent=0 // pred_check_branch
    %51 = sbr.rel (0) target = $region21
  $region20: #{forward.76} parent=0 // pred_region
    _
  $region21: #{forward.76} parent=0 // pred_fallthru
    _

// kernel: forward.79
$region0: #{forward.79}
  #allocation0 [shape = 'u32[]', space=smem, size = 0x4, offset = 0x4, fixed_abs, tag = 'smem constant byte address 0x4 - core index']
  #allocation1 [shape = 'u32[72,128]{1,0:T(1,128)}', space=vmem, size = 0x9000, scoped, tag = 'internal scratch']
  %s0 = inlined_call_operand.vmem [shape: f32[16,64], index: 0, kind: input, shape index: {}]
  %s1 = inlined_call_operand.vmem [shape: f32[64,128], index: 1, kind: input, shape index: {}]
  %s2 = inlined_call_operand.vmem [shape: f32[16,2], index: 2, kind: input, shape index: {}]
  %s3 = inlined_call_operand.vmem [shape: f32[16,128], index: 3, kind: output, shape index: {}]
  %s4 = sld [smem:[#allocation0]]
  $region22: #{forward.79} parent=0
    _
  %s6 = ssub.s32 1, %s4
  %s7 = scalar_select 0, %s6, %s4
  // Predicated region
  $region2: #{forward.79} parent=0 // pred_check
    _
  $region3: #{forward.79} parent=0 // pred_check_branch
    %9 = sbr.rel (0) target = $region5
  $region4: #{forward.79} parent=0 // pred_region
    _
  $region5: #{forward.79} parent=0 // pred_fallthru
    _
  // Predicated region
  $region6: #{forward.79} parent=0 // pred_check
    _
  $region7: #{forward.79} parent=0 // pred_check_branch
    %11 = sbr.rel (0) target = $region9
  $region8: #{forward.79} parent=0 // pred_region
    _
  $region9: #{forward.79} parent=0 // pred_fallthru
    _
  // Predicated region
  $region10: #{forward.79} parent=0 // pred_check
    _
  $region11: #{forward.79} parent=0 // pred_check_branch
    %13 = sbr.rel (0) target = $region13
  $region12: #{forward.79} parent=0 // pred_region
    _
  $region13: #{forward.79} parent=0 // pred_fallthru
    _
  %v14 = vld [vmem:[%s0] sm:$0xff]
  %v15 = vld [vmem:[%s0 + $0x8] sm:$0xff]
  %v16 = vld [vmem:[%s1] sm:$0xff]
  %v17 = vld [vmem:[%s1 + $0x8] sm:$0xff]
  %v18 = vld [vmem:[%s1 + $0x10] sm:$0xff]
  %v19 = vld [vmem:[%s1 + $0x18] sm:$0xff]
  %v20 = vld [vmem:[%s1 + $0x20] sm:$0xff]
  %v21 = vld [vmem:[%s1 + $0x28] sm:$0xff]
  %v22 = vld [vmem:[%s1 + $0x30] sm:$0xff]
  %v23 = vld [vmem:[%s1 + $0x38] sm:$0xff]
  %v24 = vld [vmem:[%s2] sm:$0xff]
  %v25 = vld [vmem:[%s2 + $0x8] sm:$0xff]
  %27 = vset.pattern.permute.xlu0 0
  %28 = vperm.xlu0 %27, %v24
  %v29 = vpop.permute.xlu0 %28
  %32 = vset.pattern.permute.xlu0 0
  %33 = vperm.xlu0 %32, %v25
  %v34 = vpop.permute.xlu0 %33
  %vm36 = vcmask 523264
  %v38 = vsel %vm36, %v14, 0
  %v41 = vsel %vm36, %v15, 0
  %43 = vmatpush.msra.mxu0 0.0
  %44 = vmatpush.msra.mxu0 0.0
  %45 = vmatpush.msra.mxu0 0.0
  %46 = vmatpush.msra.mxu0 0.0
  %47 = vmatpush.msra.mxu0 0.0
  %48 = vmatpush.msra.mxu0 0.0
  %49 = vmatpush.msra.mxu0 0.0
  %50 = vmatpush.msra.mxu0 0.0
  %51 = vmatpush.msra.mxu0 %v23
  %52 = vmatpush.msra.mxu0 %v22
  %53 = vmatpush.msra.mxu0 %v21
  %54 = vmatpush.msra.mxu0 %v20
  %55 = vmatpush.msra.mxu0 %v19
  %56 = vmatpush.msra.mxu0 %v18
  %57 = vmatpush.msra.mxu0 %v17
  %58 = vmatpush.msra.mxu0 %v16
  %59 = vmatmul.f32.gmra.mxu0 %v38
  %v60 = vpop.f32.mrf.mxu0
  %v61 = vadd.f32 %v29, %v60
  %62 = vmatmul.f32.gmra.mxu0 %v41
  %v63 = vpop.f32.mrf.mxu0
  %v64 = vadd.f32 %v34, %v63
  %65 = vdwg.mxu0
  %vm66 = vcmp.ge.f32.partialorder %v61, 0.0
  %vm67 = vcmp.ge.f32.partialorder %v64, 0.0
  %68 = vset.pattern.permute.xlu0 1
  %69 = vperm.xlu0 %68, %v24
  %v70 = vpop.permute.xlu0 %69
  %72 = vset.pattern.permute.xlu0 1
  %73 = vperm.xlu0 %72, %v25
  %v74 = vpop.permute.xlu0 %73
  %v76 = vmul.f32 %v70, %v61
  %v77 = vmul.f32 %v74, %v64
  %v78 = vsel %vm66, %v61, %v76
  %v79 = vsel %vm67, %v64, %v77
  %80 = vst [vmem:[%s3] sm:$0xff] %v78
  %81 = vst [vmem:[%s3 + $0x8] sm:$0xff] %v79
  // Predicated region
  $region14: #{forward.79} parent=0 // pred_check
    _
  $region15: #{forward.79} parent=0 // pred_check_branch
    %83 = sbr.rel (0) target = $region17
  $region16: #{forward.79} parent=0 // pred_region
    _
  $region17: #{forward.79} parent=0 // pred_fallthru
    _
  // Predicated region
  $region18: #{forward.79} parent=0 // pred_check
    _
  $region19: #{forward.79} parent=0 // pred_check_branch
    %85 = sbr.rel (0) target = $region21
  $region20: #{forward.79} parent=0 // pred_region
    _
  $region21: #{forward.79} parent=0 // pred_fallthru
    _

// kernel: forward.78
$region0: #{forward.78}
  #allocation0 [shape = 'u32[]', space=smem, size = 0x4, offset = 0x4, fixed_abs, tag = 'smem constant byte address 0x4 - core index']
  #allocation1 [shape = 'u32[72,128]{1,0:T(1,128)}', space=vmem, size = 0x9000, scoped, tag = 'internal scratch']
  %s0 = inlined_call_operand.vmem [shape: f32[64,456], index: 0, kind: input, shape index: {}]
  %s1 = inlined_call_operand.vmem [shape: f32[456,128], index: 1, kind: input, shape index: {}]
  %s2 = inlined_call_operand.vmem [shape: f32[64,2], index: 2, kind: input, shape index: {}]
  %s3 = inlined_call_operand.vmem [shape: f32[64,128], index: 3, kind: output, shape index: {}]
  %s4 = sld [smem:[#allocation0]]
  $region22: #{forward.78} parent=0
    _
  %s6 = ssub.s32 1, %s4
  %s7 = scalar_select 0, %s6, %s4
  // Predicated region
  $region2: #{forward.78} parent=0 // pred_check
    _
  $region3: #{forward.78} parent=0 // pred_check_branch
    %9 = sbr.rel (0) target = $region5
  $region4: #{forward.78} parent=0 // pred_region
    _
  $region5: #{forward.78} parent=0 // pred_fallthru
    _
  // Predicated region
  $region6: #{forward.78} parent=0 // pred_check
    _
  $region7: #{forward.78} parent=0 // pred_check_branch
    %11 = sbr.rel (0) target = $region9
  $region8: #{forward.78} parent=0 // pred_region
    _
  $region9: #{forward.78} parent=0 // pred_fallthru
    _
  // Predicated region
  $region10: #{forward.78} parent=0 // pred_check
    _
  $region11: #{forward.78} parent=0 // pred_check_branch
    %13 = sbr.rel (0) target = $region13
  $region12: #{forward.78} parent=0 // pred_region
    _
  $region13: #{forward.78} parent=0 // pred_fallthru
    _
  %v14 = vld [vmem:[%s0] sm:$0xff]
  %v15 = vld [vmem:[%s0 + $0x8] sm:$0xff]
  %v16 = vld [vmem:[%s0 + $0x10] sm:$0xff]
  %v17 = vld [vmem:[%s0 + $0x18] sm:$0xff]
  %v18 = vld [vmem:[%s0 + $0x20] sm:$0xff]
  %v19 = vld [vmem:[%s0 + $0x28] sm:$0xff]
  %v20 = vld [vmem:[%s0 + $0x30] sm:$0xff]
  %v21 = vld [vmem:[%s0 + $0x38] sm:$0xff]
  %v22 = vld [vmem:[%s0 + $0x40] sm:$0xff]
  %v23 = vld [vmem:[%s0 + $0x48] sm:$0xff]
  %v24 = vld [vmem:[%s0 + $0x50] sm:$0xff]
  %v25 = vld [vmem:[%s0 + $0x58] sm:$0xff]
  %v26 = vld [vmem:[%s0 + $0x60] sm:$0xff]
  %v27 = vld [vmem:[%s0 + $0x68] sm:$0xff]
  %v28 = vld [vmem:[%s0 + $0x70] sm:$0xff]
  %v29 = vld [vmem:[%s0 + $0x78] sm:$0xff]
  %v30 = vld [vmem:[%s0 + $0x80] sm:$0xff]
  %v31 = vld [vmem:[%s0 + $0x88] sm:$0xff]
  %v32 = vld [vmem:[%s0 + $0x90] sm:$0xff]
  %v33 = vld [vmem:[%s0 + $0x98] sm:$0xff]
  %v34 = vld [vmem:[%s0 + $0xa0] sm:$0xff]
  %v35 = vld [vmem:[%s0 + $0xa8] sm:$0xff]
  %v36 = vld [vmem:[%s0 + $0xb0] sm:$0xff]
  %v37 = vld [vmem:[%s0 + $0xb8] sm:$0xff]
  %v38 = vld [vmem:[%s0 + $0xc0] sm:$0xff]
  %v39 = vld [vmem:[%s0 + $0xc8] sm:$0xff]
  %v40 = vld [vmem:[%s0 + $0xd0] sm:$0xff]
  %v41 = vld [vmem:[%s0 + $0xd8] sm:$0xff]
  %v42 = vld [vmem:[%s0 + $0xe0] sm:$0xff]
  %v43 = vld [vmem:[%s0 + $0xe8] sm:$0xff]
  %v44 = vld [vmem:[%s0 + $0xf0] sm:$0xff]
  %v45 = vld [vmem:[%s0 + $0xf8] sm:$0xff]
  %v46 = vld [vmem:[%s1] sm:$0xff]
  %v47 = vld [vmem:[%s1 + $0x8] sm:$0xff]
  %v48 = vld [vmem:[%s1 + $0x10] sm:$0xff]
  %v49 = vld [vmem:[%s1 + $0x18] sm:$0xff]
  %v50 = vld [vmem:[%s1 + $0x20] sm:$0xff]
  %v51 = vld [vmem:[%s1 + $0x28] sm:$0xff]
  %v52 = vld [vmem:[%s1 + $0x30] sm:$0xff]
  %v53 = vld [vmem:[%s1 + $0x38] sm:$0xff]
  %v54 = vld [vmem:[%s1 + $0x40] sm:$0xff]
  %v55 = vld [vmem:[%s1 + $0x48] sm:$0xff]
  %v56 = vld [vmem:[%s1 + $0x50] sm:$0xff]
  %v57 = vld [vmem:[%s1 + $0x58] sm:$0xff]
  %v58 = vld [vmem:[%s1 + $0x60] sm:$0xff]
  %v59 = vld [vmem:[%s1 + $0x68] sm:$0xff]
  %v60 = vld [vmem:[%s1 + $0x70] sm:$0xff]
  %v61 = vld [vmem:[%s1 + $0x78] sm:$0xff]
  %v62 = vld [vmem:[%s1 + $0x80] sm:$0xff]
  %v63 = vld [vmem:[%s1 + $0x88] sm:$0xff]
  %v64 = vld [vmem:[%s1 + $0x90] sm:$0xff]
  %v65 = vld [vmem:[%s1 + $0x98] sm:$0xff]
  %v66 = vld [vmem:[%s1 + $0xa0] sm:$0xff]
  %v67 = vld [vmem:[%s1 + $0xa8] sm:$0xff]
  %v68 = vld [vmem:[%s1 + $0xb0] sm:$0xff]
  %v69 = vld [vmem:[%s1 + $0xb8] sm:$0xff]
  %v70 = vld [vmem:[%s1 + $0xc0] sm:$0xff]
  %v71 = vld [vmem:[%s1 + $0xc8] sm:$0xff]
  %v72 = vld [vmem:[%s1 + $0xd0] sm:$0xff]
  %v73 = vld [vmem:[%s1 + $0xd8] sm:$0xff]
  %v74 = vld [vmem:[%s1 + $0xe0] sm:$0xff]
  %v75 = vld [vmem:[%s1 + $0xe8] sm:$0xff]
  %v76 = vld [vmem:[%s1 + $0xf0] sm:$0xff]
  %v77 = vld [vmem:[%s1 + $0xf8] sm:$0xff]
  %v78 = vld [vmem:[%s1 + $0x100] sm:$0xff]
  %v79 = vld [vmem:[%s1 + $0x108] sm:$0xff]
  %v80 = vld [vmem:[%s1 + $0x110] sm:$0xff]
  %v81 = vld [vmem:[%s1 + $0x118] sm:$0xff]
  %v82 = vld [vmem:[%s1 + $0x120] sm:$0xff]
  %v83 = vld [vmem:[%s1 + $0x128] sm:$0xff]
  %v84 = vld [vmem:[%s1 + $0x130] sm:$0xff]
  %v85 = vld [vmem:[%s1 + $0x138] sm:$0xff]
  %v86 = vld [vmem:[%s1 + $0x140] sm:$0xff]
  %v87 = vld [vmem:[%s1 + $0x148] sm:$0xff]
  %v88 = vld [vmem:[%s1 + $0x150] sm:$0xff]
  %v89 = vld [vmem:[%s1 + $0x158] sm:$0xff]
  %v90 = vld [vmem:[%s1 + $0x160] sm:$0xff]
  %v91 = vld [vmem:[%s1 + $0x168] sm:$0xff]
  %v92 = vld [vmem:[%s1 + $0x170] sm:$0xff]
  %v93 = vld [vmem:[%s1 + $0x178] sm:$0xff]
  %v94 = vld [vmem:[%s1 + $0x180] sm:$0xff]
  %v95 = vld [vmem:[%s1 + $0x188] sm:$0xff]
  %v96 = vld [vmem:[%s1 + $0x190] sm:$0xff]
  %v97 = vld [vmem:[%s1 + $0x198] sm:$0xff]
  %v98 = vld [vmem:[%s1 + $0x1a0] sm:$0xff]
  %v99 = vld [vmem:[%s1 + $0x1a8] sm:$0xff]
  %v100 = vld [vmem:[%s1 + $0x1b0] sm:$0xff]
  %v101 = vld [vmem:[%s1 + $0x1b8] sm:$0xff]
  %v102 = vld [vmem:[%s1 + $0x1c0] sm:$0xff]
  %v103 = vld [vmem:[%s2] sm:$0xff]
  %v104 = vld [vmem:[%s2 + $0x8] sm:$0xff]
  %v105 = vld [vmem:[%s2 + $0x10] sm:$0xff]
  %v106 = vld [vmem:[%s2 + $0x18] sm:$0xff]
  %v107 = vld [vmem:[%s2 + $0x20] sm:$0xff]
  %v108 = vld [vmem:[%s2 + $0x28] sm:$0xff]
  %v109 = vld [vmem:[%s2 + $0x30] sm:$0xff]
  %v110 = vld [vmem:[%s2 + $0x38] sm:$0xff]
  %112 = vset.pattern.permute.xlu0 0
  %113 = vperm.xlu0 %112, %v103
  %v114 = vpop.permute.xlu0 %113
  %117 = vset.pattern.permute.xlu0 0
  %118 = vperm.xlu0 %117, %v104
  %v119 = vpop.permute.xlu0 %118
  %122 = vset.pattern.permute.xlu0 0
  %123 = vperm.xlu0 %122, %v105
  %v124 = vpop.permute.xlu0 %123
  %127 = vset.pattern.permute.xlu0 0
  %128 = vperm.xlu0 %127, %v106
  %v129 = vpop.permute.xlu0 %128
  %132 = vset.pattern.permute.xlu0 0
  %133 = vperm.xlu0 %132, %v107
  %v134 = vpop.permute.xlu0 %133
  %137 = vset.pattern.permute.xlu0 0
  %138 = vperm.xlu0 %137, %v108
  %v139 = vpop.permute.xlu0 %138
  %142 = vset.pattern.permute.xlu0 0
  %143 = vperm.xlu0 %142, %v109
  %v144 = vpop.permute.xlu0 %143
  %147 = vset.pattern.permute.xlu0 0
  %148 = vperm.xlu0 %147, %v110
  %v149 = vpop.permute.xlu0 %148
  %vm151 = vcmask 588800
  %v153 = vsel %vm151, %v17, 0
  %v156 = vsel %vm151, %v21, 0
  %v159 = vsel %vm151, %v25, 0
  %v162 = vsel %vm151, %v29, 0
  %v165 = vsel %vm151, %v33, 0
  %v168 = vsel %vm151, %v37, 0
  %v171 = vsel %vm151, %v41, 0
  %v174 = vsel %vm151, %v45, 0
  %176 = vmatpush.msra.mxu0 %v61
  %177 = vmatpush.msra.mxu0 %v60
  %178 = vmatpush.msra.mxu0 %v59
  %179 = vmatpush.msra.mxu0 %v58
  %180 = vmatpush.msra.mxu0 %v57
  %181 = vmatpush.msra.mxu0 %v56
  %182 = vmatpush.msra.mxu0 %v55
  %183 = vmatpush.msra.mxu0 %v54
  %184 = vmatpush.msra.mxu0 %v53
  %185 = vmatpush.msra.mxu0 %v52
  %186 = vmatpush.msra.mxu0 %v51
  %187 = vmatpush.msra.mxu0 %v50
  %188 = vmatpush.msra.mxu0 %v49
  %189 = vmatpush.msra.mxu0 %v48
  %190 = vmatpush.msra.mxu0 %v47
  %191 = vmatpush.msra.mxu0 %v46
  %192 = vmatmul.f32.gmra.mxu0 %v14
  %v193 = vpop.f32.mrf.mxu0
  %v194 = vadd.f32 %v114, %v193
  %195 = vmatmul.f32.gmra.mxu0 %v18
  %v196 = vpop.f32.mrf.mxu0
  %v197 = vadd.f32 %v119, %v196
  %198 = vmatmul.f32.gmra.mxu0 %v22
  %v199 = vpop.f32.mrf.mxu0
  %v200 = vadd.f32 %v124, %v199
  %201 = vmatmul.f32.gmra.mxu0 %v26
  %v202 = vpop.f32.mrf.mxu0
  %v203 = vadd.f32 %v129, %v202
  %204 = vmatmul.f32.gmra.mxu0 %v30
  %v205 = vpop.f32.mrf.mxu0
  %v206 = vadd.f32 %v134, %v205
  %207 = vmatmul.f32.gmra.mxu0 %v34
  %v208 = vpop.f32.mrf.mxu0
  %v209 = vadd.f32 %v139, %v208
  %210 = vmatmul.f32.gmra.mxu0 %v38
  %v211 = vpop.f32.mrf.mxu0
  %v212 = vadd.f32 %v144, %v211
  %213 = vmatmul.f32.gmra.mxu0 %v42
  %v214 = vpop.f32.mrf.mxu0
  %v215 = vadd.f32 %v149, %v214
  %216 = vdwg.mxu0
  %217 = vmatpush.msra.mxu0 %v77
  %218 = vmatpush.msra.mxu0 %v76
  %219 = vmatpush.msra.mxu0 %v75
  %220 = vmatpush.msra.mxu0 %v74
  %221 = vmatpush.msra.mxu0 %v73
  %222 = vmatpush.msra.mxu0 %v72
  %223 = vmatpush.msra.mxu0 %v71
  %224 = vmatpush.msra.mxu0 %v70
  %225 = vmatpush.msra.mxu0 %v69
  %226 = vmatpush.msra.mxu0 %v68
  %227 = vmatpush.msra.mxu0 %v67
  %228 = vmatpush.msra.mxu0 %v66
  %229 = vmatpush.msra.mxu0 %v65
  %230 = vmatpush.msra.mxu0 %v64
  %231 = vmatpush.msra.mxu0 %v63
  %232 = vmatpush.msra.mxu0 %v62
  %233 = vmatmul.f32.gmra.mxu0 %v15
  %v234 = vpop.f32.mrf.mxu0
  %v235 = vadd.f32 %v194, %v234
  %236 = vmatmul.f32.gmra.mxu0 %v19
  %v237 = vpop.f32.mrf.mxu0
  %v238 = vadd.f32 %v197, %v237
  %239 = vmatmul.f32.gmra.mxu0 %v23
  %v240 = vpop.f32.mrf.mxu0
  %v241 = vadd.f32 %v200, %v240
  %242 = vmatmul.f32.gmra.mxu0 %v27
  %v243 = vpop.f32.mrf.mxu0
  %v244 = vadd.f32 %v203, %v243
  %245 = vmatmul.f32.gmra.mxu0 %v31
  %v246 = vpop.f32.mrf.mxu0
  %v247 = vadd.f32 %v206, %v246
  %248 = vmatmul.f32.gmra.mxu0 %v35
  %v249 = vpop.f32.mrf.mxu0
  %v250 = vadd.f32 %v209, %v249
  %251 = vmatmul.f32.gmra.mxu0 %v39
  %v252 = vpop.f32.mrf.mxu0
  %v253 = vadd.f32 %v212, %v252
  %254 = vmatmul.f32.gmra.mxu0 %v43
  %v255 = vpop.f32.mrf.mxu0
  %v256 = vadd.f32 %v215, %v255
  %257 = vdwg.mxu0
  %258 = vmatpush.msra.mxu0 %v93
  %259 = vmatpush.msra.mxu0 %v92
  %260 = vmatpush.msra.mxu0 %v91
  %261 = vmatpush.msra.mxu0 %v90
  %262 = vmatpush.msra.mxu0 %v89
  %263 = vmatpush.msra.mxu0 %v88
  %264 = vmatpush.msra.mxu0 %v87
  %265 = vmatpush.msra.mxu0 %v86
  %266 = vmatpush.msra.mxu0 %v85
  %267 = vmatpush.msra.mxu0 %v84
  %268 = vmatpush.msra.mxu0 %v83
  %269 = vmatpush.msra.mxu0 %v82
  %270 = vmatpush.msra.mxu0 %v81
  %271 = vmatpush.msra.mxu0 %v80
  %272 = vmatpush.msra.mxu0 %v79
  %273 = vmatpush.msra.mxu0 %v78
  %274 = vmatmul.f32.gmra.mxu0 %v16
  %v275 = vpop.f32.mrf.mxu0
  %v276 = vadd.f32 %v235, %v275
  %277 = vmatmul.f32.gmra.mxu0 %v20
  %v278 = vpop.f32.mrf.mxu0
  %v279 = vadd.f32 %v238, %v278
  %280 = vmatmul.f32.gmra.mxu0 %v24
  %v281 = vpop.f32.mrf.mxu0
  %v282 = vadd.f32 %v241, %v281
  %283 = vmatmul.f32.gmra.mxu0 %v28
  %v284 = vpop.f32.mrf.mxu0
  %v285 = vadd.f32 %v244, %v284
  %286 = vmatmul.f32.gmra.mxu0 %v32
  %v287 = vpop.f32.mrf.mxu0
  %v288 = vadd.f32 %v247, %v287
  %289 = vmatmul.f32.gmra.mxu0 %v36
  %v290 = vpop.f32.mrf.mxu0
  %v291 = vadd.f32 %v250, %v290
  %292 = vmatmul.f32.gmra.mxu0 %v40
  %v293 = vpop.f32.mrf.mxu0
  %v294 = vadd.f32 %v253, %v293
  %295 = vmatmul.f32.gmra.mxu0 %v44
  %v296 = vpop.f32.mrf.mxu0
  %v297 = vadd.f32 %v256, %v296
  %298 = vdwg.mxu0
  %299 = vmatpush.msra.mxu0 0.0
  %300 = vmatpush.msra.mxu0 0.0
  %301 = vmatpush.msra.mxu0 0.0
  %302 = vmatpush.msra.mxu0 0.0
  %303 = vmatpush.msra.mxu0 0.0
  %304 = vmatpush.msra.mxu0 0.0
  %305 = vmatpush.msra.mxu0 0.0
  %306 = vmatpush.msra.mxu0 %v102
  %307 = vmatpush.msra.mxu0 %v101
  %308 = vmatpush.msra.mxu0 %v100
  %309 = vmatpush.msra.mxu0 %v99
  %310 = vmatpush.msra.mxu0 %v98
  %311 = vmatpush.msra.mxu0 %v97
  %312 = vmatpush.msra.mxu0 %v96
  %313 = vmatpush.msra.mxu0 %v95
  %314 = vmatpush.msra.mxu0 %v94
  %315 = vmatmul.f32.gmra.mxu0 %v153
  %v316 = vpop.f32.mrf.mxu0
  %v317 = vadd.f32 %v276, %v316
  %318 = vmatmul.f32.gmra.mxu0 %v156
  %v319 = vpop.f32.mrf.mxu0
  %v320 = vadd.f32 %v279, %v319
  %321 = vmatmul.f32.gmra.mxu0 %v159
  %v322 = vpop.f32.mrf.mxu0
  %v323 = vadd.f32 %v282, %v322
  %324 = vmatmul.f32.gmra.mxu0 %v162
  %v325 = vpop.f32.mrf.mxu0
  %v326 = vadd.f32 %v285, %v325
  %327 = vmatmul.f32.gmra.mxu0 %v165
  %v328 = vpop.f32.mrf.mxu0
  %v329 = vadd.f32 %v288, %v328
  %330 = vmatmul.f32.gmra.mxu0 %v168
  %v331 = vpop.f32.mrf.mxu0
  %v332 = vadd.f32 %v291, %v331
  %333 = vmatmul.f32.gmra.mxu0 %v171
  %v334 = vpop.f32.mrf.mxu0
  %v335 = vadd.f32 %v294, %v334
  %336 = vmatmul.f32.gmra.mxu0 %v174
  %v337 = vpop.f32.mrf.mxu0
  %v338 = vadd.f32 %v297, %v337
  %339 = vdwg.mxu0
  %vm340 = vcmp.ge.f32.partialorder %v317, 0.0
  %vm341 = vcmp.ge.f32.partialorder %v320, 0.0
  %vm342 = vcmp.ge.f32.partialorder %v323, 0.0
  %vm343 = vcmp.ge.f32.partialorder %v326, 0.0
  %vm344 = vcmp.ge.f32.partialorder %v329, 0.0
  %vm345 = vcmp.ge.f32.partialorder %v332, 0.0
  %vm346 = vcmp.ge.f32.partialorder %v335, 0.0
  %vm347 = vcmp.ge.f32.partialorder %v338, 0.0
  %348 = vset.pattern.permute.xlu0 1
  %349 = vperm.xlu0 %348, %v103
  %v350 = vpop.permute.xlu0 %349
  %352 = vset.pattern.permute.xlu0 1
  %353 = vperm.xlu0 %352, %v104
  %v354 = vpop.permute.xlu0 %353
  %356 = vset.pattern.permute.xlu0 1
  %357 = vperm.xlu0 %356, %v105
  %v358 = vpop.permute.xlu0 %357
  %360 = vset.pattern.permute.xlu0 1
  %361 = vperm.xlu0 %360, %v106
  %v362 = vpop.permute.xlu0 %361
  %364 = vset.pattern.permute.xlu0 1
  %365 = vperm.xlu0 %364, %v107
  %v366 = vpop.permute.xlu0 %365
  %368 = vset.pattern.permute.xlu0 1
  %369 = vperm.xlu0 %368, %v108
  %v370 = vpop.permute.xlu0 %369
  %372 = vset.pattern.permute.xlu0 1
  %373 = vperm.xlu0 %372, %v109
  %v374 = vpop.permute.xlu0 %373
  %376 = vset.pattern.permute.xlu0 1
  %377 = vperm.xlu0 %376, %v110
  %v378 = vpop.permute.xlu0 %377
  %v380 = vmul.f32 %v350, %v317
  %v381 = vmul.f32 %v354, %v320
  %v382 = vmul.f32 %v358, %v323
  %v383 = vmul.f32 %v362, %v326
  %v384 = vmul.f32 %v366, %v329
  %v385 = vmul.f32 %v370, %v332
  %v386 = vmul.f32 %v374, %v335
  %v387 = vmul.f32 %v378, %v338
  %v388 = vsel %vm340, %v317, %v380
  %v389 = vsel %vm341, %v320, %v381
  %v390 = vsel %vm342, %v323, %v382
  %v391 = vsel %vm343, %v326, %v383
  %v392 = vsel %vm344, %v329, %v384
  %v393 = vsel %vm345, %v332, %v385
  %v394 = vsel %vm346, %v335, %v386
  %v395 = vsel %vm347, %v338, %v387
  %396 = vst [vmem:[%s3] sm:$0xff] %v388
  %397 = vst [vmem:[%s3 + $0x8] sm:$0xff] %v389
  %398 = vst [vmem:[%s3 + $0x10] sm:$0xff] %v390
  %399 = vst [vmem:[%s3 + $0x18] sm:$0xff] %v391
  %400 = vst [vmem:[%s3 + $0x20] sm:$0xff] %v392
  %401 = vst [vmem:[%s3 + $0x28] sm:$0xff] %v393
  %402 = vst [vmem:[%s3 + $0x30] sm:$0xff] %v394
  %403 = vst [vmem:[%s3 + $0x38] sm:$0xff] %v395
  // Predicated region
  $region14: #{forward.78} parent=0 // pred_check
    _
  $region15: #{forward.78} parent=0 // pred_check_branch
    %405 = sbr.rel (0) target = $region17
  $region16: #{forward.78} parent=0 // pred_region
    _
  $region17: #{forward.78} parent=0 // pred_fallthru
    _
  // Predicated region
  $region18: #{forward.78} parent=0 // pred_check
    _
  $region19: #{forward.78} parent=0 // pred_check_branch
    %407 = sbr.rel (0) target = $region21
  $region20: #{forward.78} parent=0 // pred_region
    _
  $region21: #{forward.78} parent=0 // pred_fallthru
    _

// kernel: forward.80
$region0: #{forward.80}
  #allocation0 [shape = 'u32[]', space=smem, size = 0x4, offset = 0x4, fixed_abs, tag = 'smem constant byte address 0x4 - core index']
  #allocation1 [shape = 'u32[72,128]{1,0:T(1,128)}', space=vmem, size = 0x9000, scoped, tag = 'internal scratch']
  %s0 = inlined_call_operand.vmem [shape: f32[16,112], index: 0, kind: input, shape index: {}]
  %s1 = inlined_call_operand.vmem [shape: f32[112,128], index: 1, kind: input, shape index: {}]
  %s2 = inlined_call_operand.vmem [shape: f32[16,2], index: 2, kind: input, shape index: {}]
  %s3 = inlined_call_operand.vmem [shape: f32[16,128], index: 3, kind: output, shape index: {}]
  %s4 = sld [smem:[#allocation0]]
  $region22: #{forward.80} parent=0
    _
  %s6 = ssub.s32 1, %s4
  %s7 = scalar_select 0, %s6, %s4
  // Predicated region
  $region2: #{forward.80} parent=0 // pred_check
    _
  $region3: #{forward.80} parent=0 // pred_check_branch
    %9 = sbr.rel (0) target = $region5
  $region4: #{forward.80} parent=0 // pred_region
    _
  $region5: #{forward.80} parent=0 // pred_fallthru
    _
  // Predicated region
  $region6: #{forward.80} parent=0 // pred_check
    _
  $region7: #{forward.80} parent=0 // pred_check_branch
    %11 = sbr.rel (0) target = $region9
  $region8: #{forward.80} parent=0 // pred_region
    _
  $region9: #{forward.80} parent=0 // pred_fallthru
    _
  // Predicated region
  $region10: #{forward.80} parent=0 // pred_check
    _
  $region11: #{forward.80} parent=0 // pred_check_branch
    %13 = sbr.rel (0) target = $region13
  $region12: #{forward.80} parent=0 // pred_region
    _
  $region13: #{forward.80} parent=0 // pred_fallthru
    _
  %v14 = vld [vmem:[%s0] sm:$0xff]
  %v15 = vld [vmem:[%s0 + $0x8] sm:$0xff]
  %v16 = vld [vmem:[%s1] sm:$0xff]
  %v17 = vld [vmem:[%s1 + $0x8] sm:$0xff]
  %v18 = vld [vmem:[%s1 + $0x10] sm:$0xff]
  %v19 = vld [vmem:[%s1 + $0x18] sm:$0xff]
  %v20 = vld [vmem:[%s1 + $0x20] sm:$0xff]
  %v21 = vld [vmem:[%s1 + $0x28] sm:$0xff]
  %v22 = vld [vmem:[%s1 + $0x30] sm:$0xff]
  %v23 = vld [vmem:[%s1 + $0x38] sm:$0xff]
  %v24 = vld [vmem:[%s1 + $0x40] sm:$0xff]
  %v25 = vld [vmem:[%s1 + $0x48] sm:$0xff]
  %v26 = vld [vmem:[%s1 + $0x50] sm:$0xff]
  %v27 = vld [vmem:[%s1 + $0x58] sm:$0xff]
  %v28 = vld [vmem:[%s1 + $0x60] sm:$0xff]
  %v29 = vld [vmem:[%s1 + $0x68] sm:$0xff]
  %v30 = vld [vmem:[%s2] sm:$0xff]
  %v31 = vld [vmem:[%s2 + $0x8] sm:$0xff]
  %33 = vset.pattern.permute.xlu0 0
  %34 = vperm.xlu0 %33, %v30
  %v35 = vpop.permute.xlu0 %34
  %38 = vset.pattern.permute.xlu0 0
  %39 = vperm.xlu0 %38, %v31
  %v40 = vpop.permute.xlu0 %39
  %vm42 = vcmask 916480
  %v44 = vsel %vm42, %v14, 0
  %v47 = vsel %vm42, %v15, 0
  %49 = vmatpush.msra.mxu0 0.0
  %50 = vmatpush.msra.mxu0 0.0
  %51 = vmatpush.msra.mxu0 %v29
  %52 = vmatpush.msra.mxu0 %v28
  %53 = vmatpush.msra.mxu0 %v27
  %54 = vmatpush.msra.mxu0 %v26
  %55 = vmatpush.msra.mxu0 %v25
  %56 = vmatpush.msra.mxu0 %v24
  %57 = vmatpush.msra.mxu0 %v23
  %58 = vmatpush.msra.mxu0 %v22
  %59 = vmatpush.msra.mxu0 %v21
  %60 = vmatpush.msra.mxu0 %v20
  %61 = vmatpush.msra.mxu0 %v19
  %62 = vmatpush.msra.mxu0 %v18
  %63 = vmatpush.msra.mxu0 %v17
  %64 = vmatpush.msra.mxu0 %v16
  %65 = vmatmul.f32.gmra.mxu0 %v44
  %v66 = vpop.f32.mrf.mxu0
  %v67 = vadd.f32 %v35, %v66
  %68 = vmatmul.f32.gmra.mxu0 %v47
  %v69 = vpop.f32.mrf.mxu0
  %v70 = vadd.f32 %v40, %v69
  %71 = vdwg.mxu0
  %vm72 = vcmp.ge.f32.partialorder %v67, 0.0
  %vm73 = vcmp.ge.f32.partialorder %v70, 0.0
  %74 = vset.pattern.permute.xlu0 1
  %75 = vperm.xlu0 %74, %v30
  %v76 = vpop.permute.xlu0 %75
  %78 = vset.pattern.permute.xlu0 1
  %79 = vperm.xlu0 %78, %v31
  %v80 = vpop.permute.xlu0 %79
  %v82 = vmul.f32 %v76, %v67
  %v83 = vmul.f32 %v80, %v70
  %v84 = vsel %vm72, %v67, %v82
  %v85 = vsel %vm73, %v70, %v83
  %86 = vst [vmem:[%s3] sm:$0xff] %v84
  %87 = vst [vmem:[%s3 + $0x8] sm:$0xff] %v85
  // Predicated region
  $region14: #{forward.80} parent=0 // pred_check
    _
  $region15: #{forward.80} parent=0 // pred_check_branch
    %89 = sbr.rel (0) target = $region17
  $region16: #{forward.80} parent=0 // pred_region
    _
  $region17: #{forward.80} parent=0 // pred_fallthru
    _
  // Predicated region
  $region18: #{forward.80} parent=0 // pred_check
    _
  $region19: #{forward.80} parent=0 // pred_check_branch
    %91 = sbr.rel (0) target = $region21
  $region20: #{forward.80} parent=0 // pred_region
    _
  $region21: #{forward.80} parent=0 // pred_fallthru
    _

// kernel: forward.84
$region0: #{forward.84}
  #allocation0 [shape = 'u32[]', space=smem, size = 0x4, offset = 0x4, fixed_abs, tag = 'smem constant byte address 0x4 - core index']
  #allocation1 [shape = 'u32[72,128]{1,0:T(1,128)}', space=vmem, size = 0x9000, scoped, tag = 'internal scratch']
  %s0 = inlined_call_operand.vmem [shape: f32[64,16], index: 0, kind: input, shape index: {}]
  %s1 = inlined_call_operand.vmem [shape: f32[16,128], index: 1, kind: input, shape index: {}]
  %s2 = inlined_call_operand.vmem [shape: f32[64,2], index: 2, kind: input, shape index: {}]
  %s3 = inlined_call_operand.vmem [shape: f32[64,128], index: 3, kind: output, shape index: {}]
  %s4 = sld [smem:[#allocation0]]
  $region22: #{forward.84} parent=0
    _
  %s6 = ssub.s32 1, %s4
  %s7 = scalar_select 0, %s6, %s4
  // Predicated region
  $region2: #{forward.84} parent=0 // pred_check
    _
  $region3: #{forward.84} parent=0 // pred_check_branch
    %9 = sbr.rel (0) target = $region5
  $region4: #{forward.84} parent=0 // pred_region
    _
  $region5: #{forward.84} parent=0 // pred_fallthru
    _
  // Predicated region
  $region6: #{forward.84} parent=0 // pred_check
    _
  $region7: #{forward.84} parent=0 // pred_check_branch
    %11 = sbr.rel (0) target = $region9
  $region8: #{forward.84} parent=0 // pred_region
    _
  $region9: #{forward.84} parent=0 // pred_fallthru
    _
  // Predicated region
  $region10: #{forward.84} parent=0 // pred_check
    _
  $region11: #{forward.84} parent=0 // pred_check_branch
    %13 = sbr.rel (0) target = $region13
  $region12: #{forward.84} parent=0 // pred_region
    _
  $region13: #{forward.84} parent=0 // pred_fallthru
    _
  %v14 = vld [vmem:[%s0] sm:$0xff]
  %v15 = vld [vmem:[%s0 + $0x8] sm:$0xff]
  %v16 = vld [vmem:[%s0 + $0x10] sm:$0xff]
  %v17 = vld [vmem:[%s0 + $0x18] sm:$0xff]
  %v18 = vld [vmem:[%s0 + $0x20] sm:$0xff]
  %v19 = vld [vmem:[%s0 + $0x28] sm:$0xff]
  %v20 = vld [vmem:[%s0 + $0x30] sm:$0xff]
  %v21 = vld [vmem:[%s0 + $0x38] sm:$0xff]
  %v22 = vld [vmem:[%s1] sm:$0xff]
  %v23 = vld [vmem:[%s1 + $0x8] sm:$0xff]
  %v24 = vld [vmem:[%s2] sm:$0xff]
  %v25 = vld [vmem:[%s2 + $0x8] sm:$0xff]
  %v26 = vld [vmem:[%s2 + $0x10] sm:$0xff]
  %v27 = vld [vmem:[%s2 + $0x18] sm:$0xff]
  %v28 = vld [vmem:[%s2 + $0x20] sm:$0xff]
  %v29 = vld [vmem:[%s2 + $0x28] sm:$0xff]
  %v30 = vld [vmem:[%s2 + $0x30] sm:$0xff]
  %v31 = vld [vmem:[%s2 + $0x38] sm:$0xff]
  %33 = vset.pattern.permute.xlu0 0
  %34 = vperm.xlu0 %33, %v24
  %v35 = vpop.permute.xlu0 %34
  %38 = vset.pattern.permute.xlu0 0
  %39 = vperm.xlu0 %38, %v25
  %v40 = vpop.permute.xlu0 %39
  %43 = vset.pattern.permute.xlu0 0
  %44 = vperm.xlu0 %43, %v26
  %v45 = vpop.permute.xlu0 %44
  %48 = vset.pattern.permute.xlu0 0
  %49 = vperm.xlu0 %48, %v27
  %v50 = vpop.permute.xlu0 %49
  %53 = vset.pattern.permute.xlu0 0
  %54 = vperm.xlu0 %53, %v28
  %v55 = vpop.permute.xlu0 %54
  %58 = vset.pattern.permute.xlu0 0
  %59 = vperm.xlu0 %58, %v29
  %v60 = vpop.permute.xlu0 %59
  %63 = vset.pattern.permute.xlu0 0
  %64 = vperm.xlu0 %63, %v30
  %v65 = vpop.permute.xlu0 %64
  %68 = vset.pattern.permute.xlu0 0
  %69 = vperm.xlu0 %68, %v31
  %v70 = vpop.permute.xlu0 %69
  %vm72 = vcmask 130048
  %v74 = vsel %vm72, %v14, 0
  %v77 = vsel %vm72, %v15, 0
  %v80 = vsel %vm72, %v16, 0
  %v83 = vsel %vm72, %v17, 0
  %v86 = vsel %vm72, %v18, 0
  %v89 = vsel %vm72, %v19, 0
  %v92 = vsel %vm72, %v20, 0
  %v95 = vsel %vm72, %v21, 0
  %97 = vmatpush.msra.mxu0 0.0
  %98 = vmatpush.msra.mxu0 0.0
  %99 = vmatpush.msra.mxu0 0.0
  %100 = vmatpush.msra.mxu0 0.0
  %101 = vmatpush.msra.mxu0 0.0
  %102 = vmatpush.msra.mxu0 0.0
  %103 = vmatpush.msra.mxu0 0.0
  %104 = vmatpush.msra.mxu0 0.0
  %105 = vmatpush.msra.mxu0 0.0
  %106 = vmatpush.msra.mxu0 0.0
  %107 = vmatpush.msra.mxu0 0.0
  %108 = vmatpush.msra.mxu0 0.0
  %109 = vmatpush.msra.mxu0 0.0
  %110 = vmatpush.msra.mxu0 0.0
  %111 = vmatpush.msra.mxu0 %v23
  %112 = vmatpush.msra.mxu0 %v22
  %113 = vmatmul.f32.gmra.mxu0 %v74
  %v114 = vpop.f32.mrf.mxu0
  %v115 = vadd.f32 %v35, %v114
  %116 = vmatmul.f32.gmra.mxu0 %v77
  %v117 = vpop.f32.mrf.mxu0
  %v118 = vadd.f32 %v40, %v117
  %119 = vmatmul.f32.gmra.mxu0 %v80
  %v120 = vpop.f32.mrf.mxu0
  %v121 = vadd.f32 %v45, %v120
  %122 = vmatmul.f32.gmra.mxu0 %v83
  %v123 = vpop.f32.mrf.mxu0
  %v124 = vadd.f32 %v50, %v123
  %125 = vmatmul.f32.gmra.mxu0 %v86
  %v126 = vpop.f32.mrf.mxu0
  %v127 = vadd.f32 %v55, %v126
  %128 = vmatmul.f32.gmra.mxu0 %v89
  %v129 = vpop.f32.mrf.mxu0
  %v130 = vadd.f32 %v60, %v129
  %131 = vmatmul.f32.gmra.mxu0 %v92
  %v132 = vpop.f32.mrf.mxu0
  %v133 = vadd.f32 %v65, %v132
  %134 = vmatmul.f32.gmra.mxu0 %v95
  %v135 = vpop.f32.mrf.mxu0
  %v136 = vadd.f32 %v70, %v135
  %137 = vdwg.mxu0
  %vm138 = vcmp.ge.f32.partialorder %v115, 0.0
  %vm139 = vcmp.ge.f32.partialorder %v118, 0.0
  %vm140 = vcmp.ge.f32.partialorder %v121, 0.0
  %vm141 = vcmp.ge.f32.partialorder %v124, 0.0
  %vm142 = vcmp.ge.f32.partialorder %v127, 0.0
  %vm143 = vcmp.ge.f32.partialorder %v130, 0.0
  %vm144 = vcmp.ge.f32.partialorder %v133, 0.0
  %vm145 = vcmp.ge.f32.partialorder %v136, 0.0
  %146 = vset.pattern.permute.xlu0 1
  %147 = vperm.xlu0 %146, %v24
  %v148 = vpop.permute.xlu0 %147
  %150 = vset.pattern.permute.xlu0 1
  %151 = vperm.xlu0 %150, %v25
  %v152 = vpop.permute.xlu0 %151
  %154 = vset.pattern.permute.xlu0 1
  %155 = vperm.xlu0 %154, %v26
  %v156 = vpop.permute.xlu0 %155
  %158 = vset.pattern.permute.xlu0 1
  %159 = vperm.xlu0 %158, %v27
  %v160 = vpop.permute.xlu0 %159
  %162 = vset.pattern.permute.xlu0 1
  %163 = vperm.xlu0 %162, %v28
  %v164 = vpop.permute.xlu0 %163
  %166 = vset.pattern.permute.xlu0 1
  %167 = vperm.xlu0 %166, %v29
  %v168 = vpop.permute.xlu0 %167
  %170 = vset.pattern.permute.xlu0 1
  %171 = vperm.xlu0 %170, %v30
  %v172 = vpop.permute.xlu0 %171
  %174 = vset.pattern.permute.xlu0 1
  %175 = vperm.xlu0 %174, %v31
  %v176 = vpop.permute.xlu0 %175
  %v178 = vmul.f32 %v148, %v115
  %v179 = vmul.f32 %v152, %v118
  %v180 = vmul.f32 %v156, %v121
  %v181 = vmul.f32 %v160, %v124
  %v182 = vmul.f32 %v164, %v127
  %v183 = vmul.f32 %v168, %v130
  %v184 = vmul.f32 %v172, %v133
  %v185 = vmul.f32 %v176, %v136
  %v186 = vsel %vm138, %v115, %v178
  %v187 = vsel %vm139, %v118, %v179
  %v188 = vsel %vm140, %v121, %v180
  %v189 = vsel %vm141, %v124, %v181
  %v190 = vsel %vm142, %v127, %v182
  %v191 = vsel %vm143, %v130, %v183
  %v192 = vsel %vm144, %v133, %v184
  %v193 = vsel %vm145, %v136, %v185
  %194 = vst [vmem:[%s3] sm:$0xff] %v186
  %195 = vst [vmem:[%s3 + $0x8] sm:$0xff] %v187
  %196 = vst [vmem:[%s3 + $0x10] sm:$0xff] %v188
  %197 = vst [vmem:[%s3 + $0x18] sm:$0xff] %v189
  %198 = vst [vmem:[%s3 + $0x20] sm:$0xff] %v190
  %199 = vst [vmem:[%s3 + $0x28] sm:$0xff] %v191
  %200 = vst [vmem:[%s3 + $0x30] sm:$0xff] %v192
  %201 = vst [vmem:[%s3 + $0x38] sm:$0xff] %v193
  // Predicated region
  $region14: #{forward.84} parent=0 // pred_check
    _
  $region15: #{forward.84} parent=0 // pred_check_branch
    %203 = sbr.rel (0) target = $region17
  $region16: #{forward.84} parent=0 // pred_region
    _
  $region17: #{forward.84} parent=0 // pred_fallthru
    _
  // Predicated region
  $region18: #{forward.84} parent=0 // pred_check
    _
  $region19: #{forward.84} parent=0 // pred_check_branch
    %205 = sbr.rel (0) target = $region21
  $region20: #{forward.84} parent=0 // pred_region
    _
  $region21: #{forward.84} parent=0 // pred_fallthru
    _

// kernel: forward.86
$region0: #{forward.86}
  #allocation0 [shape = 'u32[]', space=smem, size = 0x4, offset = 0x4, fixed_abs, tag = 'smem constant byte address 0x4 - core index']
  #allocation1 [shape = 'u32[72,128]{1,0:T(1,128)}', space=vmem, size = 0x9000, scoped, tag = 'internal scratch']
  %s0 = inlined_call_operand.vmem [shape: f32[16,456], index: 0, kind: input, shape index: {}]
  %s1 = inlined_call_operand.vmem [shape: f32[456,128], index: 1, kind: input, shape index: {}]
  %s2 = inlined_call_operand.vmem [shape: f32[16,2], index: 2, kind: input, shape index: {}]
  %s3 = inlined_call_operand.vmem [shape: f32[16,128], index: 3, kind: output, shape index: {}]
  %s4 = sld [smem:[#allocation0]]
  $region22: #{forward.86} parent=0
    _
  %s6 = ssub.s32 1, %s4
  %s7 = scalar_select 0, %s6, %s4
  // Predicated region
  $region2: #{forward.86} parent=0 // pred_check
    _
  $region3: #{forward.86} parent=0 // pred_check_branch
    %9 = sbr.rel (0) target = $region5
  $region4: #{forward.86} parent=0 // pred_region
    _
  $region5: #{forward.86} parent=0 // pred_fallthru
    _
  // Predicated region
  $region6: #{forward.86} parent=0 // pred_check
    _
  $region7: #{forward.86} parent=0 // pred_check_branch
    %11 = sbr.rel (0) target = $region9
  $region8: #{forward.86} parent=0 // pred_region
    _
  $region9: #{forward.86} parent=0 // pred_fallthru
    _
  // Predicated region
  $region10: #{forward.86} parent=0 // pred_check
    _
  $region11: #{forward.86} parent=0 // pred_check_branch
    %13 = sbr.rel (0) target = $region13
  $region12: #{forward.86} parent=0 // pred_region
    _
  $region13: #{forward.86} parent=0 // pred_fallthru
    _
  %v14 = vld [vmem:[%s0] sm:$0xff]
  %v15 = vld [vmem:[%s0 + $0x8] sm:$0xff]
  %v16 = vld [vmem:[%s0 + $0x10] sm:$0xff]
  %v17 = vld [vmem:[%s0 + $0x18] sm:$0xff]
  %v18 = vld [vmem:[%s0 + $0x20] sm:$0xff]
  %v19 = vld [vmem:[%s0 + $0x28] sm:$0xff]
  %v20 = vld [vmem:[%s0 + $0x30] sm:$0xff]
  %v21 = vld [vmem:[%s0 + $0x38] sm:$0xff]
  %v22 = vld [vmem:[%s1] sm:$0xff]
  %v23 = vld [vmem:[%s1 + $0x8] sm:$0xff]
  %v24 = vld [vmem:[%s1 + $0x10] sm:$0xff]
  %v25 = vld [vmem:[%s1 + $0x18] sm:$0xff]
  %v26 = vld [vmem:[%s1 + $0x20] sm:$0xff]
  %v27 = vld [vmem:[%s1 + $0x28] sm:$0xff]
  %v28 = vld [vmem:[%s1 + $0x30] sm:$0xff]
  %v29 = vld [vmem:[%s1 + $0x38] sm:$0xff]
  %v30 = vld [vmem:[%s1 + $0x40] sm:$0xff]
  %v31 = vld [vmem:[%s1 + $0x48] sm:$0xff]
  %v32 = vld [vmem:[%s1 + $0x50] sm:$0xff]
  %v33 = vld [vmem:[%s1 + $0x58] sm:$0xff]
  %v34 = vld [vmem:[%s1 + $0x60] sm:$0xff]
  %v35 = vld [vmem:[%s1 + $0x68] sm:$0xff]
  %v36 = vld [vmem:[%s1 + $0x70] sm:$0xff]
  %v37 = vld [vmem:[%s1 + $0x78] sm:$0xff]
  %v38 = vld [vmem:[%s1 + $0x80] sm:$0xff]
  %v39 = vld [vmem:[%s1 + $0x88] sm:$0xff]
  %v40 = vld [vmem:[%s1 + $0x90] sm:$0xff]
  %v41 = vld [vmem:[%s1 + $0x98] sm:$0xff]
  %v42 = vld [vmem:[%s1 + $0xa0] sm:$0xff]
  %v43 = vld [vmem:[%s1 + $0xa8] sm:$0xff]
  %v44 = vld [vmem:[%s1 + $0xb0] sm:$0xff]
  %v45 = vld [vmem:[%s1 + $0xb8] sm:$0xff]
  %v46 = vld [vmem:[%s1 + $0xc0] sm:$0xff]
  %v47 = vld [vmem:[%s1 + $0xc8] sm:$0xff]
  %v48 = vld [vmem:[%s1 + $0xd0] sm:$0xff]
  %v49 = vld [vmem:[%s1 + $0xd8] sm:$0xff]
  %v50 = vld [vmem:[%s1 + $0xe0] sm:$0xff]
  %v51 = vld [vmem:[%s1 + $0xe8] sm:$0xff]
  %v52 = vld [vmem:[%s1 + $0xf0] sm:$0xff]
  %v53 = vld [vmem:[%s1 + $0xf8] sm:$0xff]
  %v54 = vld [vmem:[%s1 + $0x100] sm:$0xff]
  %v55 = vld [vmem:[%s1 + $0x108] sm:$0xff]
  %v56 = vld [vmem:[%s1 + $0x110] sm:$0xff]
  %v57 = vld [vmem:[%s1 + $0x118] sm:$0xff]
  %v58 = vld [vmem:[%s1 + $0x120] sm:$0xff]
  %v59 = vld [vmem:[%s1 + $0x128] sm:$0xff]
  %v60 = vld [vmem:[%s1 + $0x130] sm:$0xff]
  %v61 = vld [vmem:[%s1 + $0x138] sm:$0xff]
  %v62 = vld [vmem:[%s1 + $0x140] sm:$0xff]
  %v63 = vld [vmem:[%s1 + $0x148] sm:$0xff]
  %v64 = vld [vmem:[%s1 + $0x150] sm:$0xff]
  %v65 = vld [vmem:[%s1 + $0x158] sm:$0xff]
  %v66 = vld [vmem:[%s1 + $0x160] sm:$0xff]
  %v67 = vld [vmem:[%s1 + $0x168] sm:$0xff]
  %v68 = vld [vmem:[%s1 + $0x170] sm:$0xff]
  %v69 = vld [vmem:[%s1 + $0x178] sm:$0xff]
  %v70 = vld [vmem:[%s1 + $0x180] sm:$0xff]
  %v71 = vld [vmem:[%s1 + $0x188] sm:$0xff]
  %v72 = vld [vmem:[%s1 + $0x190] sm:$0xff]
  %v73 = vld [vmem:[%s1 + $0x198] sm:$0xff]
  %v74 = vld [vmem:[%s1 + $0x1a0] sm:$0xff]
  %v75 = vld [vmem:[%s1 + $0x1a8] sm:$0xff]
  %v76 = vld [vmem:[%s1 + $0x1b0] sm:$0xff]
  %v77 = vld [vmem:[%s1 + $0x1b8] sm:$0xff]
  %v78 = vld [vmem:[%s1 + $0x1c0] sm:$0xff]
  %v79 = vld [vmem:[%s2] sm:$0xff]
  %v80 = vld [vmem:[%s2 + $0x8] sm:$0xff]
  %82 = vset.pattern.permute.xlu0 0
  %83 = vperm.xlu0 %82, %v79
  %v84 = vpop.permute.xlu0 %83
  %87 = vset.pattern.permute.xlu0 0
  %88 = vperm.xlu0 %87, %v80
  %v89 = vpop.permute.xlu0 %88
  %vm91 = vcmask 588800
  %v93 = vsel %vm91, %v17, 0
  %v96 = vsel %vm91, %v21, 0
  %98 = vmatpush.msra.mxu0 %v37
  %99 = vmatpush.msra.mxu0 %v36
  %100 = vmatpush.msra.mxu0 %v35
  %101 = vmatpush.msra.mxu0 %v34
  %102 = vmatpush.msra.mxu0 %v33
  %103 = vmatpush.msra.mxu0 %v32
  %104 = vmatpush.msra.mxu0 %v31
  %105 = vmatpush.msra.mxu0 %v30
  %106 = vmatpush.msra.mxu0 %v29
  %107 = vmatpush.msra.mxu0 %v28
  %108 = vmatpush.msra.mxu0 %v27
  %109 = vmatpush.msra.mxu0 %v26
  %110 = vmatpush.msra.mxu0 %v25
  %111 = vmatpush.msra.mxu0 %v24
  %112 = vmatpush.msra.mxu0 %v23
  %113 = vmatpush.msra.mxu0 %v22
  %114 = vmatmul.f32.gmra.mxu0 %v14
  %v115 = vpop.f32.mrf.mxu0
  %v116 = vadd.f32 %v84, %v115
  %117 = vmatmul.f32.gmra.mxu0 %v18
  %v118 = vpop.f32.mrf.mxu0
  %v119 = vadd.f32 %v89, %v118
  %120 = vdwg.mxu0
  %121 = vmatpush.msra.mxu0 %v53
  %122 = vmatpush.msra.mxu0 %v52
  %123 = vmatpush.msra.mxu0 %v51
  %124 = vmatpush.msra.mxu0 %v50
  %125 = vmatpush.msra.mxu0 %v49
  %126 = vmatpush.msra.mxu0 %v48
  %127 = vmatpush.msra.mxu0 %v47
  %128 = vmatpush.msra.mxu0 %v46
  %129 = vmatpush.msra.mxu0 %v45
  %130 = vmatpush.msra.mxu0 %v44
  %131 = vmatpush.msra.mxu0 %v43
  %132 = vmatpush.msra.mxu0 %v42
  %133 = vmatpush.msra.mxu0 %v41
  %134 = vmatpush.msra.mxu0 %v40
  %135 = vmatpush.msra.mxu0 %v39
  %136 = vmatpush.msra.mxu0 %v38
  %137 = vmatmul.f32.gmra.mxu0 %v15
  %v138 = vpop.f32.mrf.mxu0
  %v139 = vadd.f32 %v116, %v138
  %140 = vmatmul.f32.gmra.mxu0 %v19
  %v141 = vpop.f32.mrf.mxu0
  %v142 = vadd.f32 %v119, %v141
  %143 = vdwg.mxu0
  %144 = vmatpush.msra.mxu0 %v69
  %145 = vmatpush.msra.mxu0 %v68
  %146 = vmatpush.msra.mxu0 %v67
  %147 = vmatpush.msra.mxu0 %v66
  %148 = vmatpush.msra.mxu0 %v65
  %149 = vmatpush.msra.mxu0 %v64
  %150 = vmatpush.msra.mxu0 %v63
  %151 = vmatpush.msra.mxu0 %v62
  %152 = vmatpush.msra.mxu0 %v61
  %153 = vmatpush.msra.mxu0 %v60
  %154 = vmatpush.msra.mxu0 %v59
  %155 = vmatpush.msra.mxu0 %v58
  %156 = vmatpush.msra.mxu0 %v57
  %157 = vmatpush.msra.mxu0 %v56
  %158 = vmatpush.msra.mxu0 %v55
  %159 = vmatpush.msra.mxu0 %v54
  %160 = vmatmul.f32.gmra.mxu0 %v16
  %v161 = vpop.f32.mrf.mxu0
  %v162 = vadd.f32 %v139, %v161
  %163 = vmatmul.f32.gmra.mxu0 %v20
  %v164 = vpop.f32.mrf.mxu0
  %v165 = vadd.f32 %v142, %v164
  %166 = vdwg.mxu0
  %167 = vmatpush.msra.mxu0 0.0
  %168 = vmatpush.msra.mxu0 0.0
  %169 = vmatpush.msra.mxu0 0.0
  %170 = vmatpush.msra.mxu0 0.0
  %171 = vmatpush.msra.mxu0 0.0
  %172 = vmatpush.msra.mxu0 0.0
  %173 = vmatpush.msra.mxu0 0.0
  %174 = vmatpush.msra.mxu0 %v78
  %175 = vmatpush.msra.mxu0 %v77
  %176 = vmatpush.msra.mxu0 %v76
  %177 = vmatpush.msra.mxu0 %v75
  %178 = vmatpush.msra.mxu0 %v74
  %179 = vmatpush.msra.mxu0 %v73
  %180 = vmatpush.msra.mxu0 %v72
  %181 = vmatpush.msra.mxu0 %v71
  %182 = vmatpush.msra.mxu0 %v70
  %183 = vmatmul.f32.gmra.mxu0 %v93
  %v184 = vpop.f32.mrf.mxu0
  %v185 = vadd.f32 %v162, %v184
  %186 = vmatmul.f32.gmra.mxu0 %v96
  %v187 = vpop.f32.mrf.mxu0
  %v188 = vadd.f32 %v165, %v187
  %189 = vdwg.mxu0
  %vm190 = vcmp.ge.f32.partialorder %v185, 0.0
  %vm191 = vcmp.ge.f32.partialorder %v188, 0.0
  %192 = vset.pattern.permute.xlu0 1
  %193 = vperm.xlu0 %192, %v79
  %v194 = vpop.permute.xlu0 %193
  %196 = vset.pattern.permute.xlu0 1
  %197 = vperm.xlu0 %196, %v80
  %v198 = vpop.permute.xlu0 %197
  %v200 = vmul.f32 %v194, %v185
  %v201 = vmul.f32 %v198, %v188
  %v202 = vsel %vm190, %v185, %v200
  %v203 = vsel %vm191, %v188, %v201
  %204 = vst [vmem:[%s3] sm:$0xff] %v202
  %205 = vst [vmem:[%s3 + $0x8] sm:$0xff] %v203
  // Predicated region
  $region14: #{forward.86} parent=0 // pred_check
    _
  $region15: #{forward.86} parent=0 // pred_check_branch
    %207 = sbr.rel (0) target = $region17
  $region16: #{forward.86} parent=0 // pred_region
    _
  $region17: #{forward.86} parent=0 // pred_fallthru
    _
  // Predicated region
  $region18: #{forward.86} parent=0 // pred_check
    _
  $region19: #{forward.86} parent=0 // pred_check_branch
    %209 = sbr.rel (0) target = $region21
  $region20: #{forward.86} parent=0 // pred_region
    _
  $region21: #{forward.86} parent=0 // pred_fallthru
    _

// kernel: forward.87
$region0: #{forward.87}
  #allocation0 [shape = 'u32[]', space=smem, size = 0x4, offset = 0x4, fixed_abs, tag = 'smem constant byte address 0x4 - core index']
  #allocation1 [shape = 'u32[72,128]{1,0:T(1,128)}', space=vmem, size = 0x9000, scoped, tag = 'internal scratch']
  %s0 = inlined_call_operand.vmem [shape: f32[16,16], index: 0, kind: input, shape index: {}]
  %s1 = inlined_call_operand.vmem [shape: f32[16,128], index: 1, kind: input, shape index: {}]
  %s2 = inlined_call_operand.vmem [shape: f32[16,2], index: 2, kind: input, shape index: {}]
  %s3 = inlined_call_operand.vmem [shape: f32[16,128], index: 3, kind: output, shape index: {}]
  %s4 = sld [smem:[#allocation0]]
  $region22: #{forward.87} parent=0
    _
  %s6 = ssub.s32 1, %s4
  %s7 = scalar_select 0, %s6, %s4
  // Predicated region
  $region2: #{forward.87} parent=0 // pred_check
    _
  $region3: #{forward.87} parent=0 // pred_check_branch
    %9 = sbr.rel (0) target = $region5
  $region4: #{forward.87} parent=0 // pred_region
    _
  $region5: #{forward.87} parent=0 // pred_fallthru
    _
  // Predicated region
  $region6: #{forward.87} parent=0 // pred_check
    _
  $region7: #{forward.87} parent=0 // pred_check_branch
    %11 = sbr.rel (0) target = $region9
  $region8: #{forward.87} parent=0 // pred_region
    _
  $region9: #{forward.87} parent=0 // pred_fallthru
    _
  // Predicated region
  $region10: #{forward.87} parent=0 // pred_check
    _
  $region11: #{forward.87} parent=0 // pred_check_branch
    %13 = sbr.rel (0) target = $region13
  $region12: #{forward.87} parent=0 // pred_region
    _
  $region13: #{forward.87} parent=0 // pred_fallthru
    _
  %v14 = vld [vmem:[%s0] sm:$0xff]
  %v15 = vld [vmem:[%s0 + $0x8] sm:$0xff]
  %v16 = vld [vmem:[%s1] sm:$0xff]
  %v17 = vld [vmem:[%s1 + $0x8] sm:$0xff]
  %v18 = vld [vmem:[%s2] sm:$0xff]
  %v19 = vld [vmem:[%s2 + $0x8] sm:$0xff]
  %21 = vset.pattern.permute.xlu0 0
  %22 = vperm.xlu0 %21, %v18
  %v23 = vpop.permute.xlu0 %22
  %26 = vset.pattern.permute.xlu0 0
  %27 = vperm.xlu0 %26, %v19
  %v28 = vpop.permute.xlu0 %27
  %vm30 = vcmask 130048
  %v32 = vsel %vm30, %v14, 0
  %v35 = vsel %vm30, %v15, 0
  %37 = vmatpush.msra.mxu0 0.0
  %38 = vmatpush.msra.mxu0 0.0
  %39 = vmatpush.msra.mxu0 0.0
  %40 = vmatpush.msra.mxu0 0.0
  %41 = vmatpush.msra.mxu0 0.0
  %42 = vmatpush.msra.mxu0 0.0
  %43 = vmatpush.msra.mxu0 0.0
  %44 = vmatpush.msra.mxu0 0.0
  %45 = vmatpush.msra.mxu0 0.0
  %46 = vmatpush.msra.mxu0 0.0
  %47 = vmatpush.msra.mxu0 0.0
  %48 = vmatpush.msra.mxu0 0.0
  %49 = vmatpush.msra.mxu0 0.0
  %50 = vmatpush.msra.mxu0 0.0
  %51 = vmatpush.msra.mxu0 %v17
  %52 = vmatpush.msra.mxu0 %v16
  %53 = vmatmul.f32.gmra.mxu0 %v32
  %v54 = vpop.f32.mrf.mxu0
  %v55 = vadd.f32 %v23, %v54
  %56 = vmatmul.f32.gmra.mxu0 %v35
  %v57 = vpop.f32.mrf.mxu0
  %v58 = vadd.f32 %v28, %v57
  %59 = vdwg.mxu0
  %vm60 = vcmp.ge.f32.partialorder %v55, 0.0
  %vm61 = vcmp.ge.f32.partialorder %v58, 0.0
  %62 = vset.pattern.permute.xlu0 1
  %63 = vperm.xlu0 %62, %v18
  %v64 = vpop.permute.xlu0 %63
  %66 = vset.pattern.permute.xlu0 1
  %67 = vperm.xlu0 %66, %v19
  %v68 = vpop.permute.xlu0 %67
  %v70 = vmul.f32 %v64, %v55
  %v71 = vmul.f32 %v68, %v58
  %v72 = vsel %vm60, %v55, %v70
  %v73 = vsel %vm61, %v58, %v71
  %74 = vst [vmem:[%s3] sm:$0xff] %v72
  %75 = vst [vmem:[%s3 + $0x8] sm:$0xff] %v73
  // Predicated region
  $region14: #{forward.87} parent=0 // pred_check
    _
  $region15: #{forward.87} parent=0 // pred_check_branch
    %77 = sbr.rel (0) target = $region17
  $region16: #{forward.87} parent=0 // pred_region
    _
  $region17: #{forward.87} parent=0 // pred_fallthru
    _
  // Predicated region
  $region18: #{forward.87} parent=0 // pred_check
    _
  $region19: #{forward.87} parent=0 // pred_check_branch
    %79 = sbr.rel (0) target = $region21
  $region20: #{forward.87} parent=0 // pred_region
    _
  $region21: #{forward.87} parent=0 // pred_fallthru
    _

// kernel: forward.93
$region0: #{forward.93}
  #allocation0 [shape = 'u32[]', space=smem, size = 0x4, offset = 0x4, fixed_abs, tag = 'smem constant byte address 0x4 - core index']
  #allocation1 [shape = 'u32[72,128]{1,0:T(1,128)}', space=vmem, size = 0x9000, scoped, tag = 'internal scratch']
  %s0 = inlined_call_operand.vmem [shape: f32[48,144], index: 0, kind: input, shape index: {}]
  %s1 = inlined_call_operand.vmem [shape: f32[144,128], index: 1, kind: input, shape index: {}]
  %s2 = inlined_call_operand.vmem [shape: f32[48,2], index: 2, kind: input, shape index: {}]
  %s3 = inlined_call_operand.vmem [shape: f32[48,128], index: 3, kind: output, shape index: {}]
  %s4 = sld [smem:[#allocation0]]
  $region22: #{forward.93} parent=0
    _
  %s6 = ssub.s32 1, %s4
  %s7 = scalar_select 0, %s6, %s4
  // Predicated region
  $region2: #{forward.93} parent=0 // pred_check
    _
  $region3: #{forward.93} parent=0 // pred_check_branch
    %9 = sbr.rel (0) target = $region5
  $region4: #{forward.93} parent=0 // pred_region
    _
  $region5: #{forward.93} parent=0 // pred_fallthru
    _
  // Predicated region
  $region6: #{forward.93} parent=0 // pred_check
    _
  $region7: #{forward.93} parent=0 // pred_check_branch
    %11 = sbr.rel (0) target = $region9
  $region8: #{forward.93} parent=0 // pred_region
    _
  $region9: #{forward.93} parent=0 // pred_fallthru
    _
  // Predicated region
  $region10: #{forward.93} parent=0 // pred_check
    _
  $region11: #{forward.93} parent=0 // pred_check_branch
    %13 = sbr.rel (0) target = $region13
  $region12: #{forward.93} parent=0 // pred_region
    _
  $region13: #{forward.93} parent=0 // pred_fallthru
    _
  %v14 = vld [vmem:[%s0] sm:$0xff]
  %v15 = vld [vmem:[%s0 + $0x8] sm:$0xff]
  %v16 = vld [vmem:[%s0 + $0x10] sm:$0xff]
  %v17 = vld [vmem:[%s0 + $0x18] sm:$0xff]
  %v18 = vld [vmem:[%s0 + $0x20] sm:$0xff]
  %v19 = vld [vmem:[%s0 + $0x28] sm:$0xff]
  %v20 = vld [vmem:[%s0 + $0x30] sm:$0xff]
  %v21 = vld [vmem:[%s0 + $0x38] sm:$0xff]
  %v22 = vld [vmem:[%s0 + $0x40] sm:$0xff]
  %v23 = vld [vmem:[%s0 + $0x48] sm:$0xff]
  %v24 = vld [vmem:[%s0 + $0x50] sm:$0xff]
  %v25 = vld [vmem:[%s0 + $0x58] sm:$0xff]
  %v26 = vld [vmem:[%s1] sm:$0xff]
  %v27 = vld [vmem:[%s1 + $0x8] sm:$0xff]
  %v28 = vld [vmem:[%s1 + $0x10] sm:$0xff]
  %v29 = vld [vmem:[%s1 + $0x18] sm:$0xff]
  %v30 = vld [vmem:[%s1 + $0x20] sm:$0xff]
  %v31 = vld [vmem:[%s1 + $0x28] sm:$0xff]
  %v32 = vld [vmem:[%s1 + $0x30] sm:$0xff]
  %v33 = vld [vmem:[%s1 + $0x38] sm:$0xff]
  %v34 = vld [vmem:[%s1 + $0x40] sm:$0xff]
  %v35 = vld [vmem:[%s1 + $0x48] sm:$0xff]
  %v36 = vld [vmem:[%s1 + $0x50] sm:$0xff]
  %v37 = vld [vmem:[%s1 + $0x58] sm:$0xff]
  %v38 = vld [vmem:[%s1 + $0x60] sm:$0xff]
  %v39 = vld [vmem:[%s1 + $0x68] sm:$0xff]
  %v40 = vld [vmem:[%s1 + $0x70] sm:$0xff]
  %v41 = vld [vmem:[%s1 + $0x78] sm:$0xff]
  %v42 = vld [vmem:[%s1 + $0x80] sm:$0xff]
  %v43 = vld [vmem:[%s1 + $0x88] sm:$0xff]
  %v44 = vld [vmem:[%s2] sm:$0xff]
  %v45 = vld [vmem:[%s2 + $0x8] sm:$0xff]
  %v46 = vld [vmem:[%s2 + $0x10] sm:$0xff]
  %v47 = vld [vmem:[%s2 + $0x18] sm:$0xff]
  %v48 = vld [vmem:[%s2 + $0x20] sm:$0xff]
  %v49 = vld [vmem:[%s2 + $0x28] sm:$0xff]
  %51 = vset.pattern.permute.xlu0 0
  %52 = vperm.xlu0 %51, %v44
  %v53 = vpop.permute.xlu0 %52
  %56 = vset.pattern.permute.xlu0 0
  %57 = vperm.xlu0 %56, %v45
  %v58 = vpop.permute.xlu0 %57
  %61 = vset.pattern.permute.xlu0 0
  %62 = vperm.xlu0 %61, %v46
  %v63 = vpop.permute.xlu0 %62
  %66 = vset.pattern.permute.xlu0 0
  %67 = vperm.xlu0 %66, %v47
  %v68 = vpop.permute.xlu0 %67
  %71 = vset.pattern.permute.xlu0 0
  %72 = vperm.xlu0 %71, %v48
  %v73 = vpop.permute.xlu0 %72
  %76 = vset.pattern.permute.xlu0 0
  %77 = vperm.xlu0 %76, %v49
  %v78 = vpop.permute.xlu0 %77
  %vm80 = vcmask 130048
  %v82 = vsel %vm80, %v15, 0
  %v85 = vsel %vm80, %v17, 0
  %v88 = vsel %vm80, %v19, 0
  %v91 = vsel %vm80, %v21, 0
  %v94 = vsel %vm80, %v23, 0
  %v97 = vsel %vm80, %v25, 0
  %99 = vmatpush.msra.mxu0 %v41
  %100 = vmatpush.msra.mxu0 %v40
  %101 = vmatpush.msra.mxu0 %v39
  %102 = vmatpush.msra.mxu0 %v38
  %103 = vmatpush.msra.mxu0 %v37
  %104 = vmatpush.msra.mxu0 %v36
  %105 = vmatpush.msra.mxu0 %v35
  %106 = vmatpush.msra.mxu0 %v34
  %107 = vmatpush.msra.mxu0 %v33
  %108 = vmatpush.msra.mxu0 %v32
  %109 = vmatpush.msra.mxu0 %v31
  %110 = vmatpush.msra.mxu0 %v30
  %111 = vmatpush.msra.mxu0 %v29
  %112 = vmatpush.msra.mxu0 %v28
  %113 = vmatpush.msra.mxu0 %v27
  %114 = vmatpush.msra.mxu0 %v26
  %115 = vmatmul.f32.gmra.mxu0 %v14
  %v116 = vpop.f32.mrf.mxu0
  %v117 = vadd.f32 %v53, %v116
  %118 = vmatmul.f32.gmra.mxu0 %v16
  %v119 = vpop.f32.mrf.mxu0
  %v120 = vadd.f32 %v58, %v119
  %121 = vmatmul.f32.gmra.mxu0 %v18
  %v122 = vpop.f32.mrf.mxu0
  %v123 = vadd.f32 %v63, %v122
  %124 = vmatmul.f32.gmra.mxu0 %v20
  %v125 = vpop.f32.mrf.mxu0
  %v126 = vadd.f32 %v68, %v125
  %127 = vmatmul.f32.gmra.mxu0 %v22
  %v128 = vpop.f32.mrf.mxu0
  %v129 = vadd.f32 %v73, %v128
  %130 = vmatmul.f32.gmra.mxu0 %v24
  %v131 = vpop.f32.mrf.mxu0
  %v132 = vadd.f32 %v78, %v131
  %133 = vdwg.mxu0
  %134 = vmatpush.msra.mxu0 0.0
  %135 = vmatpush.msra.mxu0 0.0
  %136 = vmatpush.msra.mxu0 0.0
  %137 = vmatpush.msra.mxu0 0.0
  %138 = vmatpush.msra.mxu0 0.0
  %139 = vmatpush.msra.mxu0 0.0
  %140 = vmatpush.msra.mxu0 0.0
  %141 = vmatpush.msra.mxu0 0.0
  %142 = vmatpush.msra.mxu0 0.0
  %143 = vmatpush.msra.mxu0 0.0
  %144 = vmatpush.msra.mxu0 0.0
  %145 = vmatpush.msra.mxu0 0.0
  %146 = vmatpush.msra.mxu0 0.0
  %147 = vmatpush.msra.mxu0 0.0
  %148 = vmatpush.msra.mxu0 %v43
  %149 = vmatpush.msra.mxu0 %v42
  %150 = vmatmul.f32.gmra.mxu0 %v82
  %v151 = vpop.f32.mrf.mxu0
  %v152 = vadd.f32 %v117, %v151
  %153 = vmatmul.f32.gmra.mxu0 %v85
  %v154 = vpop.f32.mrf.mxu0
  %v155 = vadd.f32 %v120, %v154
  %156 = vmatmul.f32.gmra.mxu0 %v88
  %v157 = vpop.f32.mrf.mxu0
  %v158 = vadd.f32 %v123, %v157
  %159 = vmatmul.f32.gmra.mxu0 %v91
  %v160 = vpop.f32.mrf.mxu0
  %v161 = vadd.f32 %v126, %v160
  %162 = vmatmul.f32.gmra.mxu0 %v94
  %v163 = vpop.f32.mrf.mxu0
  %v164 = vadd.f32 %v129, %v163
  %165 = vmatmul.f32.gmra.mxu0 %v97
  %v166 = vpop.f32.mrf.mxu0
  %v167 = vadd.f32 %v132, %v166
  %168 = vdwg.mxu0
  %169 = vst [vmem:[%s3] sm:$0xff] %v152
  %170 = vst [vmem:[%s3 + $0x8] sm:$0xff] %v155
  %171 = vst [vmem:[%s3 + $0x10] sm:$0xff] %v158
  %172 = vst [vmem:[%s3 + $0x18] sm:$0xff] %v161
  %173 = vst [vmem:[%s3 + $0x20] sm:$0xff] %v164
  %174 = vst [vmem:[%s3 + $0x28] sm:$0xff] %v167
  // Predicated region
  $region14: #{forward.93} parent=0 // pred_check
    _
  $region15: #{forward.93} parent=0 // pred_check_branch
    %176 = sbr.rel (0) target = $region17
  $region16: #{forward.93} parent=0 // pred_region
    _
  $region17: #{forward.93} parent=0 // pred_fallthru
    _
  // Predicated region
  $region18: #{forward.93} parent=0 // pred_check
    _
  $region19: #{forward.93} parent=0 // pred_check_branch
    %178 = sbr.rel (0) target = $region21
  $region20: #{forward.93} parent=0 // pred_region
    _
  $region21: #{forward.93} parent=0 // pred_fallthru
    _

// kernel: forward.109
$region0: #{forward.109}
  #allocation0 [shape = 'u32[]', space=smem, size = 0x4, offset = 0x4, fixed_abs, tag = 'smem constant byte address 0x4 - core index']
  #allocation1 [shape = 'u32[72,128]{1,0:T(1,128)}', space=vmem, size = 0x9000, scoped, tag = 'internal scratch']
  %s0 = inlined_call_operand.vmem [shape: f32[48,128], index: 0, kind: input, shape index: {}]
  %s1 = inlined_call_operand.vmem [shape: f32[128,128], index: 1, kind: input, shape index: {}]
  %s2 = inlined_call_operand.vmem [shape: f32[48,2], index: 2, kind: input, shape index: {}]
  %s3 = inlined_call_operand.vmem [shape: f32[48,128], index: 3, kind: output, shape index: {}]
  %s4 = sld [smem:[#allocation0]]
  $region22: #{forward.109} parent=0
    _
  %s6 = ssub.s32 1, %s4
  %s7 = scalar_select 0, %s6, %s4
  // Predicated region
  $region2: #{forward.109} parent=0 // pred_check
    _
  $region3: #{forward.109} parent=0 // pred_check_branch
    %9 = sbr.rel (0) target = $region5
  $region4: #{forward.109} parent=0 // pred_region
    _
  $region5: #{forward.109} parent=0 // pred_fallthru
    _
  // Predicated region
  $region6: #{forward.109} parent=0 // pred_check
    _
  $region7: #{forward.109} parent=0 // pred_check_branch
    %11 = sbr.rel (0) target = $region9
  $region8: #{forward.109} parent=0 // pred_region
    _
  $region9: #{forward.109} parent=0 // pred_fallthru
    _
  // Predicated region
  $region10: #{forward.109} parent=0 // pred_check
    _
  $region11: #{forward.109} parent=0 // pred_check_branch
    %13 = sbr.rel (0) target = $region13
  $region12: #{forward.109} parent=0 // pred_region
    _
  $region13: #{forward.109} parent=0 // pred_fallthru
    _
  %v14 = vld [vmem:[%s0] sm:$0xff]
  %v15 = vld [vmem:[%s0 + $0x8] sm:$0xff]
  %v16 = vld [vmem:[%s0 + $0x10] sm:$0xff]
  %v17 = vld [vmem:[%s0 + $0x18] sm:$0xff]
  %v18 = vld [vmem:[%s0 + $0x20] sm:$0xff]
  %v19 = vld [vmem:[%s0 + $0x28] sm:$0xff]
  %v20 = vld [vmem:[%s1] sm:$0xff]
  %v21 = vld [vmem:[%s1 + $0x8] sm:$0xff]
  %v22 = vld [vmem:[%s1 + $0x10] sm:$0xff]
  %v23 = vld [vmem:[%s1 + $0x18] sm:$0xff]
  %v24 = vld [vmem:[%s1 + $0x20] sm:$0xff]
  %v25 = vld [vmem:[%s1 + $0x28] sm:$0xff]
  %v26 = vld [vmem:[%s1 + $0x30] sm:$0xff]
  %v27 = vld [vmem:[%s1 + $0x38] sm:$0xff]
  %v28 = vld [vmem:[%s1 + $0x40] sm:$0xff]
  %v29 = vld [vmem:[%s1 + $0x48] sm:$0xff]
  %v30 = vld [vmem:[%s1 + $0x50] sm:$0xff]
  %v31 = vld [vmem:[%s1 + $0x58] sm:$0xff]
  %v32 = vld [vmem:[%s1 + $0x60] sm:$0xff]
  %v33 = vld [vmem:[%s1 + $0x68] sm:$0xff]
  %v34 = vld [vmem:[%s1 + $0x70] sm:$0xff]
  %v35 = vld [vmem:[%s1 + $0x78] sm:$0xff]
  %v36 = vld [vmem:[%s2] sm:$0xff]
  %v37 = vld [vmem:[%s2 + $0x8] sm:$0xff]
  %v38 = vld [vmem:[%s2 + $0x10] sm:$0xff]
  %v39 = vld [vmem:[%s2 + $0x18] sm:$0xff]
  %v40 = vld [vmem:[%s2 + $0x20] sm:$0xff]
  %v41 = vld [vmem:[%s2 + $0x28] sm:$0xff]
  %43 = vset.pattern.permute.xlu0 0
  %44 = vperm.xlu0 %43, %v36
  %v45 = vpop.permute.xlu0 %44
  %48 = vset.pattern.permute.xlu0 0
  %49 = vperm.xlu0 %48, %v37
  %v50 = vpop.permute.xlu0 %49
  %53 = vset.pattern.permute.xlu0 0
  %54 = vperm.xlu0 %53, %v38
  %v55 = vpop.permute.xlu0 %54
  %58 = vset.pattern.permute.xlu0 0
  %59 = vperm.xlu0 %58, %v39
  %v60 = vpop.permute.xlu0 %59
  %63 = vset.pattern.permute.xlu0 0
  %64 = vperm.xlu0 %63, %v40
  %v65 = vpop.permute.xlu0 %64
  %68 = vset.pattern.permute.xlu0 0
  %69 = vperm.xlu0 %68, %v41
  %v70 = vpop.permute.xlu0 %69
  %72 = vmatpush.msra.mxu0 %v35
  %73 = vmatpush.msra.mxu0 %v34
  %74 = vmatpush.msra.mxu0 %v33
  %75 = vmatpush.msra.mxu0 %v32
  %76 = vmatpush.msra.mxu0 %v31
  %77 = vmatpush.msra.mxu0 %v30
  %78 = vmatpush.msra.mxu0 %v29
  %79 = vmatpush.msra.mxu0 %v28
  %80 = vmatpush.msra.mxu0 %v27
  %81 = vmatpush.msra.mxu0 %v26
  %82 = vmatpush.msra.mxu0 %v25
  %83 = vmatpush.msra.mxu0 %v24
  %84 = vmatpush.msra.mxu0 %v23
  %85 = vmatpush.msra.mxu0 %v22
  %86 = vmatpush.msra.mxu0 %v21
  %87 = vmatpush.msra.mxu0 %v20
  %88 = vmatmul.f32.gmra.mxu0 %v14
  %v89 = vpop.f32.mrf.mxu0
  %v90 = vadd.f32 %v45, %v89
  %91 = vmatmul.f32.gmra.mxu0 %v15
  %v92 = vpop.f32.mrf.mxu0
  %v93 = vadd.f32 %v50, %v92
  %94 = vmatmul.f32.gmra.mxu0 %v16
  %v95 = vpop.f32.mrf.mxu0
  %v96 = vadd.f32 %v55, %v95
  %97 = vmatmul.f32.gmra.mxu0 %v17
  %v98 = vpop.f32.mrf.mxu0
  %v99 = vadd.f32 %v60, %v98
  %100 = vmatmul.f32.gmra.mxu0 %v18
  %v101 = vpop.f32.mrf.mxu0
  %v102 = vadd.f32 %v65, %v101
  %103 = vmatmul.f32.gmra.mxu0 %v19
  %v104 = vpop.f32.mrf.mxu0
  %v105 = vadd.f32 %v70, %v104
  %106 = vdwg.mxu0
  %107 = vst [vmem:[%s3] sm:$0xff] %v90
  %108 = vst [vmem:[%s3 + $0x8] sm:$0xff] %v93
  %109 = vst [vmem:[%s3 + $0x10] sm:$0xff] %v96
  %110 = vst [vmem:[%s3 + $0x18] sm:$0xff] %v99
  %111 = vst [vmem:[%s3 + $0x20] sm:$0xff] %v102
  %112 = vst [vmem:[%s3 + $0x28] sm:$0xff] %v105
  // Predicated region
  $region14: #{forward.109} parent=0 // pred_check
    _
  $region15: #{forward.109} parent=0 // pred_check_branch
    %114 = sbr.rel (0) target = $region17
  $region16: #{forward.109} parent=0 // pred_region
    _
  $region17: #{forward.109} parent=0 // pred_fallthru
    _
  // Predicated region
  $region18: #{forward.109} parent=0 // pred_check
    _
  $region19: #{forward.109} parent=0 // pred_check_branch
    %116 = sbr.rel (0) target = $region21
  $region20: #{forward.109} parent=0 // pred_region
    _
  $region21: #{forward.109} parent=0 // pred_fallthru
    _

// kernel: forward.85
$region0: #{forward.85}
  #allocation0 [shape = 'u32[]', space=smem, size = 0x4, offset = 0x4, fixed_abs, tag = 'smem constant byte address 0x4 - core index']
  #allocation1 [shape = 'u32[72,128]{1,0:T(1,128)}', space=vmem, size = 0x9000, scoped, tag = 'internal scratch']
  %s0 = inlined_call_operand.vmem [shape: f32[48,576], index: 0, kind: input, shape index: {}]
  %s1 = inlined_call_operand.vmem [shape: f32[576,128], index: 1, kind: input, shape index: {}]
  %s2 = inlined_call_operand.vmem [shape: f32[48,2], index: 2, kind: input, shape index: {}]
  %s3 = inlined_call_operand.vmem [shape: f32[48,128], index: 3, kind: output, shape index: {}]
  %s4 = sld [smem:[#allocation0]]
  $region22: #{forward.85} parent=0
    _
  %s6 = ssub.s32 1, %s4
  %s7 = scalar_select 0, %s6, %s4
  // Predicated region
  $region2: #{forward.85} parent=0 // pred_check
    _
  $region3: #{forward.85} parent=0 // pred_check_branch
    %9 = sbr.rel (0) target = $region5
  $region4: #{forward.85} parent=0 // pred_region
    _
  $region5: #{forward.85} parent=0 // pred_fallthru
    _
  // Predicated region
  $region6: #{forward.85} parent=0 // pred_check
    _
  $region7: #{forward.85} parent=0 // pred_check_branch
    %11 = sbr.rel (0) target = $region9
  $region8: #{forward.85} parent=0 // pred_region
    _
  $region9: #{forward.85} parent=0 // pred_fallthru
    _
  // Predicated region
  $region10: #{forward.85} parent=0 // pred_check
    _
  $region11: #{forward.85} parent=0 // pred_check_branch
    %13 = sbr.rel (0) target = $region13
  $region12: #{forward.85} parent=0 // pred_region
    _
  $region13: #{forward.85} parent=0 // pred_fallthru
    _
  %v14 = vld [vmem:[%s0] sm:$0xff]
  %v15 = vld [vmem:[%s0 + $0x8] sm:$0xff]
  %v16 = vld [vmem:[%s0 + $0x10] sm:$0xff]
  %v17 = vld [vmem:[%s0 + $0x18] sm:$0xff]
  %v18 = vld [vmem:[%s0 + $0x20] sm:$0xff]
  %v19 = vld [vmem:[%s0 + $0x28] sm:$0xff]
  %v20 = vld [vmem:[%s0 + $0x30] sm:$0xff]
  %v21 = vld [vmem:[%s0 + $0x38] sm:$0xff]
  %v22 = vld [vmem:[%s0 + $0x40] sm:$0xff]
  %v23 = vld [vmem:[%s0 + $0x48] sm:$0xff]
  %v24 = vld [vmem:[%s0 + $0x50] sm:$0xff]
  %v25 = vld [vmem:[%s0 + $0x58] sm:$0xff]
  %v26 = vld [vmem:[%s0 + $0x60] sm:$0xff]
  %v27 = vld [vmem:[%s0 + $0x68] sm:$0xff]
  %v28 = vld [vmem:[%s0 + $0x70] sm:$0xff]
  %v29 = vld [vmem:[%s0 + $0x78] sm:$0xff]
  %v30 = vld [vmem:[%s0 + $0x80] sm:$0xff]
  %v31 = vld [vmem:[%s0 + $0x88] sm:$0xff]
  %v32 = vld [vmem:[%s0 + $0x90] sm:$0xff]
  %v33 = vld [vmem:[%s0 + $0x98] sm:$0xff]
  %v34 = vld [vmem:[%s0 + $0xa0] sm:$0xff]
  %v35 = vld [vmem:[%s0 + $0xa8] sm:$0xff]
  %v36 = vld [vmem:[%s0 + $0xb0] sm:$0xff]
  %v37 = vld [vmem:[%s0 + $0xb8] sm:$0xff]
  %v38 = vld [vmem:[%s0 + $0xc0] sm:$0xff]
  %v39 = vld [vmem:[%s0 + $0xc8] sm:$0xff]
  %v40 = vld [vmem:[%s0 + $0xd0] sm:$0xff]
  %v41 = vld [vmem:[%s0 + $0xd8] sm:$0xff]
  %v42 = vld [vmem:[%s0 + $0xe0] sm:$0xff]
  %v43 = vld [vmem:[%s0 + $0xe8] sm:$0xff]
  %v44 = vld [vmem:[%s1] sm:$0xff]
  %v45 = vld [vmem:[%s1 + $0x8] sm:$0xff]
  %v46 = vld [vmem:[%s1 + $0x10] sm:$0xff]
  %v47 = vld [vmem:[%s1 + $0x18] sm:$0xff]
  %v48 = vld [vmem:[%s1 + $0x20] sm:$0xff]
  %v49 = vld [vmem:[%s1 + $0x28] sm:$0xff]
  %v50 = vld [vmem:[%s1 + $0x30] sm:$0xff]
  %v51 = vld [vmem:[%s1 + $0x38] sm:$0xff]
  %v52 = vld [vmem:[%s1 + $0x40] sm:$0xff]
  %v53 = vld [vmem:[%s1 + $0x48] sm:$0xff]
  %v54 = vld [vmem:[%s1 + $0x50] sm:$0xff]
  %v55 = vld [vmem:[%s1 + $0x58] sm:$0xff]
  %v56 = vld [vmem:[%s1 + $0x60] sm:$0xff]
  %v57 = vld [vmem:[%s1 + $0x68] sm:$0xff]
  %v58 = vld [vmem:[%s1 + $0x70] sm:$0xff]
  %v59 = vld [vmem:[%s1 + $0x78] sm:$0xff]
  %v60 = vld [vmem:[%s1 + $0x80] sm:$0xff]
  %v61 = vld [vmem:[%s1 + $0x88] sm:$0xff]
  %v62 = vld [vmem:[%s1 + $0x90] sm:$0xff]
  %v63 = vld [vmem:[%s1 + $0x98] sm:$0xff]
  %v64 = vld [vmem:[%s1 + $0xa0] sm:$0xff]
  %v65 = vld [vmem:[%s1 + $0xa8] sm:$0xff]
  %v66 = vld [vmem:[%s1 + $0xb0] sm:$0xff]
  %v67 = vld [vmem:[%s1 + $0xb8] sm:$0xff]
  %v68 = vld [vmem:[%s1 + $0xc0] sm:$0xff]
  %v69 = vld [vmem:[%s1 + $0xc8] sm:$0xff]
  %v70 = vld [vmem:[%s1 + $0xd0] sm:$0xff]
  %v71 = vld [vmem:[%s1 + $0xd8] sm:$0xff]
  %v72 = vld [vmem:[%s1 + $0xe0] sm:$0xff]
  %v73 = vld [vmem:[%s1 + $0xe8] sm:$0xff]
  %v74 = vld [vmem:[%s1 + $0xf0] sm:$0xff]
  %v75 = vld [vmem:[%s1 + $0xf8] sm:$0xff]
  %v76 = vld [vmem:[%s1 + $0x100] sm:$0xff]
  %v77 = vld [vmem:[%s1 + $0x108] sm:$0xff]
  %v78 = vld [vmem:[%s1 + $0x110] sm:$0xff]
  %v79 = vld [vmem:[%s1 + $0x118] sm:$0xff]
  %v80 = vld [vmem:[%s1 + $0x120] sm:$0xff]
  %v81 = vld [vmem:[%s1 + $0x128] sm:$0xff]
  %v82 = vld [vmem:[%s1 + $0x130] sm:$0xff]
  %v83 = vld [vmem:[%s1 + $0x138] sm:$0xff]
  %v84 = vld [vmem:[%s1 + $0x140] sm:$0xff]
  %v85 = vld [vmem:[%s1 + $0x148] sm:$0xff]
  %v86 = vld [vmem:[%s1 + $0x150] sm:$0xff]
  %v87 = vld [vmem:[%s1 + $0x158] sm:$0xff]
  %v88 = vld [vmem:[%s1 + $0x160] sm:$0xff]
  %v89 = vld [vmem:[%s1 + $0x168] sm:$0xff]
  %v90 = vld [vmem:[%s1 + $0x170] sm:$0xff]
  %v91 = vld [vmem:[%s1 + $0x178] sm:$0xff]
  %v92 = vld [vmem:[%s1 + $0x180] sm:$0xff]
  %v93 = vld [vmem:[%s1 + $0x188] sm:$0xff]
  %v94 = vld [vmem:[%s1 + $0x190] sm:$0xff]
  %v95 = vld [vmem:[%s1 + $0x198] sm:$0xff]
  %v96 = vld [vmem:[%s1 + $0x1a0] sm:$0xff]
  %v97 = vld [vmem:[%s1 + $0x1a8] sm:$0xff]
  %v98 = vld [vmem:[%s1 + $0x1b0] sm:$0xff]
  %v99 = vld [vmem:[%s1 + $0x1b8] sm:$0xff]
  %v100 = vld [vmem:[%s1 + $0x1c0] sm:$0xff]
  %v101 = vld [vmem:[%s1 + $0x1c8] sm:$0xff]
  %v102 = vld [vmem:[%s1 + $0x1d0] sm:$0xff]
  %v103 = vld [vmem:[%s1 + $0x1d8] sm:$0xff]
  %v104 = vld [vmem:[%s1 + $0x1e0] sm:$0xff]
  %v105 = vld [vmem:[%s1 + $0x1e8] sm:$0xff]
  %v106 = vld [vmem:[%s1 + $0x1f0] sm:$0xff]
  %v107 = vld [vmem:[%s1 + $0x1f8] sm:$0xff]
  %v108 = vld [vmem:[%s1 + $0x200] sm:$0xff]
  %v109 = vld [vmem:[%s1 + $0x208] sm:$0xff]
  %v110 = vld [vmem:[%s1 + $0x210] sm:$0xff]
  %v111 = vld [vmem:[%s1 + $0x218] sm:$0xff]
  %v112 = vld [vmem:[%s1 + $0x220] sm:$0xff]
  %v113 = vld [vmem:[%s1 + $0x228] sm:$0xff]
  %v114 = vld [vmem:[%s1 + $0x230] sm:$0xff]
  %v115 = vld [vmem:[%s1 + $0x238] sm:$0xff]
  %v116 = vld [vmem:[%s2] sm:$0xff]
  %v117 = vld [vmem:[%s2 + $0x8] sm:$0xff]
  %v118 = vld [vmem:[%s2 + $0x10] sm:$0xff]
  %v119 = vld [vmem:[%s2 + $0x18] sm:$0xff]
  %v120 = vld [vmem:[%s2 + $0x20] sm:$0xff]
  %v121 = vld [vmem:[%s2 + $0x28] sm:$0xff]
  %123 = vset.pattern.permute.xlu0 0
  %124 = vperm.xlu0 %123, %v116
  %v125 = vpop.permute.xlu0 %124
  %128 = vset.pattern.permute.xlu0 0
  %129 = vperm.xlu0 %128, %v117
  %v130 = vpop.permute.xlu0 %129
  %133 = vset.pattern.permute.xlu0 0
  %134 = vperm.xlu0 %133, %v118
  %v135 = vpop.permute.xlu0 %134
  %138 = vset.pattern.permute.xlu0 0
  %139 = vperm.xlu0 %138, %v119
  %v140 = vpop.permute.xlu0 %139
  %143 = vset.pattern.permute.xlu0 0
  %144 = vperm.xlu0 %143, %v120
  %v145 = vpop.permute.xlu0 %144
  %148 = vset.pattern.permute.xlu0 0
  %149 = vperm.xlu0 %148, %v121
  %v150 = vpop.permute.xlu0 %149
  %vm152 = vcmask 523264
  %v154 = vsel %vm152, %v18, 0
  %v157 = vsel %vm152, %v23, 0
  %v160 = vsel %vm152, %v28, 0
  %v163 = vsel %vm152, %v33, 0
  %v166 = vsel %vm152, %v38, 0
  %v169 = vsel %vm152, %v43, 0
  %171 = vmatpush.msra.mxu0 %v59
  %172 = vmatpush.msra.mxu0 %v58
  %173 = vmatpush.msra.mxu0 %v57
  %174 = vmatpush.msra.mxu0 %v56
  %175 = vmatpush.msra.mxu0 %v55
  %176 = vmatpush.msra.mxu0 %v54
  %177 = vmatpush.msra.mxu0 %v53
  %178 = vmatpush.msra.mxu0 %v52
  %179 = vmatpush.msra.mxu0 %v51
  %180 = vmatpush.msra.mxu0 %v50
  %181 = vmatpush.msra.mxu0 %v49
  %182 = vmatpush.msra.mxu0 %v48
  %183 = vmatpush.msra.mxu0 %v47
  %184 = vmatpush.msra.mxu0 %v46
  %185 = vmatpush.msra.mxu0 %v45
  %186 = vmatpush.msra.mxu0 %v44
  %187 = vmatmul.f32.gmra.mxu0 %v14
  %v188 = vpop.f32.mrf.mxu0
  %v189 = vadd.f32 %v125, %v188
  %190 = vmatmul.f32.gmra.mxu0 %v19
  %v191 = vpop.f32.mrf.mxu0
  %v192 = vadd.f32 %v130, %v191
  %193 = vmatmul.f32.gmra.mxu0 %v24
  %v194 = vpop.f32.mrf.mxu0
  %v195 = vadd.f32 %v135, %v194
  %196 = vmatmul.f32.gmra.mxu0 %v29
  %v197 = vpop.f32.mrf.mxu0
  %v198 = vadd.f32 %v140, %v197
  %199 = vmatmul.f32.gmra.mxu0 %v34
  %v200 = vpop.f32.mrf.mxu0
  %v201 = vadd.f32 %v145, %v200
  %202 = vmatmul.f32.gmra.mxu0 %v39
  %v203 = vpop.f32.mrf.mxu0
  %v204 = vadd.f32 %v150, %v203
  %205 = vdwg.mxu0
  %206 = vmatpush.msra.mxu0 %v75
  %207 = vmatpush.msra.mxu0 %v74
  %208 = vmatpush.msra.mxu0 %v73
  %209 = vmatpush.msra.mxu0 %v72
  %210 = vmatpush.msra.mxu0 %v71
  %211 = vmatpush.msra.mxu0 %v70
  %212 = vmatpush.msra.mxu0 %v69
  %213 = vmatpush.msra.mxu0 %v68
  %214 = vmatpush.msra.mxu0 %v67
  %215 = vmatpush.msra.mxu0 %v66
  %216 = vmatpush.msra.mxu0 %v65
  %217 = vmatpush.msra.mxu0 %v64
  %218 = vmatpush.msra.mxu0 %v63
  %219 = vmatpush.msra.mxu0 %v62
  %220 = vmatpush.msra.mxu0 %v61
  %221 = vmatpush.msra.mxu0 %v60
  %222 = vmatmul.f32.gmra.mxu0 %v15
  %v223 = vpop.f32.mrf.mxu0
  %v224 = vadd.f32 %v189, %v223
  %225 = vmatmul.f32.gmra.mxu0 %v20
  %v226 = vpop.f32.mrf.mxu0
  %v227 = vadd.f32 %v192, %v226
  %228 = vmatmul.f32.gmra.mxu0 %v25
  %v229 = vpop.f32.mrf.mxu0
  %v230 = vadd.f32 %v195, %v229
  %231 = vmatmul.f32.gmra.mxu0 %v30
  %v232 = vpop.f32.mrf.mxu0
  %v233 = vadd.f32 %v198, %v232
  %234 = vmatmul.f32.gmra.mxu0 %v35
  %v235 = vpop.f32.mrf.mxu0
  %v236 = vadd.f32 %v201, %v235
  %237 = vmatmul.f32.gmra.mxu0 %v40
  %v238 = vpop.f32.mrf.mxu0
  %v239 = vadd.f32 %v204, %v238
  %240 = vdwg.mxu0
  %241 = vmatpush.msra.mxu0 %v91
  %242 = vmatpush.msra.mxu0 %v90
  %243 = vmatpush.msra.mxu0 %v89
  %244 = vmatpush.msra.mxu0 %v88
  %245 = vmatpush.msra.mxu0 %v87
  %246 = vmatpush.msra.mxu0 %v86
  %247 = vmatpush.msra.mxu0 %v85
  %248 = vmatpush.msra.mxu0 %v84
  %249 = vmatpush.msra.mxu0 %v83
  %250 = vmatpush.msra.mxu0 %v82
  %251 = vmatpush.msra.mxu0 %v81
  %252 = vmatpush.msra.mxu0 %v80
  %253 = vmatpush.msra.mxu0 %v79
  %254 = vmatpush.msra.mxu0 %v78
  %255 = vmatpush.msra.mxu0 %v77
  %256 = vmatpush.msra.mxu0 %v76
  %257 = vmatmul.f32.gmra.mxu0 %v16
  %v258 = vpop.f32.mrf.mxu0
  %v259 = vadd.f32 %v224, %v258
  %260 = vmatmul.f32.gmra.mxu0 %v21
  %v261 = vpop.f32.mrf.mxu0
  %v262 = vadd.f32 %v227, %v261
  %263 = vmatmul.f32.gmra.mxu0 %v26
  %v264 = vpop.f32.mrf.mxu0
  %v265 = vadd.f32 %v230, %v264
  %266 = vmatmul.f32.gmra.mxu0 %v31
  %v267 = vpop.f32.mrf.mxu0
  %v268 = vadd.f32 %v233, %v267
  %269 = vmatmul.f32.gmra.mxu0 %v36
  %v270 = vpop.f32.mrf.mxu0
  %v271 = vadd.f32 %v236, %v270
  %272 = vmatmul.f32.gmra.mxu0 %v41
  %v273 = vpop.f32.mrf.mxu0
  %v274 = vadd.f32 %v239, %v273
  %275 = vdwg.mxu0
  %276 = vmatpush.msra.mxu0 %v107
  %277 = vmatpush.msra.mxu0 %v106
  %278 = vmatpush.msra.mxu0 %v105
  %279 = vmatpush.msra.mxu0 %v104
  %280 = vmatpush.msra.mxu0 %v103
  %281 = vmatpush.msra.mxu0 %v102
  %282 = vmatpush.msra.mxu0 %v101
  %283 = vmatpush.msra.mxu0 %v100
  %284 = vmatpush.msra.mxu0 %v99
  %285 = vmatpush.msra.mxu0 %v98
  %286 = vmatpush.msra.mxu0 %v97
  %287 = vmatpush.msra.mxu0 %v96
  %288 = vmatpush.msra.mxu0 %v95
  %289 = vmatpush.msra.mxu0 %v94
  %290 = vmatpush.msra.mxu0 %v93
  %291 = vmatpush.msra.mxu0 %v92
  %292 = vmatmul.f32.gmra.mxu0 %v17
  %v293 = vpop.f32.mrf.mxu0
  %v294 = vadd.f32 %v259, %v293
  %295 = vmatmul.f32.gmra.mxu0 %v22
  %v296 = vpop.f32.mrf.mxu0
  %v297 = vadd.f32 %v262, %v296
  %298 = vmatmul.f32.gmra.mxu0 %v27
  %v299 = vpop.f32.mrf.mxu0
  %v300 = vadd.f32 %v265, %v299
  %301 = vmatmul.f32.gmra.mxu0 %v32
  %v302 = vpop.f32.mrf.mxu0
  %v303 = vadd.f32 %v268, %v302
  %304 = vmatmul.f32.gmra.mxu0 %v37
  %v305 = vpop.f32.mrf.mxu0
  %v306 = vadd.f32 %v271, %v305
  %307 = vmatmul.f32.gmra.mxu0 %v42
  %v308 = vpop.f32.mrf.mxu0
  %v309 = vadd.f32 %v274, %v308
  %310 = vdwg.mxu0
  %311 = vmatpush.msra.mxu0 0.0
  %312 = vmatpush.msra.mxu0 0.0
  %313 = vmatpush.msra.mxu0 0.0
  %314 = vmatpush.msra.mxu0 0.0
  %315 = vmatpush.msra.mxu0 0.0
  %316 = vmatpush.msra.mxu0 0.0
  %317 = vmatpush.msra.mxu0 0.0
  %318 = vmatpush.msra.mxu0 0.0
  %319 = vmatpush.msra.mxu0 %v115
  %320 = vmatpush.msra.mxu0 %v114
  %321 = vmatpush.msra.mxu0 %v113
  %322 = vmatpush.msra.mxu0 %v112
  %323 = vmatpush.msra.mxu0 %v111
  %324 = vmatpush.msra.mxu0 %v110
  %325 = vmatpush.msra.mxu0 %v109
  %326 = vmatpush.msra.mxu0 %v108
  %327 = vmatmul.f32.gmra.mxu0 %v154
  %v328 = vpop.f32.mrf.mxu0
  %v329 = vadd.f32 %v294, %v328
  %330 = vmatmul.f32.gmra.mxu0 %v157
  %v331 = vpop.f32.mrf.mxu0
  %v332 = vadd.f32 %v297, %v331
  %333 = vmatmul.f32.gmra.mxu0 %v160
  %v334 = vpop.f32.mrf.mxu0
  %v335 = vadd.f32 %v300, %v334
  %336 = vmatmul.f32.gmra.mxu0 %v163
  %v337 = vpop.f32.mrf.mxu0
  %v338 = vadd.f32 %v303, %v337
  %339 = vmatmul.f32.gmra.mxu0 %v166
  %v340 = vpop.f32.mrf.mxu0
  %v341 = vadd.f32 %v306, %v340
  %342 = vmatmul.f32.gmra.mxu0 %v169
  %v343 = vpop.f32.mrf.mxu0
  %v344 = vadd.f32 %v309, %v343
  %345 = vdwg.mxu0
  %346 = vst [vmem:[%s3] sm:$0xff] %v329
  %347 = vst [vmem:[%s3 + $0x8] sm:$0xff] %v332
  %348 = vst [vmem:[%s3 + $0x10] sm:$0xff] %v335
  %349 = vst [vmem:[%s3 + $0x18] sm:$0xff] %v338
  %350 = vst [vmem:[%s3 + $0x20] sm:$0xff] %v341
  %351 = vst [vmem:[%s3 + $0x28] sm:$0xff] %v344
  // Predicated region
  $region14: #{forward.85} parent=0 // pred_check
    _
  $region15: #{forward.85} parent=0 // pred_check_branch
    %353 = sbr.rel (0) target = $region17
  $region16: #{forward.85} parent=0 // pred_region
    _
  $region17: #{forward.85} parent=0 // pred_fallthru
    _
  // Predicated region
  $region18: #{forward.85} parent=0 // pred_check
    _
  $region19: #{forward.85} parent=0 // pred_check_branch
    %355 = sbr.rel (0) target = $region21
  $region20: #{forward.85} parent=0 // pred_region
    _
  $region21: #{forward.85} parent=0 // pred_fallthru
    _

// kernel: squeeze.19
$region0: #{squeeze.19}
  %s0 = inlined_call_operand.vmem [shape: f32[2,3,32,32], index: 0, kind: input, shape index: {}]
  %s1 = inlined_call_operand.vmem [shape: f32[48,128], index: 1, kind: output, shape index: {}]
  %v2 = vld [vmem:[%s0] ss:$4 sm:$0xff]
  %vm3 = vcmask 261120
  %4 = vst.msk [vmem:[%s1] sm:$0xff] %vm3, %v2
  %s5 = scalar_lea.vmem %s0, 32
  %v6 = vld [vmem:[%s5] ss:$4 sm:$0xff]
  %vm7 = vcmask 261120
  %s8 = scalar_lea.vmem %s1, 8
  %9 = vst.msk [vmem:[%s8] sm:$0xff] %vm7, %v6
  %s10 = scalar_lea.vmem %s0, 64
  %v11 = vld [vmem:[%s10] ss:$4 sm:$0xff]
  %vm12 = vcmask 261120
  %s13 = scalar_lea.vmem %s1, 16
  %14 = vst.msk [vmem:[%s13] sm:$0xff] %vm12, %v11
  %s15 = scalar_lea.vmem %s0, 96
  %v16 = vld [vmem:[%s15] ss:$4 sm:$0xff]
  %vm17 = vcmask 261120
  %s18 = scalar_lea.vmem %s1, 24
  %19 = vst.msk [vmem:[%s18] sm:$0xff] %vm17, %v16
  %s20 = scalar_lea.vmem %s0, 128
  %v21 = vld [vmem:[%s20] ss:$4 sm:$0xff]
  %vm22 = vcmask 261120
  %s23 = scalar_lea.vmem %s1, 32
  %24 = vst.msk [vmem:[%s23] sm:$0xff] %vm22, %v21
  %s25 = scalar_lea.vmem %s0, 160
  %v26 = vld [vmem:[%s25] ss:$4 sm:$0xff]
  %vm27 = vcmask 261120
  %s28 = scalar_lea.vmem %s1, 40
  %29 = vst.msk [vmem:[%s28] sm:$0xff] %vm27, %v26
  %s30 = scalar_lea.vmem %s0, 3
  %v31 = vld [vmem:[%s30] ss:$4 sm:$0xff]
  %32 = vrot.lane.b32.xlu0 %v31, 96
  %v33 = vpop.permute.xlu0 %32
  %vm34 = vcmask 1048320
  %35 = vst.msk [vmem:[%s1] sm:$0xff] %vm34, %v33
  %s36 = scalar_lea.vmem %s0, 131
  %v37 = vld [vmem:[%s36] ss:$4 sm:$0xff]
  %38 = vrot.lane.b32.xlu0 %v37, 96
  %v39 = vpop.permute.xlu0 %38
  %vm40 = vcmask 1048320
  %s41 = scalar_lea.vmem %s1, 32
  %42 = vst.msk [vmem:[%s41] sm:$0xff] %vm40, %v39
  %s43 = scalar_lea.vmem %s0, 35
  %v44 = vld [vmem:[%s43] ss:$4 sm:$0xff]
  %45 = vrot.lane.b32.xlu0 %v44, 96
  %v46 = vpop.permute.xlu0 %45
  %vm47 = vcmask 1048320
  %s48 = scalar_lea.vmem %s1, 8
  %49 = vst.msk [vmem:[%s48] sm:$0xff] %vm47, %v46
  %s50 = scalar_lea.vmem %s0, 163
  %v51 = vld [vmem:[%s50] ss:$4 sm:$0xff]
  %52 = vrot.lane.b32.xlu0 %v51, 96
  %v53 = vpop.permute.xlu0 %52
  %vm54 = vcmask 1048320
  %s55 = scalar_lea.vmem %s1, 40
  %56 = vst.msk [vmem:[%s55] sm:$0xff] %vm54, %v53
  %s57 = scalar_lea.vmem %s0, 67
  %v58 = vld [vmem:[%s57] ss:$4 sm:$0xff]
  %59 = vrot.lane.b32.xlu0 %v58, 96
  %v60 = vpop.permute.xlu0 %59
  %vm61 = vcmask 1048320
  %s62 = scalar_lea.vmem %s1, 16
  %63 = vst.msk [vmem:[%s62] sm:$0xff] %vm61, %v60
  %s64 = scalar_lea.vmem %s0, 99
  %v65 = vld [vmem:[%s64] ss:$4 sm:$0xff]
  %66 = vrot.lane.b32.xlu0 %v65, 96
  %v67 = vpop.permute.xlu0 %66
  %vm68 = vcmask 1048320
  %s69 = scalar_lea.vmem %s1, 24
  %70 = vst.msk [vmem:[%s69] sm:$0xff] %vm68, %v67
  %s71 = scalar_lea.vmem %s0, 2
  %v72 = vld [vmem:[%s71] ss:$4 sm:$0xff]
  %73 = vrot.lane.b32.xlu0 %v72, 64
  %v74 = vpop.permute.xlu0 %73
  %vm75 = vcmask 785920
  %76 = vst.msk [vmem:[%s1] sm:$0xff] %vm75, %v74
  %s77 = scalar_lea.vmem %s0, 130
  %v78 = vld [vmem:[%s77] ss:$4 sm:$0xff]
  %79 = vrot.lane.b32.xlu0 %v78, 64
  %v80 = vpop.permute.xlu0 %79
  %vm81 = vcmask 785920
  %s82 = scalar_lea.vmem %s1, 32
  %83 = vst.msk [vmem:[%s82] sm:$0xff] %vm81, %v80
  %s84 = scalar_lea.vmem %s0, 34
  %v85 = vld [vmem:[%s84] ss:$4 sm:$0xff]
  %86 = vrot.lane.b32.xlu0 %v85, 64
  %v87 = vpop.permute.xlu0 %86
  %vm88 = vcmask 785920
  %s89 = scalar_lea.vmem %s1, 8
  %90 = vst.msk [vmem:[%s89] sm:$0xff] %vm88, %v87
  %s91 = scalar_lea.vmem %s0, 162
  %v92 = vld [vmem:[%s91] ss:$4 sm:$0xff]
  %93 = vrot.lane.b32.xlu0 %v92, 64
  %v94 = vpop.permute.xlu0 %93
  %vm95 = vcmask 785920
  %s96 = scalar_lea.vmem %s1, 40
  %97 = vst.msk [vmem:[%s96] sm:$0xff] %vm95, %v94
  %s98 = scalar_lea.vmem %s0, 66
  %v99 = vld [vmem:[%s98] ss:$4 sm:$0xff]
  %100 = vrot.lane.b32.xlu0 %v99, 64
  %v101 = vpop.permute.xlu0 %100
  %vm102 = vcmask 785920
  %s103 = scalar_lea.vmem %s1, 16
  %104 = vst.msk [vmem:[%s103] sm:$0xff] %vm102, %v101
  %s105 = scalar_lea.vmem %s0, 98
  %v106 = vld [vmem:[%s105] ss:$4 sm:$0xff]
  %107 = vrot.lane.b32.xlu0 %v106, 64
  %v108 = vpop.permute.xlu0 %107
  %vm109 = vcmask 785920
  %s110 = scalar_lea.vmem %s1, 24
  %111 = vst.msk [vmem:[%s110] sm:$0xff] %vm109, %v108
  %s112 = scalar_lea.vmem %s0, 1
  %v113 = vld [vmem:[%s112] ss:$4 sm:$0xff]
  %114 = vrot.lane.b32.xlu0 %v113, 32
  %v115 = vpop.permute.xlu0 %114
  %vm116 = vcmask 523520
  %117 = vst.msk [vmem:[%s1] sm:$0xff] %vm116, %v115
  %s118 = scalar_lea.vmem %s0, 129
  %v119 = vld [vmem:[%s118] ss:$4 sm:$0xff]
  %120 = vrot.lane.b32.xlu0 %v119, 32
  %v121 = vpop.permute.xlu0 %120
  %vm122 = vcmask 523520
  %s123 = scalar_lea.vmem %s1, 32
  %124 = vst.msk [vmem:[%s123] sm:$0xff] %vm122, %v121
  %s125 = scalar_lea.vmem %s0, 33
  %v126 = vld [vmem:[%s125] ss:$4 sm:$0xff]
  %127 = vrot.lane.b32.xlu0 %v126, 32
  %v128 = vpop.permute.xlu0 %127
  %vm129 = vcmask 523520
  %s130 = scalar_lea.vmem %s1, 8
  %131 = vst.msk [vmem:[%s130] sm:$0xff] %vm129, %v128
  %s132 = scalar_lea.vmem %s0, 161
  %v133 = vld [vmem:[%s132] ss:$4 sm:$0xff]
  %134 = vrot.lane.b32.xlu0 %v133, 32
  %v135 = vpop.permute.xlu0 %134
  %vm136 = vcmask 523520
  %s137 = scalar_lea.vmem %s1, 40
  %138 = vst.msk [vmem:[%s137] sm:$0xff] %vm136, %v135
  %s139 = scalar_lea.vmem %s0, 65
  %v140 = vld [vmem:[%s139] ss:$4 sm:$0xff]
  %141 = vrot.lane.b32.xlu0 %v140, 32
  %v142 = vpop.permute.xlu0 %141
  %vm143 = vcmask 523520
  %s144 = scalar_lea.vmem %s1, 16
  %145 = vst.msk [vmem:[%s144] sm:$0xff] %vm143, %v142
  %s146 = scalar_lea.vmem %s0, 97
  %v147 = vld [vmem:[%s146] ss:$4 sm:$0xff]
  %148 = vrot.lane.b32.xlu0 %v147, 32
  %v149 = vpop.permute.xlu0 %148
  %vm150 = vcmask 523520
  %s151 = scalar_lea.vmem %s1, 24
  %152 = vst.msk [vmem:[%s151] sm:$0xff] %vm150, %v149

// kernel: forward.112
$region0: #{forward.112}
  #allocation0 [shape = 'u32[]', space=smem, size = 0x4, offset = 0x4, fixed_abs, tag = 'smem constant byte address 0x4 - core index']
  #allocation1 [shape = 'u32[72,128]{1,0:T(1,128)}', space=vmem, size = 0x9000, scoped, tag = 'internal scratch']
  %s0 = inlined_call_operand.vmem [shape: f32[48,128], index: 0, kind: input, shape index: {}]
  %s1 = inlined_call_operand.vmem [shape: f32[48,128], index: 1, kind: input, shape index: {}]
  %s2 = inlined_call_operand.vmem [shape: f32[48,128], index: 2, kind: input, shape index: {}]
  %s3 = inlined_call_operand.vmem [shape: f32[48,128], index: 3, kind: input, shape index: {}]
  %s4 = inlined_call_operand.vmem [shape: f32[48,128], index: 4, kind: output, shape index: {0}]
  %s5 = inlined_call_operand.vmem [shape: f32[48,128], index: 5, kind: output, shape index: {1}]
  %s6 = inlined_call_operand.vmem [shape: f32[48,128], index: 6, kind: output, shape index: {2}]
  %s7 = inlined_call_operand.vmem [shape: f32[48,128], index: 7, kind: output, shape index: {3}]
  %8 = xla_tuple %s4, %s5, %s6, %s7
  %s9 = sld [smem:[#allocation0]]
  $region50: #{forward.112} parent=0
    _
  %s11 = ssub.s32 1, %s9
  %s12 = scalar_select 0, %s11, %s9
  // Predicated region
  $region2: #{forward.112} parent=0 // pred_check
    _
  $region3: #{forward.112} parent=0 // pred_check_branch
    %14 = sbr.rel (0) target = $region5
  $region4: #{forward.112} parent=0 // pred_region
    _
  $region5: #{forward.112} parent=0 // pred_fallthru
    _
  // Predicated region
  $region6: #{forward.112} parent=0 // pred_check
    _
  $region7: #{forward.112} parent=0 // pred_check_branch
    %16 = sbr.rel (0) target = $region9
  $region8: #{forward.112} parent=0 // pred_region
    _
  $region9: #{forward.112} parent=0 // pred_fallthru
    _
  // Predicated region
  $region10: #{forward.112} parent=0 // pred_check
    _
  $region11: #{forward.112} parent=0 // pred_check_branch
    %18 = sbr.rel (0) target = $region13
  $region12: #{forward.112} parent=0 // pred_region
    _
  $region13: #{forward.112} parent=0 // pred_fallthru
    _
  // Predicated region
  $region14: #{forward.112} parent=0 // pred_check
    _
  $region15: #{forward.112} parent=0 // pred_check_branch
    %20 = sbr.rel (0) target = $region17
  $region16: #{forward.112} parent=0 // pred_region
    _
  $region17: #{forward.112} parent=0 // pred_fallthru
    _
  %v21 = vld [vmem:[%s0] sm:$0xff]
  %v22 = vld [vmem:[%s0 + $0x8] sm:$0xff]
  %v23 = vld [vmem:[%s0 + $0x10] sm:$0xff]
  %v24 = vld [vmem:[%s0 + $0x18] sm:$0xff]
  %v25 = vld [vmem:[%s0 + $0x20] sm:$0xff]
  %v26 = vld [vmem:[%s0 + $0x28] sm:$0xff]
  %v27 = vld [vmem:[%s1] sm:$0xff]
  %v28 = vld [vmem:[%s1 + $0x8] sm:$0xff]
  %v29 = vld [vmem:[%s1 + $0x10] sm:$0xff]
  %v30 = vld [vmem:[%s1 + $0x18] sm:$0xff]
  %v31 = vld [vmem:[%s1 + $0x20] sm:$0xff]
  %v32 = vld [vmem:[%s1 + $0x28] sm:$0xff]
  %v33 = vld [vmem:[%s2] sm:$0xff]
  %v34 = vld [vmem:[%s2 + $0x8] sm:$0xff]
  %v35 = vld [vmem:[%s2 + $0x10] sm:$0xff]
  %v36 = vld [vmem:[%s2 + $0x18] sm:$0xff]
  %v37 = vld [vmem:[%s2 + $0x20] sm:$0xff]
  %v38 = vld [vmem:[%s2 + $0x28] sm:$0xff]
  %v39 = vld [vmem:[%s3] sm:$0xff]
  %v40 = vld [vmem:[%s3 + $0x8] sm:$0xff]
  %v41 = vld [vmem:[%s3 + $0x10] sm:$0xff]
  %v42 = vld [vmem:[%s3 + $0x18] sm:$0xff]
  %v43 = vld [vmem:[%s3 + $0x20] sm:$0xff]
  %v44 = vld [vmem:[%s3 + $0x28] sm:$0xff]
  %v45 = vadd.f32 %v21, %v27
  %v46 = vadd.f32 %v22, %v28
  %v47 = vadd.f32 %v23, %v29
  %v48 = vadd.f32 %v24, %v30
  %v49 = vadd.f32 %v25, %v31
  %v50 = vadd.f32 %v26, %v32
  %v51 = vadd.f32 %v45, %v33
  %v52 = vadd.f32 %v46, %v34
  %v53 = vadd.f32 %v47, %v35
  %v54 = vadd.f32 %v48, %v36
  %v55 = vadd.f32 %v49, %v37
  %v56 = vadd.f32 %v50, %v38
  %v57 = vadd.f32 %v51, %v39
  %v58 = vadd.f32 %v52, %v40
  %v59 = vadd.f32 %v53, %v41
  %v60 = vadd.f32 %v54, %v42
  %v61 = vadd.f32 %v55, %v43
  %v62 = vadd.f32 %v56, %v44
  %v63 = vmul.f32 %v57, 0.25
  %v64 = vmul.f32 %v58, 0.25
  %v65 = vmul.f32 %v59, 0.25
  %v66 = vmul.f32 %v60, 0.25
  %v67 = vmul.f32 %v61, 0.25
  %v68 = vmul.f32 %v62, 0.25
  %69 = vst [vmem:[%s4] sm:$0xff] %v63
  %70 = vst [vmem:[%s4 + $0x8] sm:$0xff] %v64
  %71 = vst [vmem:[%s4 + $0x10] sm:$0xff] %v65
  %72 = vst [vmem:[%s4 + $0x18] sm:$0xff] %v66
  %73 = vst [vmem:[%s4 + $0x20] sm:$0xff] %v67
  %74 = vst [vmem:[%s4 + $0x28] sm:$0xff] %v68
  %v75 = vsub.f32 %v21, %v27
  %v76 = vsub.f32 %v22, %v28
  %v77 = vsub.f32 %v23, %v29
  %v78 = vsub.f32 %v24, %v30
  %v79 = vsub.f32 %v25, %v31
  %v80 = vsub.f32 %v26, %v32
  %v81 = vadd.f32 %v75, %v33
  %v82 = vadd.f32 %v76, %v34
  %v83 = vadd.f32 %v77, %v35
  %v84 = vadd.f32 %v78, %v36
  %v85 = vadd.f32 %v79, %v37
  %v86 = vadd.f32 %v80, %v38
  %v87 = vsub.f32 %v81, %v39
  %v88 = vsub.f32 %v82, %v40
  %v89 = vsub.f32 %v83, %v41
  %v90 = vsub.f32 %v84, %v42
  %v91 = vsub.f32 %v85, %v43
  %v92 = vsub.f32 %v86, %v44
  %v93 = vmul.f32 %v87, 0.25
  %v94 = vmul.f32 %v88, 0.25
  %v95 = vmul.f32 %v89, 0.25
  %v96 = vmul.f32 %v90, 0.25
  %v97 = vmul.f32 %v91, 0.25
  %v98 = vmul.f32 %v92, 0.25
  %99 = vst [vmem:[%s5] sm:$0xff] %v93
  %100 = vst [vmem:[%s5 + $0x8] sm:$0xff] %v94
  %101 = vst [vmem:[%s5 + $0x10] sm:$0xff] %v95
  %102 = vst [vmem:[%s5 + $0x18] sm:$0xff] %v96
  %103 = vst [vmem:[%s5 + $0x20] sm:$0xff] %v97
  %104 = vst [vmem:[%s5 + $0x28] sm:$0xff] %v98
  %v105 = vsub.f32 %v45, %v33
  %v106 = vsub.f32 %v46, %v34
  %v107 = vsub.f32 %v47, %v35
  %v108 = vsub.f32 %v48, %v36
  %v109 = vsub.f32 %v49, %v37
  %v110 = vsub.f32 %v50, %v38
  %v111 = vsub.f32 %v105, %v39
  %v112 = vsub.f32 %v106, %v40
  %v113 = vsub.f32 %v107, %v41
  %v114 = vsub.f32 %v108, %v42
  %v115 = vsub.f32 %v109, %v43
  %v116 = vsub.f32 %v110, %v44
  %v117 = vmul.f32 %v111, 0.25
  %v118 = vmul.f32 %v112, 0.25
  %v119 = vmul.f32 %v113, 0.25
  %v120 = vmul.f32 %v114, 0.25
  %v121 = vmul.f32 %v115, 0.25
  %v122 = vmul.f32 %v116, 0.25
  %123 = vst [vmem:[%s6] sm:$0xff] %v117
  %124 = vst [vmem:[%s6 + $0x8] sm:$0xff] %v118
  %125 = vst [vmem:[%s6 + $0x10] sm:$0xff] %v119
  %126 = vst [vmem:[%s6 + $0x18] sm:$0xff] %v120
  %127 = vst [vmem:[%s6 + $0x20] sm:$0xff] %v121
  %128 = vst [vmem:[%s6 + $0x28] sm:$0xff] %v122
  %v129 = vsub.f32 %v75, %v33
  %v130 = vsub.f32 %v76, %v34
  %v131 = vsub.f32 %v77, %v35
  %v132 = vsub.f32 %v78, %v36
  %v133 = vsub.f32 %v79, %v37
  %v134 = vsub.f32 %v80, %v38
  %v135 = vadd.f32 %v129, %v39
  %v136 = vadd.f32 %v130, %v40
  %v137 = vadd.f32 %v131, %v41
  %v138 = vadd.f32 %v132, %v42
  %v139 = vadd.f32 %v133, %v43
  %v140 = vadd.f32 %v134, %v44
  %v141 = vmul.f32 %v135, 0.25
  %v142 = vmul.f32 %v136, 0.25
  %v143 = vmul.f32 %v137, 0.25
  %v144 = vmul.f32 %v138, 0.25
  %v145 = vmul.f32 %v139, 0.25
  %v146 = vmul.f32 %v140, 0.25
  %147 = vst [vmem:[%s7] sm:$0xff] %v141
  %148 = vst [vmem:[%s7 + $0x8] sm:$0xff] %v142
  %149 = vst [vmem:[%s7 + $0x10] sm:$0xff] %v143
  %150 = vst [vmem:[%s7 + $0x18] sm:$0xff] %v144
  %151 = vst [vmem:[%s7 + $0x20] sm:$0xff] %v145
  %152 = vst [vmem:[%s7 + $0x28] sm:$0xff] %v146
  // Predicated region
  $region18: #{forward.112} parent=0 // pred_check
    _
  $region19: #{forward.112} parent=0 // pred_check_branch
    %154 = sbr.rel (0) target = $region21
  $region20: #{forward.112} parent=0 // pred_region
    _
  $region21: #{forward.112} parent=0 // pred_fallthru
    _
  // Predicated region
  $region22: #{forward.112} parent=0 // pred_check
    _
  $region23: #{forward.112} parent=0 // pred_check_branch
    %156 = sbr.rel (0) target = $region25
  $region24: #{forward.112} parent=0 // pred_region
    _
  $region25: #{forward.112} parent=0 // pred_fallthru
    _
  // Predicated region
  $region26: #{forward.112} parent=0 // pred_check
    _
  $region27: #{forward.112} parent=0 // pred_check_branch
    %158 = sbr.rel (0) target = $region29
  $region28: #{forward.112} parent=0 // pred_region
    _
  $region29: #{forward.112} parent=0 // pred_fallthru
    _
  // Predicated region
  $region30: #{forward.112} parent=0 // pred_check
    _
  $region31: #{forward.112} parent=0 // pred_check_branch
    %160 = sbr.rel (0) target = $region33
  $region32: #{forward.112} parent=0 // pred_region
    _
  $region33: #{forward.112} parent=0 // pred_fallthru
    _
  // Predicated region
  $region34: #{forward.112} parent=0 // pred_check
    _
  $region35: #{forward.112} parent=0 // pred_check_branch
    %162 = sbr.rel (0) target = $region37
  $region36: #{forward.112} parent=0 // pred_region
    _
  $region37: #{forward.112} parent=0 // pred_fallthru
    _
  // Predicated region
  $region38: #{forward.112} parent=0 // pred_check
    _
  $region39: #{forward.112} parent=0 // pred_check_branch
    %164 = sbr.rel (0) target = $region41
  $region40: #{forward.112} parent=0 // pred_region
    _
  $region41: #{forward.112} parent=0 // pred_fallthru
    _
  // Predicated region
  $region42: #{forward.112} parent=0 // pred_check
    _
  $region43: #{forward.112} parent=0 // pred_check_branch
    %166 = sbr.rel (0) target = $region45
  $region44: #{forward.112} parent=0 // pred_region
    _
  $region45: #{forward.112} parent=0 // pred_fallthru
    _
  // Predicated region
  $region46: #{forward.112} parent=0 // pred_check
    _
  $region47: #{forward.112} parent=0 // pred_check_branch
    %168 = sbr.rel (0) target = $region49
  $region48: #{forward.112} parent=0 // pred_region
    _
  $region49: #{forward.112} parent=0 // pred_fallthru
    _

// kernel: forward.113
$region0: #{forward.113}
  #allocation0 [shape = 'u32[]', space=smem, size = 0x4, offset = 0x4, fixed_abs, tag = 'smem constant byte address 0x4 - core index']
  #allocation1 [shape = 'u32[72,128]{1,0:T(1,128)}', space=vmem, size = 0x9000, scoped, tag = 'internal scratch']
  %s0 = inlined_call_operand.vmem [shape: f32[48,128], index: 0, kind: input, shape index: {}]
  %s1 = inlined_call_operand.vmem [shape: f32[48,128], index: 1, kind: input, shape index: {}]
  %s2 = inlined_call_operand.vmem [shape: f32[48,128], index: 2, kind: input, shape index: {}]
  %s3 = inlined_call_operand.vmem [shape: f32[48,128], index: 3, kind: input, shape index: {}]
  %s4 = inlined_call_operand.vmem [shape: f32[48,128], index: 4, kind: output, shape index: {0}]
  %s5 = inlined_call_operand.vmem [shape: f32[48,128], index: 5, kind: output, shape index: {1}]
  %s6 = inlined_call_operand.vmem [shape: f32[48,128], index: 6, kind: output, shape index: {2}]
  %s7 = inlined_call_operand.vmem [shape: f32[48,128], index: 7, kind: output, shape index: {3}]
  %8 = xla_tuple %s4, %s5, %s6, %s7
  %s9 = sld [smem:[#allocation0]]
  $region50: #{forward.113} parent=0
    _
  %s11 = ssub.s32 1, %s9
  %s12 = scalar_select 0, %s11, %s9
  // Predicated region
  $region2: #{forward.113} parent=0 // pred_check
    _
  $region3: #{forward.113} parent=0 // pred_check_branch
    %14 = sbr.rel (0) target = $region5
  $region4: #{forward.113} parent=0 // pred_region
    _
  $region5: #{forward.113} parent=0 // pred_fallthru
    _
  // Predicated region
  $region6: #{forward.113} parent=0 // pred_check
    _
  $region7: #{forward.113} parent=0 // pred_check_branch
    %16 = sbr.rel (0) target = $region9
  $region8: #{forward.113} parent=0 // pred_region
    _
  $region9: #{forward.113} parent=0 // pred_fallthru
    _
  // Predicated region
  $region10: #{forward.113} parent=0 // pred_check
    _
  $region11: #{forward.113} parent=0 // pred_check_branch
    %18 = sbr.rel (0) target = $region13
  $region12: #{forward.113} parent=0 // pred_region
    _
  $region13: #{forward.113} parent=0 // pred_fallthru
    _
  // Predicated region
  $region14: #{forward.113} parent=0 // pred_check
    _
  $region15: #{forward.113} parent=0 // pred_check_branch
    %20 = sbr.rel (0) target = $region17
  $region16: #{forward.113} parent=0 // pred_region
    _
  $region17: #{forward.113} parent=0 // pred_fallthru
    _
  %v21 = vld [vmem:[%s0] sm:$0xff]
  %v22 = vld [vmem:[%s0 + $0x8] sm:$0xff]
  %v23 = vld [vmem:[%s0 + $0x10] sm:$0xff]
  %v24 = vld [vmem:[%s0 + $0x18] sm:$0xff]
  %v25 = vld [vmem:[%s0 + $0x20] sm:$0xff]
  %v26 = vld [vmem:[%s0 + $0x28] sm:$0xff]
  %v27 = vld [vmem:[%s1] sm:$0xff]
  %v28 = vld [vmem:[%s1 + $0x8] sm:$0xff]
  %v29 = vld [vmem:[%s1 + $0x10] sm:$0xff]
  %v30 = vld [vmem:[%s1 + $0x18] sm:$0xff]
  %v31 = vld [vmem:[%s1 + $0x20] sm:$0xff]
  %v32 = vld [vmem:[%s1 + $0x28] sm:$0xff]
  %v33 = vld [vmem:[%s2] sm:$0xff]
  %v34 = vld [vmem:[%s2 + $0x8] sm:$0xff]
  %v35 = vld [vmem:[%s2 + $0x10] sm:$0xff]
  %v36 = vld [vmem:[%s2 + $0x18] sm:$0xff]
  %v37 = vld [vmem:[%s2 + $0x20] sm:$0xff]
  %v38 = vld [vmem:[%s2 + $0x28] sm:$0xff]
  %v39 = vld [vmem:[%s3] sm:$0xff]
  %v40 = vld [vmem:[%s3 + $0x8] sm:$0xff]
  %v41 = vld [vmem:[%s3 + $0x10] sm:$0xff]
  %v42 = vld [vmem:[%s3 + $0x18] sm:$0xff]
  %v43 = vld [vmem:[%s3 + $0x20] sm:$0xff]
  %v44 = vld [vmem:[%s3 + $0x28] sm:$0xff]
  %v45 = vadd.f32 %v21, %v27
  %v46 = vadd.f32 %v22, %v28
  %v47 = vadd.f32 %v23, %v29
  %v48 = vadd.f32 %v24, %v30
  %v49 = vadd.f32 %v25, %v31
  %v50 = vadd.f32 %v26, %v32
  %v51 = vadd.f32 %v45, %v33
  %v52 = vadd.f32 %v46, %v34
  %v53 = vadd.f32 %v47, %v35
  %v54 = vadd.f32 %v48, %v36
  %v55 = vadd.f32 %v49, %v37
  %v56 = vadd.f32 %v50, %v38
  %v57 = vadd.f32 %v51, %v39
  %v58 = vadd.f32 %v52, %v40
  %v59 = vadd.f32 %v53, %v41
  %v60 = vadd.f32 %v54, %v42
  %v61 = vadd.f32 %v55, %v43
  %v62 = vadd.f32 %v56, %v44
  %63 = vst [vmem:[%s4] sm:$0xff] %v57
  %64 = vst [vmem:[%s4 + $0x8] sm:$0xff] %v58
  %65 = vst [vmem:[%s4 + $0x10] sm:$0xff] %v59
  %66 = vst [vmem:[%s4 + $0x18] sm:$0xff] %v60
  %67 = vst [vmem:[%s4 + $0x20] sm:$0xff] %v61
  %68 = vst [vmem:[%s4 + $0x28] sm:$0xff] %v62
  %v69 = vsub.f32 %v21, %v27
  %v70 = vsub.f32 %v22, %v28
  %v71 = vsub.f32 %v23, %v29
  %v72 = vsub.f32 %v24, %v30
  %v73 = vsub.f32 %v25, %v31
  %v74 = vsub.f32 %v26, %v32
  %v75 = vadd.f32 %v69, %v33
  %v76 = vadd.f32 %v70, %v34
  %v77 = vadd.f32 %v71, %v35
  %v78 = vadd.f32 %v72, %v36
  %v79 = vadd.f32 %v73, %v37
  %v80 = vadd.f32 %v74, %v38
  %v81 = vsub.f32 %v75, %v39
  %v82 = vsub.f32 %v76, %v40
  %v83 = vsub.f32 %v77, %v41
  %v84 = vsub.f32 %v78, %v42
  %v85 = vsub.f32 %v79, %v43
  %v86 = vsub.f32 %v80, %v44
  %87 = vst [vmem:[%s5] sm:$0xff] %v81
  %88 = vst [vmem:[%s5 + $0x8] sm:$0xff] %v82
  %89 = vst [vmem:[%s5 + $0x10] sm:$0xff] %v83
  %90 = vst [vmem:[%s5 + $0x18] sm:$0xff] %v84
  %91 = vst [vmem:[%s5 + $0x20] sm:$0xff] %v85
  %92 = vst [vmem:[%s5 + $0x28] sm:$0xff] %v86
  %v93 = vsub.f32 %v45, %v33
  %v94 = vsub.f32 %v46, %v34
  %v95 = vsub.f32 %v47, %v35
  %v96 = vsub.f32 %v48, %v36
  %v97 = vsub.f32 %v49, %v37
  %v98 = vsub.f32 %v50, %v38
  %v99 = vsub.f32 %v93, %v39
  %v100 = vsub.f32 %v94, %v40
  %v101 = vsub.f32 %v95, %v41
  %v102 = vsub.f32 %v96, %v42
  %v103 = vsub.f32 %v97, %v43
  %v104 = vsub.f32 %v98, %v44
  %105 = vst [vmem:[%s6] sm:$0xff] %v99
  %106 = vst [vmem:[%s6 + $0x8] sm:$0xff] %v100
  %107 = vst [vmem:[%s6 + $0x10] sm:$0xff] %v101
  %108 = vst [vmem:[%s6 + $0x18] sm:$0xff] %v102
  %109 = vst [vmem:[%s6 + $0x20] sm:$0xff] %v103
  %110 = vst [vmem:[%s6 + $0x28] sm:$0xff] %v104
  %v111 = vsub.f32 %v69, %v33
  %v112 = vsub.f32 %v70, %v34
  %v113 = vsub.f32 %v71, %v35
  %v114 = vsub.f32 %v72, %v36
  %v115 = vsub.f32 %v73, %v37
  %v116 = vsub.f32 %v74, %v38
  %v117 = vadd.f32 %v111, %v39
  %v118 = vadd.f32 %v112, %v40
  %v119 = vadd.f32 %v113, %v41
  %v120 = vadd.f32 %v114, %v42
  %v121 = vadd.f32 %v115, %v43
  %v122 = vadd.f32 %v116, %v44
  %123 = vst [vmem:[%s7] sm:$0xff] %v117
  %124 = vst [vmem:[%s7 + $0x8] sm:$0xff] %v118
  %125 = vst [vmem:[%s7 + $0x10] sm:$0xff] %v119
  %126 = vst [vmem:[%s7 + $0x18] sm:$0xff] %v120
  %127 = vst [vmem:[%s7 + $0x20] sm:$0xff] %v121
  %128 = vst [vmem:[%s7 + $0x28] sm:$0xff] %v122
  // Predicated region
  $region18: #{forward.113} parent=0 // pred_check
    _
  $region19: #{forward.113} parent=0 // pred_check_branch
    %130 = sbr.rel (0) target = $region21
  $region20: #{forward.113} parent=0 // pred_region
    _
  $region21: #{forward.113} parent=0 // pred_fallthru
    _
  // Predicated region
  $region22: #{forward.113} parent=0 // pred_check
    _
  $region23: #{forward.113} parent=0 // pred_check_branch
    %132 = sbr.rel (0) target = $region25
  $region24: #{forward.113} parent=0 // pred_region
    _
  $region25: #{forward.113} parent=0 // pred_fallthru
    _
  // Predicated region
  $region26: #{forward.113} parent=0 // pred_check
    _
  $region27: #{forward.113} parent=0 // pred_check_branch
    %134 = sbr.rel (0) target = $region29
  $region28: #{forward.113} parent=0 // pred_region
    _
  $region29: #{forward.113} parent=0 // pred_fallthru
    _
  // Predicated region
  $region30: #{forward.113} parent=0 // pred_check
    _
  $region31: #{forward.113} parent=0 // pred_check_branch
    %136 = sbr.rel (0) target = $region33
  $region32: #{forward.113} parent=0 // pred_region
    _
  $region33: #{forward.113} parent=0 // pred_fallthru
    _
  // Predicated region
  $region34: #{forward.113} parent=0 // pred_check
    _
  $region35: #{forward.113} parent=0 // pred_check_branch
    %138 = sbr.rel (0) target = $region37
  $region36: #{forward.113} parent=0 // pred_region
    _
  $region37: #{forward.113} parent=0 // pred_fallthru
    _
  // Predicated region
  $region38: #{forward.113} parent=0 // pred_check
    _
  $region39: #{forward.113} parent=0 // pred_check_branch
    %140 = sbr.rel (0) target = $region41
  $region40: #{forward.113} parent=0 // pred_region
    _
  $region41: #{forward.113} parent=0 // pred_fallthru
    _
  // Predicated region
  $region42: #{forward.113} parent=0 // pred_check
    _
  $region43: #{forward.113} parent=0 // pred_check_branch
    %142 = sbr.rel (0) target = $region45
  $region44: #{forward.113} parent=0 // pred_region
    _
  $region45: #{forward.113} parent=0 // pred_fallthru
    _
  // Predicated region
  $region46: #{forward.113} parent=0 // pred_check
    _
  $region47: #{forward.113} parent=0 // pred_check_branch
    %144 = sbr.rel (0) target = $region49
  $region48: #{forward.113} parent=0 // pred_region
    _
  $region49: #{forward.113} parent=0 // pred_fallthru
    _

// kernel: forward.114
$region0: #{forward.114}
  #allocation0 [shape = 'u32[]', space=smem, size = 0x4, offset = 0x4, fixed_abs, tag = 'smem constant byte address 0x4 - core index']
  #allocation1 [shape = 'u32[72,128]{1,0:T(1,128)}', space=vmem, size = 0x9000, scoped, tag = 'internal scratch']
  %s0 = inlined_call_operand.vmem [shape: f32[8,8], index: 0, kind: input, shape index: {}]
  %s1 = inlined_call_operand.vmem [shape: f32[8,8192], index: 1, kind: input, shape index: {}]
  %s2 = inlined_call_operand.vmem [shape: f32[8,2], index: 2, kind: input, shape index: {}]
  %s3 = inlined_call_operand.vmem [shape: f32[8,8192], index: 3, kind: output, shape index: {}]
  %s4 = sld [smem:[#allocation0]]
  $region45: #{forward.114} parent=0
    _
  %s6 = ssub.s32 1, %s4
  %s7 = scalar_select 0, %s6, %s4
  loop: start=0, step=1, limit=10
  $region2: #{forward.114} parent=0 // loop_pre_header
    _
  $region3: #{forward.114} parent=0 // loop_header
    %s9 = sphi 0, %s13
    %p10 = scmp.ge.s32.totalorder %s9, 10
    %s17 = sphi 0, %s17
    %s19 = sphi 0, %s17
    %s20 = sphi 0, %s19
    %s34 = sphi 0, %s20
    %s40 = sphi 0, %s42
    %s43 = sphi 0, %s40
    %s44 = sphi 0, %s43
    %s60 = sphi 0, %s44
    %s64 = sphi 0, %s64
    %s66 = sphi 0, %s64
    %s67 = sphi 0, %s66
    %s81 = sphi 0, %s67
    %s87 = sphi 0, %s89
    %s90 = sphi 0, %s87
    %s91 = sphi 0, %s90
    %s107 = sphi 0, %s91
  $region4: #{forward.114} parent=0 // loop_header_branch
    %12 = sbr.rel (%p10) target = $region8
  $region5: #{forward.114} parent=0 // loop_body
    %s14 = ssub.s32 %s9, 1
    %s15 = ssub.s32 %s9, 2
    %s16 = sadd.s32 %s9, 1
    %s18 = sadd.s32 %s17, 1
    %p21 = scmp.eq.s32.totalorder %s9, 7
    %p22 = scmp.ne.s32.totalorder %s17, %s19
    %p23 = scmp.eq.s32.totalorder %s9, 0
    %p24 = por %p22, %p23
    %p25 = scmp.ne.s32.totalorder %s17, %s19
    %p26 = scmp.eq.s32.totalorder %s14, 7
    %p27 = por %p25, %p26
    %p28 = scmp.ne.s32.totalorder %s19, %s20
    %p29 = scmp.eq.s32.totalorder %s14, 0
    %p30 = por %p28, %p29
    %p31 = scmp.ne.s32.totalorder %s19, %s20
    %p32 = scmp.eq.s32.totalorder %s15, 7
    %p33 = por %p31, %p32
    %p35 = scmp.ne.s32.totalorder %s20, %s34
    %p36 = scmp.eq.s32.totalorder %s15, 0
    %p37 = por %p35, %p36
    %s38 = ssub.s32 %s9, %s16
    %p39 = scmp.eq.s32.totalorder %s38, 0
    %s41 = sadd.s32 %s40, 1
    %s42 = scalar_select %p39, %s40, %s41
    %p45 = pneg %p39
    %p46 = scmp.eq.s32.totalorder %s9, 7
    %p47 = por %p45, %p46
    %p48 = scmp.ne.s32.totalorder %s40, %s43
    %p49 = scmp.eq.s32.totalorder %s9, 0
    %p50 = por %p48, %p49
    %p51 = scmp.ne.s32.totalorder %s40, %s43
    %p52 = scmp.eq.s32.totalorder %s14, 7
    %p53 = por %p51, %p52
    %p54 = scmp.ne.s32.totalorder %s43, %s44
    %p55 = scmp.eq.s32.totalorder %s14, 0
    %p56 = por %p54, %p55
    %p57 = scmp.ne.s32.totalorder %s43, %s44
    %p58 = scmp.eq.s32.totalorder %s15, 7
    %p59 = por %p57, %p58
    %p61 = scmp.ne.s32.totalorder %s44, %s60
    %p62 = scmp.eq.s32.totalorder %s15, 0
    %p63 = por %p61, %p62
    %s65 = sadd.s32 %s64, 1
    %p68 = scmp.eq.s32.totalorder %s9, 7
    %p69 = scmp.ne.s32.totalorder %s64, %s66
    %p70 = scmp.eq.s32.totalorder %s9, 0
    %p71 = por %p69, %p70
    %p72 = scmp.ne.s32.totalorder %s64, %s66
    %p73 = scmp.eq.s32.totalorder %s14, 7
    %p74 = por %p72, %p73
    %p75 = scmp.ne.s32.totalorder %s66, %s67
    %p76 = scmp.eq.s32.totalorder %s14, 0
    %p77 = por %p75, %p76
    %p78 = scmp.ne.s32.totalorder %s66, %s67
    %p79 = scmp.eq.s32.totalorder %s15, 7
    %p80 = por %p78, %p79
    %p82 = scmp.ne.s32.totalorder %s67, %s81
    %p83 = scmp.eq.s32.totalorder %s15, 0
    %p84 = por %p82, %p83
    %s85 = ssub.s32 %s9, %s16
    %p86 = scmp.eq.s32.totalorder %s85, 0
    %s88 = sadd.s32 %s87, 1
    %s89 = scalar_select %p86, %s87, %s88
    %p92 = pneg %p86
    %p93 = scmp.eq.s32.totalorder %s9, 7
    %p94 = por %p92, %p93
    %p95 = scmp.ne.s32.totalorder %s87, %s90
    %p96 = scmp.eq.s32.totalorder %s9, 0
    %p97 = por %p95, %p96
    %p98 = scmp.ne.s32.totalorder %s87, %s90
    %p99 = scmp.eq.s32.totalorder %s14, 7
    %p100 = por %p98, %p99
    %p101 = scmp.ne.s32.totalorder %s90, %s91
    %p102 = scmp.eq.s32.totalorder %s14, 0
    %p103 = por %p101, %p102
    %p104 = scmp.ne.s32.totalorder %s90, %s91
    %p105 = scmp.eq.s32.totalorder %s15, 7
    %p106 = por %p104, %p105
    %p108 = scmp.ne.s32.totalorder %s91, %s107
    %p109 = scmp.eq.s32.totalorder %s15, 0
    %p110 = por %p108, %p109
    %p111 = scmp.le.s32.totalorder 1, %s9
    %p112 = scmp.lt.s32.totalorder %s9, 9
    %p113 = pnand %p111, %p112
    %p114 = pneg %p113
    // Predicated region
    $region9: #{forward.114} parent=5 // pred_check
      _
    $region10: #{forward.114} parent=5 // pred_check_branch
      %116 = sbr.rel (%p113) target = $region12
    $region11: #{forward.114} parent=5 // pred_region
      %s117 = ssub.s32 %s9, 1
      // Predicated region
      $region13: #{forward.114} parent=11 // pred_check
        %p118 = pneg %p30
      $region14: #{forward.114} parent=11 // pred_check_branch
        %120 = sbr.rel (%p118) target = $region16
      $region15: #{forward.114} parent=11 // pred_region
        _
      $region16: #{forward.114} parent=11 // pred_fallthru
        _
      // Predicated region
      $region17: #{forward.114} parent=11 // pred_check
        %p121 = pneg %p77
      $region18: #{forward.114} parent=11 // pred_check_branch
        %123 = sbr.rel (%p121) target = $region20
      $region19: #{forward.114} parent=11 // pred_region
        _
      $region20: #{forward.114} parent=11 // pred_fallthru
        _
    $region12: #{forward.114} parent=5 // pred_fallthru
      _
    %p124 = scmp.lt.s32.totalorder %s9, 8
    // Predicated region
    $region21: #{forward.114} parent=5 // pred_check
      %p125 = pneg %p124
    $region22: #{forward.114} parent=5 // pred_check_branch
      %127 = sbr.rel (%p125) target = $region24
    $region23: #{forward.114} parent=5 // pred_region
      // Predicated region
      $region25: #{forward.114} parent=23 // pred_check
        %p128 = pneg %p50
      $region26: #{forward.114} parent=23 // pred_check_branch
        %130 = sbr.rel (%p128) target = $region28
      $region27: #{forward.114} parent=23 // pred_region
        %s131 = smul.u32 8, %s9
        %p132 = scmp.lt.s32.totalorder %s131, 63
        %s133 = scalar_select %p132, %s131, 63
        %s134 = smul.addr %s133, 8
        %s135 = scalar_lea.vmem %s1, %s134
        %s136 = smul.u32 8, %s9
      $region28: #{forward.114} parent=23 // pred_fallthru
        _
    $region24: #{forward.114} parent=5 // pred_fallthru
      _
    %p137 = scmp.le.s32.totalorder 1, %s9
    %p138 = scmp.lt.s32.totalorder %s9, 9
    %p139 = pnand %p137, %p138
    %p140 = pneg %p139
    // Predicated region
    $region29: #{forward.114} parent=5 // pred_check
      _
    $region30: #{forward.114} parent=5 // pred_check_branch
      %142 = sbr.rel (%p139) target = $region32
    $region31: #{forward.114} parent=5 // pred_region
      %s143 = ssub.s32 %s9, 1
      %p144 = pneg %p30
      %p145 = pneg %p27
      %s146 = smul.u32 8, %s14
      %p147 = scmp.lt.s32.totalorder %s146, 63
      %s148 = scalar_select %p147, %s146, 63
      %s149 = smul.addr %s148, 8
      %s150 = scalar_lea.vmem %s1, %s149
      %p151 = pneg %p56
      %p152 = pneg %p53
      %p153 = pneg %p77
      %p154 = pneg %p74
      %p155 = pneg %p103
      %p156 = pneg %p100
      %s157 = smul.u32 8, %s14
      %p158 = scmp.lt.s32.totalorder %s157, 63
      %s159 = scalar_select %p158, %s157, 63
      %s160 = smul.addr %s159, 8
      %s161 = scalar_lea.vmem %s3, %s160
      %s162 = smul.u32 8, %s14
      %p163 = scmp.lt.s32.totalorder %s162, 63
      %s164 = scalar_select %p163, %s162, 63
      %s165 = smul.addr %s164, 8
      %s166 = scalar_lea.vmem %s1, %s165
      %s167 = smul.u32 8, %s14
      %s168 = smul.u32 8, %s14
      %p169 = scmp.lt.s32.totalorder %s168, 63
      %s170 = scalar_select %p169, %s168, 63
      %s171 = smul.addr %s170, 8
      %s172 = scalar_lea.vmem %s3, %s171
      %s173 = smul.u32 8, %s14
      %v174 = vld [vmem:[%s0] sm:$0xff]
      %v175 = vld [vmem:[%s166] sm:$0xff]
      %v176 = vld [vmem:[%s166 + $0x8] sm:$0xff]
      %v177 = vld [vmem:[%s166 + $0x10] sm:$0xff]
      %v178 = vld [vmem:[%s166 + $0x18] sm:$0xff]
      %v179 = vld [vmem:[%s166 + $0x20] sm:$0xff]
      %v180 = vld [vmem:[%s166 + $0x28] sm:$0xff]
      %v181 = vld [vmem:[%s166 + $0x30] sm:$0xff]
      %v182 = vld [vmem:[%s166 + $0x38] sm:$0xff]
      %v183 = vld [vmem:[%s2] sm:$0xff]
      %185 = vset.pattern.permute.xlu0 0
      %186 = vperm.xlu0 %185, %v183
      %v187 = vpop.permute.xlu0 %186
      %vm189 = vcmask 64512
      %v191 = vsel %vm189, %v174, 0
      %193 = vmatpush.msra.mxu0 0.0
      %194 = vmatpush.msra.mxu0 0.0
      %195 = vmatpush.msra.mxu0 0.0
      %196 = vmatpush.msra.mxu0 0.0
      %197 = vmatpush.msra.mxu0 0.0
      %198 = vmatpush.msra.mxu0 0.0
      %199 = vmatpush.msra.mxu0 0.0
      %200 = vmatpush.msra.mxu0 0.0
      %201 = vmatpush.msra.mxu0 0.0
      %202 = vmatpush.msra.mxu0 0.0
      %203 = vmatpush.msra.mxu0 0.0
      %204 = vmatpush.msra.mxu0 0.0
      %205 = vmatpush.msra.mxu0 0.0
      %206 = vmatpush.msra.mxu0 0.0
      %207 = vmatpush.msra.mxu0 0.0
      %208 = vmatpush.msra.mxu0 %v175
      %209 = vmatmul.f32.gmra.mxu0 %v191
      %v210 = vpop.f32.mrf.mxu0
      %v211 = vadd.f32 %v187, %v210
      %212 = vdwg.mxu0
      %213 = vmatpush.msra.mxu0 0.0
      %214 = vmatpush.msra.mxu0 0.0
      %215 = vmatpush.msra.mxu0 0.0
      %216 = vmatpush.msra.mxu0 0.0
      %217 = vmatpush.msra.mxu0 0.0
      %218 = vmatpush.msra.mxu0 0.0
      %219 = vmatpush.msra.mxu0 0.0
      %220 = vmatpush.msra.mxu0 0.0
      %221 = vmatpush.msra.mxu0 0.0
      %222 = vmatpush.msra.mxu0 0.0
      %223 = vmatpush.msra.mxu0 0.0
      %224 = vmatpush.msra.mxu0 0.0
      %225 = vmatpush.msra.mxu0 0.0
      %226 = vmatpush.msra.mxu0 0.0
      %227 = vmatpush.msra.mxu0 0.0
      %228 = vmatpush.msra.mxu0 %v176
      %229 = vmatmul.f32.gmra.mxu0 %v191
      %v230 = vpop.f32.mrf.mxu0
      %v231 = vadd.f32 %v187, %v230
      %232 = vdwg.mxu0
      %233 = vmatpush.msra.mxu0 0.0
      %234 = vmatpush.msra.mxu0 0.0
      %235 = vmatpush.msra.mxu0 0.0
      %236 = vmatpush.msra.mxu0 0.0
      %237 = vmatpush.msra.mxu0 0.0
      %238 = vmatpush.msra.mxu0 0.0
      %239 = vmatpush.msra.mxu0 0.0
      %240 = vmatpush.msra.mxu0 0.0
      %241 = vmatpush.msra.mxu0 0.0
      %242 = vmatpush.msra.mxu0 0.0
      %243 = vmatpush.msra.mxu0 0.0
      %244 = vmatpush.msra.mxu0 0.0
      %245 = vmatpush.msra.mxu0 0.0
      %246 = vmatpush.msra.mxu0 0.0
      %247 = vmatpush.msra.mxu0 0.0
      %248 = vmatpush.msra.mxu0 %v177
      %249 = vmatmul.f32.gmra.mxu0 %v191
      %v250 = vpop.f32.mrf.mxu0
      %v251 = vadd.f32 %v187, %v250
      %252 = vdwg.mxu0
      %253 = vmatpush.msra.mxu0 0.0
      %254 = vmatpush.msra.mxu0 0.0
      %255 = vmatpush.msra.mxu0 0.0
      %256 = vmatpush.msra.mxu0 0.0
      %257 = vmatpush.msra.mxu0 0.0
      %258 = vmatpush.msra.mxu0 0.0
      %259 = vmatpush.msra.mxu0 0.0
      %260 = vmatpush.msra.mxu0 0.0
      %261 = vmatpush.msra.mxu0 0.0
      %262 = vmatpush.msra.mxu0 0.0
      %263 = vmatpush.msra.mxu0 0.0
      %264 = vmatpush.msra.mxu0 0.0
      %265 = vmatpush.msra.mxu0 0.0
      %266 = vmatpush.msra.mxu0 0.0
      %267 = vmatpush.msra.mxu0 0.0
      %268 = vmatpush.msra.mxu0 %v178
      %269 = vmatmul.f32.gmra.mxu0 %v191
      %v270 = vpop.f32.mrf.mxu0
      %v271 = vadd.f32 %v187, %v270
      %272 = vdwg.mxu0
      %273 = vmatpush.msra.mxu0 0.0
      %274 = vmatpush.msra.mxu0 0.0
      %275 = vmatpush.msra.mxu0 0.0
      %276 = vmatpush.msra.mxu0 0.0
      %277 = vmatpush.msra.mxu0 0.0
      %278 = vmatpush.msra.mxu0 0.0
      %279 = vmatpush.msra.mxu0 0.0
      %280 = vmatpush.msra.mxu0 0.0
      %281 = vmatpush.msra.mxu0 0.0
      %282 = vmatpush.msra.mxu0 0.0
      %283 = vmatpush.msra.mxu0 0.0
      %284 = vmatpush.msra.mxu0 0.0
      %285 = vmatpush.msra.mxu0 0.0
      %286 = vmatpush.msra.mxu0 0.0
      %287 = vmatpush.msra.mxu0 0.0
      %288 = vmatpush.msra.mxu0 %v179
      %289 = vmatmul.f32.gmra.mxu0 %v191
      %v290 = vpop.f32.mrf.mxu0
      %v291 = vadd.f32 %v187, %v290
      %292 = vdwg.mxu0
      %293 = vmatpush.msra.mxu0 0.0
      %294 = vmatpush.msra.mxu0 0.0
      %295 = vmatpush.msra.mxu0 0.0
      %296 = vmatpush.msra.mxu0 0.0
      %297 = vmatpush.msra.mxu0 0.0
      %298 = vmatpush.msra.mxu0 0.0
      %299 = vmatpush.msra.mxu0 0.0
      %300 = vmatpush.msra.mxu0 0.0
      %301 = vmatpush.msra.mxu0 0.0
      %302 = vmatpush.msra.mxu0 0.0
      %303 = vmatpush.msra.mxu0 0.0
      %304 = vmatpush.msra.mxu0 0.0
      %305 = vmatpush.msra.mxu0 0.0
      %306 = vmatpush.msra.mxu0 0.0
      %307 = vmatpush.msra.mxu0 0.0
      %308 = vmatpush.msra.mxu0 %v180
      %309 = vmatmul.f32.gmra.mxu0 %v191
      %v310 = vpop.f32.mrf.mxu0
      %v311 = vadd.f32 %v187, %v310
      %312 = vdwg.mxu0
      %313 = vmatpush.msra.mxu0 0.0
      %314 = vmatpush.msra.mxu0 0.0
      %315 = vmatpush.msra.mxu0 0.0
      %316 = vmatpush.msra.mxu0 0.0
      %317 = vmatpush.msra.mxu0 0.0
      %318 = vmatpush.msra.mxu0 0.0
      %319 = vmatpush.msra.mxu0 0.0
      %320 = vmatpush.msra.mxu0 0.0
      %321 = vmatpush.msra.mxu0 0.0
      %322 = vmatpush.msra.mxu0 0.0
      %323 = vmatpush.msra.mxu0 0.0
      %324 = vmatpush.msra.mxu0 0.0
      %325 = vmatpush.msra.mxu0 0.0
      %326 = vmatpush.msra.mxu0 0.0
      %327 = vmatpush.msra.mxu0 0.0
      %328 = vmatpush.msra.mxu0 %v181
      %329 = vmatmul.f32.gmra.mxu0 %v191
      %v330 = vpop.f32.mrf.mxu0
      %v331 = vadd.f32 %v187, %v330
      %332 = vdwg.mxu0
      %333 = vmatpush.msra.mxu0 0.0
      %334 = vmatpush.msra.mxu0 0.0
      %335 = vmatpush.msra.mxu0 0.0
      %336 = vmatpush.msra.mxu0 0.0
      %337 = vmatpush.msra.mxu0 0.0
      %338 = vmatpush.msra.mxu0 0.0
      %339 = vmatpush.msra.mxu0 0.0
      %340 = vmatpush.msra.mxu0 0.0
      %341 = vmatpush.msra.mxu0 0.0
      %342 = vmatpush.msra.mxu0 0.0
      %343 = vmatpush.msra.mxu0 0.0
      %344 = vmatpush.msra.mxu0 0.0
      %345 = vmatpush.msra.mxu0 0.0
      %346 = vmatpush.msra.mxu0 0.0
      %347 = vmatpush.msra.mxu0 0.0
      %348 = vmatpush.msra.mxu0 %v182
      %349 = vmatmul.f32.gmra.mxu0 %v191
      %v350 = vpop.f32.mrf.mxu0
      %v351 = vadd.f32 %v187, %v350
      %352 = vdwg.mxu0
      %353 = vst [vmem:[%s172] sm:$0xff] %v211
      %354 = vst [vmem:[%s172 + $0x8] sm:$0xff] %v231
      %355 = vst [vmem:[%s172 + $0x10] sm:$0xff] %v251
      %356 = vst [vmem:[%s172 + $0x18] sm:$0xff] %v271
      %357 = vst [vmem:[%s172 + $0x20] sm:$0xff] %v291
      %358 = vst [vmem:[%s172 + $0x28] sm:$0xff] %v311
      %359 = vst [vmem:[%s172 + $0x30] sm:$0xff] %v331
      %360 = vst [vmem:[%s172 + $0x38] sm:$0xff] %v351
      %s361 = smul.u32 8, %s14
      %p362 = scmp.lt.s32.totalorder %s361, 63
      %s363 = scalar_select %p362, %s361, 63
      %s364 = smul.addr %s363, 8
      %s365 = scalar_lea.vmem %s3, %s364
      // Predicated region
      $region33: #{forward.114} parent=31 // pred_check
        %p366 = pneg %p100
      $region34: #{forward.114} parent=31 // pred_check_branch
        %368 = sbr.rel (%p366) target = $region36
      $region35: #{forward.114} parent=31 // pred_region
        %s369 = smul.u32 8, %s14
      $region36: #{forward.114} parent=31 // pred_fallthru
        _
    $region32: #{forward.114} parent=5 // pred_fallthru
      _
    %p370 = scmp.le.s32.totalorder 2, %s9
    // Predicated region
    $region37: #{forward.114} parent=5 // pred_check
      %p371 = pneg %p370
    $region38: #{forward.114} parent=5 // pred_check_branch
      %373 = sbr.rel (%p371) target = $region40
    $region39: #{forward.114} parent=5 // pred_region
      %s374 = ssub.s32 %s9, 2
      // Predicated region
      $region41: #{forward.114} parent=39 // pred_check
        %p375 = pneg %p106
      $region42: #{forward.114} parent=39 // pred_check_branch
        %377 = sbr.rel (%p375) target = $region44
      $region43: #{forward.114} parent=39 // pred_region
        %s378 = smul.u32 8, %s15
        %p379 = scmp.lt.s32.totalorder %s378, 63
        %s380 = scalar_select %p379, %s378, 63
        %s381 = smul.addr %s380, 8
        %s382 = scalar_lea.vmem %s3, %s381
      $region44: #{forward.114} parent=39 // pred_fallthru
        _
    $region40: #{forward.114} parent=5 // pred_fallthru
      _
  $region6: #{forward.114} parent=0 // loop_footer
    %s13 = sadd.s32 1, %s9
  $region7: #{forward.114} parent=0 // loop_footer_branch
    %8 = sbr.rel target = $region3
  $region8: #{forward.114} parent=0 // loop_exit
    _

</llo_original>
